<compile_context>
chip_gen: v7x
topology: tpu7x:2x2x1
jax: 0.10.0
libtpu: 0.0.40
codegen_flags: <defaults>
</compile_context>

<pallas_src>
import jax
import jax.numpy as jnp
from jax.experimental import pallas as pl
from jax.experimental.pallas import tpu as pltpu

SELU_ALPHA = 1.6732632423543772
SELU_SCALE = 1.0507009873554805

LANE = 128  # TPU lane width; pad n_kernels up to this for lane-dense stores.


def _selu(x):
    return SELU_SCALE * jnp.where(x > 0, x, SELU_ALPHA * (jnp.exp(x) - 1.0))


def _make_kernel(layer_kernel_sizes):
    """Kernel body for a fixed stack of valid 1D-conv + SELU layers, then max over positions."""

    def kernel(x_ref, *refs):
        o_ref = refs[-1]
        wb_refs = refs[:-1]  # (w0, b0, w1, b1, ...)

        acts = x_ref[...]  # (TB, L, C) bf16 (layer 0) / f32 (later layers)
        for li, K in enumerate(layer_kernel_sizes):
            w_ref = wb_refs[2 * li]      # (K*C, N_pad) bf16
            b_ref = wb_refs[2 * li + 1]  # (1, N_pad)  f32
            tb, L, C = acts.shape
            L_out = L - K + 1

            # im2col: concatenate the K shifted views along the lane axis,
            # then collapse (batch, position) into matmul rows.
            lhs = acts.astype(jnp.bfloat16)
            patches = jnp.concatenate(
                [lhs[:, t:t + L_out, :] for t in range(K)], axis=-1
            ).reshape(tb * L_out, K * C)

            # Single MXU matmul per layer, f32 accumulation.
            acc = jnp.dot(patches, w_ref[...], preferred_element_type=jnp.float32)
            acc = acc + b_ref[...]                      # bias in f32
            acts = _selu(acc).reshape(tb, L_out, -1)    # (TB, L_out, N_pad) f32

        # Max over sequence positions -> lane-dense (TB, N_pad) store.
        o_ref[...] = jnp.max(acts, axis=1).astype(o_ref.dtype)

    return kernel


def _default_tile_b(B):
    # Keep >= 2 grid steps when possible (v7x has 2 TensorCores), tile a multiple of 8,
    # capped at 512 rows so double-buffered tiles stay well inside v7x's 64 MiB VMEM.
    for cand in (512, 256, 128, 64, 32, 16, 8):
        if cand <= B // 2 and B % cand == 0:
            return cand
    return B


def sequence_embedding_cnn_pallas(x_bcl, weights_oiw, biases, *, tile_b=None):
    """x_bcl:       (B, C_in, L) float32, PyTorch NCW layout.
    weights_oiw: list of (n_kernels, C_in_i, K_i) conv weights (PyTorch OIW layout).
    biases:      list of (n_kernels,) biases.
    Returns (B, n_kernels) float32."""
    B, C_in, L = x_bcl.shape
    n_kernels = int(weights_oiw[0].shape[0])
    n_pad = ((n_kernels + LANE - 1) // LANE) * LANE  # lane-dense output channels

    if tile_b is None:
        tile_b = _default_tile_b(B)
    # TODO(synk): ragged n_sequences must be padded to a multiple of tile_b by the caller
    # and the padded rows sliced off afterwards (they produce garbage embeddings).
    assert B % tile_b == 0, "n_sequences must be a multiple of tile_b"

    # Channels-last bf16 activations (halves input HBM/VMEM traffic, full-rate MXU).
    x_blc = jnp.transpose(x_bcl, (0, 2, 1)).astype(jnp.bfloat16)

    # Pre-flatten weights to (K*C_in_layer, N_pad) bf16; zero-pad channels in the wrapper.
    layer_kernel_sizes = []
    w_flat, b_pad = [], []
    for li, (w, b) in enumerate(zip(weights_oiw, biases)):
        n, c, k = (int(s) for s in w.shape)
        layer_kernel_sizes.append(k)
        c_in_layer = C_in if li == 0 else n_pad       # later layers see padded channels
        w_kcn = jnp.transpose(w, (2, 1, 0))           # (K, C, N)
        w_full = jnp.zeros((k, c_in_layer, n_pad), jnp.float32)
        w_full = w_full.at[:, :c, :n].set(w_kcn.astype(jnp.float32))
        w_flat.append(w_full.reshape(k * c_in_layer, n_pad).astype(jnp.bfloat16))
        b_full = jnp.zeros((1, n_pad), jnp.float32).at[0, :n].set(b.astype(jnp.float32))
        b_pad.append(b_full)

    kernel = _make_kernel(layer_kernel_sizes)

    in_specs = [pl.BlockSpec((tile_b, L, C_in), lambda i: (i, 0, 0))]
    args = [x_blc]
    for w2d, b2d in zip(w_flat, b_pad):
        in_specs.append(pl.BlockSpec(w2d.shape, lambda i: (0, 0)))
        in_specs.append(pl.BlockSpec(b2d.shape, lambda i: (0, 0)))
        args.append(w2d)
        args.append(b2d)

    out_spec = pl.BlockSpec((tile_b, n_pad), lambda i: (i, 0))

    # Advisory cost estimate so XLA schedules around the custom call.
    flops, trans = 0, 0
    l_cur = L
    for k, w2d in zip(layer_kernel_sizes, w_flat):
        l_out = l_cur - k + 1
        flops += 2 * B * l_out * int(w2d.shape[0]) * n_pad
        trans += B * l_out * n_pad        # one exp per SELU element
        l_cur = l_out
    bytes_accessed = (x_blc.size * 2
                      + sum(w.size * 2 for w in w_flat)
                      + sum(bb.size * 4 for bb in b_pad)
                      + B * n_pad * 4)

    out_padded = pl.pallas_call(
        kernel,
        out_shape=jax.ShapeDtypeStruct((B, n_pad), jnp.float32),
        grid_spec=pltpu.PrefetchScalarGridSpec(
            num_scalar_prefetch=0,
            grid=(B // tile_b,),
            in_specs=in_specs,
            out_specs=out_spec,
        ),
        compiler_params=pltpu.CompilerParams(
            dimension_semantics=("parallel",),
        ),
        cost_estimate=pl.CostEstimate(
            flops=int(flops),
            transcendentals=int(trans),
            bytes_accessed=int(bytes_accessed),
        ),
    )(*args)

    return out_padded[:, :n_kernels]


def reference_jax(x_bcl, weights_oiw, biases):
    """Pure-JAX f32 reference matching the PyTorch forward (NCW layout)."""
    acts = x_bcl
    for w, b in zip(weights_oiw, biases):
        acts = jax.lax.conv_general_dilated(
            acts, w, window_strides=(1,), padding="VALID",
            dimension_numbers=("NCH", "OIH", "NCH"),
        )
        acts = acts + b[None, :, None]
        acts = _selu(acts)
    return jnp.max(acts, axis=-1)


if __name__ == "__main__":
    # Module config: 23 input features (20 AA + 3 position), kernel_size=9, 32 kernels, 1 extra conv.
    n_sequences = 64
    n_in_features = 23
    n_positions = 16
    kernel_size = 9
    n_kernels = 32
    n_additional_convs = 1

    key = jax.random.PRNGKey(0)
    k_x, k_w0, k_b0, *k_add = jax.random.split(key, 3 + 2 * n_additional_convs)

    # Inputs in PyTorch layout (n_sequences, n_in_features, n_positions).
    x_bcl = jax.random.normal(
        k_x, (n_sequences, n_in_features, n_positions), dtype=jnp.float32
    )

    # First conv weight, PyTorch OIW layout (n_kernels, n_in_features, kernel_size),
    # init ~ N(0, sqrt(1/prod(shape))) like the module.
    w0_shape = (n_kernels, n_in_features, kernel_size)
    w0 = jax.random.normal(k_w0, w0_shape, jnp.float32) * jnp.sqrt(
        1.0 / (n_kernels * n_in_features * kernel_size)
    )
    b0 = 0.01 * jax.random.normal(k_b0, (n_kernels,), jnp.float32)

    weights_oiw = [w0]
    biases = [b0]
    for i in range(n_additional_convs):
        wa_shape = (n_kernels, n_kernels, 3)
        wa = jax.random.normal(k_add[2 * i], wa_shape, jnp.float32) * jnp.sqrt(
            1.0 / (n_kernels * n_kernels * 3)
        )
        ba = 0.01 * jax.random.normal(k_add[2 * i + 1], (n_kernels,), jnp.float32)
        weights_oiw.append(wa)
        biases.append(ba)

    out = sequence_embedding_cnn_pallas(x_bcl, weights_oiw, biases)  # tile_b auto -> 32, grid=2
    out = jax.block_until_ready(out)

    ref = jax.block_until_ready(reference_jax(x_bcl, weights_oiw, biases))

    assert out.shape == (n_sequences, n_kernels)
    # bf16 matmul operands with f32 accumulation -> slightly looser tolerance than pure f32.
    assert jnp.allclose(out, ref, atol=1e-2, rtol=1e-2), (
        f"max abs err = {jnp.max(jnp.abs(out - ref))}"
    )
    print("KERNEL_OK")
</pallas_src>

<mosaic_0001>
module attributes {stable_mosaic.version = 11 : i64} {
  func.func @kernel(%arg0: i32, %arg1: memref<32x16x23xbf16, #tpu.memory_space<vmem>>, %arg2: memref<207x128xbf16, #tpu.memory_space<vmem>>, %arg3: memref<1x128xf32, #tpu.memory_space<vmem>>, %arg4: memref<384x128xbf16, #tpu.memory_space<vmem>>, %arg5: memref<1x128xf32, #tpu.memory_space<vmem>>, %arg6: memref<32x128xf32, #tpu.memory_space<vmem>>) attributes {dimension_semantics = [#tpu.dimension_semantics<parallel>], iteration_bounds = array<i64: 2>, scalar_prefetch = 0 : i64, scratch_operands = 0 : i64, tpu.core_type = #tpu.core_type<tc>, window_params = [{transform_indices = @transform_0, window_bounds = array<i64: 32, 16, 23>}, {pipeline_mode = #tpu.pipeline_mode<synchronous>, transform_indices = @transform_1, window_bounds = array<i64: 207, 128>}, {pipeline_mode = #tpu.pipeline_mode<synchronous>, transform_indices = @transform_2, window_bounds = array<i64: 1, 128>}, {pipeline_mode = #tpu.pipeline_mode<synchronous>, transform_indices = @transform_3, window_bounds = array<i64: 384, 128>}, {pipeline_mode = #tpu.pipeline_mode<synchronous>, transform_indices = @transform_4, window_bounds = array<i64: 1, 128>}, {transform_indices = @transform_5, window_bounds = array<i64: 32, 128>}]} {
    %c0 = arith.constant 0 : index
    %c0_0 = arith.constant 0 : index
    %c0_1 = arith.constant 0 : index
    %0 = vector.load %arg1[%c0, %c0_0, %c0_1] : memref<32x16x23xbf16, #tpu.memory_space<vmem>>, vector<32x16x23xbf16>
    %1 = vector.extract_strided_slice %0 {offsets = [0, 0, 0], sizes = [32, 8, 23], strides = [1, 1, 1]} : vector<32x16x23xbf16> to vector<32x8x23xbf16>
    %2 = vector.extract_strided_slice %0 {offsets = [0, 1, 0], sizes = [32, 8, 23], strides = [1, 1, 1]} : vector<32x16x23xbf16> to vector<32x8x23xbf16>
    %3 = vector.extract_strided_slice %0 {offsets = [0, 2, 0], sizes = [32, 8, 23], strides = [1, 1, 1]} : vector<32x16x23xbf16> to vector<32x8x23xbf16>
    %4 = vector.extract_strided_slice %0 {offsets = [0, 3, 0], sizes = [32, 8, 23], strides = [1, 1, 1]} : vector<32x16x23xbf16> to vector<32x8x23xbf16>
    %5 = vector.extract_strided_slice %0 {offsets = [0, 4, 0], sizes = [32, 8, 23], strides = [1, 1, 1]} : vector<32x16x23xbf16> to vector<32x8x23xbf16>
    %6 = vector.extract_strided_slice %0 {offsets = [0, 5, 0], sizes = [32, 8, 23], strides = [1, 1, 1]} : vector<32x16x23xbf16> to vector<32x8x23xbf16>
    %7 = vector.extract_strided_slice %0 {offsets = [0, 6, 0], sizes = [32, 8, 23], strides = [1, 1, 1]} : vector<32x16x23xbf16> to vector<32x8x23xbf16>
    %8 = vector.extract_strided_slice %0 {offsets = [0, 7, 0], sizes = [32, 8, 23], strides = [1, 1, 1]} : vector<32x16x23xbf16> to vector<32x8x23xbf16>
    %9 = vector.extract_strided_slice %0 {offsets = [0, 8, 0], sizes = [32, 8, 23], strides = [1, 1, 1]} : vector<32x16x23xbf16> to vector<32x8x23xbf16>
    %10 = tpu.concatenate %1, %2, %3, %4, %5, %6, %7, %8, %9 in 2 : vector<32x8x23xbf16>, vector<32x8x23xbf16>, vector<32x8x23xbf16>, vector<32x8x23xbf16>, vector<32x8x23xbf16>, vector<32x8x23xbf16>, vector<32x8x23xbf16>, vector<32x8x23xbf16>, vector<32x8x23xbf16> -> vector<32x8x207xbf16>
    %11 = vector.shape_cast %10 : vector<32x8x207xbf16> to vector<256x207xbf16>
    %c0_2 = arith.constant 0 : index
    %c0_3 = arith.constant 0 : index
    %12 = vector.load %arg2[%c0_2, %c0_3] : memref<207x128xbf16, #tpu.memory_space<vmem>>, vector<207x128xbf16>
    %cst = arith.constant dense<0.000000e+00> : vector<256x128xf32>
    %13 = tpu.matmul %11, %12, %cst {dimension_numbers = #tpu.dot_dimension_numbers<[1], [0], [0], [1], [0, 0, 1, 1], [], []>} : vector<256x207xbf16>, vector<207x128xbf16>, vector<256x128xf32> -> vector<256x128xf32>
    %c0_4 = arith.constant 0 : index
    %c0_5 = arith.constant 0 : index
    %14 = vector.load %arg3[%c0_4, %c0_5] : memref<1x128xf32, #tpu.memory_space<vmem>>, vector<1x128xf32>
    %15 = vector.broadcast %14 : vector<1x128xf32> to vector<256x128xf32>
    %16 = arith.addf %13, %15 : vector<256x128xf32>
    %cst_6 = arith.constant 0.000000e+00 : f32
    %17 = vector.broadcast %cst_6 : f32 to vector<256x128xf32>
    %18 = arith.cmpf ogt, %16, %17 : vector<256x128xf32>
    %19 = math.exp %16 : vector<256x128xf32>
    %cst_7 = arith.constant 1.000000e+00 : f32
    %20 = vector.broadcast %cst_7 : f32 to vector<256x128xf32>
    %21 = arith.subf %19, %20 : vector<256x128xf32>
    %cst_8 = arith.constant 1.67326319 : f32
    %22 = vector.broadcast %cst_8 : f32 to vector<256x128xf32>
    %23 = arith.mulf %22, %21 : vector<256x128xf32>
    %24 = arith.select %18, %16, %23 : vector<256x128xi1>, vector<256x128xf32>
    %cst_9 = arith.constant 1.05070102 : f32
    %25 = vector.broadcast %cst_9 : f32 to vector<256x128xf32>
    %26 = arith.mulf %25, %24 : vector<256x128xf32>
    %27 = vector.shape_cast %26 : vector<256x128xf32> to vector<32x8x128xf32>
    %28 = arith.truncf %27 : vector<32x8x128xf32> to vector<32x8x128xbf16>
    %29 = vector.extract_strided_slice %28 {offsets = [0, 0, 0], sizes = [32, 6, 128], strides = [1, 1, 1]} : vector<32x8x128xbf16> to vector<32x6x128xbf16>
    %30 = vector.extract_strided_slice %28 {offsets = [0, 1, 0], sizes = [32, 6, 128], strides = [1, 1, 1]} : vector<32x8x128xbf16> to vector<32x6x128xbf16>
    %31 = vector.extract_strided_slice %28 {offsets = [0, 2, 0], sizes = [32, 6, 128], strides = [1, 1, 1]} : vector<32x8x128xbf16> to vector<32x6x128xbf16>
    %32 = tpu.concatenate %29, %30, %31 in 2 : vector<32x6x128xbf16>, vector<32x6x128xbf16>, vector<32x6x128xbf16> -> vector<32x6x384xbf16>
    %33 = vector.shape_cast %32 : vector<32x6x384xbf16> to vector<192x384xbf16>
    %c0_10 = arith.constant 0 : index
    %c0_11 = arith.constant 0 : index
    %34 = vector.load %arg4[%c0_10, %c0_11] : memref<384x128xbf16, #tpu.memory_space<vmem>>, vector<384x128xbf16>
    %cst_12 = arith.constant dense<0.000000e+00> : vector<192x128xf32>
    %35 = tpu.matmul %33, %34, %cst_12 {dimension_numbers = #tpu.dot_dimension_numbers<[1], [0], [0], [1], [0, 0, 1, 1], [], []>} : vector<192x384xbf16>, vector<384x128xbf16>, vector<192x128xf32> -> vector<192x128xf32>
    %c0_13 = arith.constant 0 : index
    %c0_14 = arith.constant 0 : index
    %36 = vector.load %arg5[%c0_13, %c0_14] : memref<1x128xf32, #tpu.memory_space<vmem>>, vector<1x128xf32>
    %37 = vector.broadcast %36 : vector<1x128xf32> to vector<192x128xf32>
    %38 = arith.addf %35, %37 : vector<192x128xf32>
    %cst_15 = arith.constant 0.000000e+00 : f32
    %39 = vector.broadcast %cst_15 : f32 to vector<192x128xf32>
    %40 = arith.cmpf ogt, %38, %39 : vector<192x128xf32>
    %41 = math.exp %38 : vector<192x128xf32>
    %cst_16 = arith.constant 1.000000e+00 : f32
    %42 = vector.broadcast %cst_16 : f32 to vector<192x128xf32>
    %43 = arith.subf %41, %42 : vector<192x128xf32>
    %cst_17 = arith.constant 1.67326319 : f32
    %44 = vector.broadcast %cst_17 : f32 to vector<192x128xf32>
    %45 = arith.mulf %44, %43 : vector<192x128xf32>
    %46 = arith.select %40, %38, %45 : vector<192x128xi1>, vector<192x128xf32>
    %cst_18 = arith.constant 1.05070102 : f32
    %47 = vector.broadcast %cst_18 : f32 to vector<192x128xf32>
    %48 = arith.mulf %47, %46 : vector<192x128xf32>
    %49 = vector.shape_cast %48 : vector<192x128xf32> to vector<32x6x128xf32>
    %cst_19 = arith.constant dense<0xFF800000> : vector<32x128xf32>
    %50 = vector.multi_reduction <maximumf>, %49, %cst_19 [1] : vector<32x6x128xf32> to vector<32x128xf32>
    %c0_20 = arith.constant 0 : index
    %c0_21 = arith.constant 0 : index
    %51 = vector.load %arg6[%c0_20, %c0_21] : memref<32x128xf32, #tpu.memory_space<vmem>>, vector<32x128xf32>
    tpu.vector_store %arg6[%c0_20, %c0_21], %50 {strides = array<i32>} : memref<32x128xf32, #tpu.memory_space<vmem>>, vector<32x128xf32>,
    return
  }
  func.func @transform_0(%arg0: i32) -> (i32, i32, i32) {
    %c0_i32 = arith.constant 0 : i32
    %c0_i32_0 = arith.constant 0 : i32
    %c0_i32_1 = arith.constant 0 : i32
    return %arg0, %c0_i32, %c0_i32_0 : i32, i32, i32
  }
  func.func @transform_1(%arg0: i32) -> (i32, i32) {
    %c0_i32 = arith.constant 0 : i32
    %c0_i32_0 = arith.constant 0 : i32
    %c0_i32_1 = arith.constant 0 : i32
    return %c0_i32, %c0_i32_0 : i32, i32
  }
  func.func @transform_2(%arg0: i32) -> (i32, i32) {
    %c0_i32 = arith.constant 0 : i32
    %c0_i32_0 = arith.constant 0 : i32
    %c0_i32_1 = arith.constant 0 : i32
    return %c0_i32, %c0_i32_0 : i32, i32
  }
  func.func @transform_3(%arg0: i32) -> (i32, i32) {
    %c0_i32 = arith.constant 0 : i32
    %c0_i32_0 = arith.constant 0 : i32
    %c0_i32_1 = arith.constant 0 : i32
    return %c0_i32, %c0_i32_0 : i32, i32
  }
  func.func @transform_4(%arg0: i32) -> (i32, i32) {
    %c0_i32 = arith.constant 0 : i32
    %c0_i32_0 = arith.constant 0 : i32
    %c0_i32_1 = arith.constant 0 : i32
    return %c0_i32, %c0_i32_0 : i32, i32
  }
  func.func @transform_5(%arg0: i32) -> (i32, i32) {
    %c0_i32 = arith.constant 0 : i32
    %c0_i32_0 = arith.constant 0 : i32
    return %arg0, %c0_i32 : i32, i32
  }
}

</mosaic_0001>

<llo_original>
// kernel: tpu_custom_call.1
$region0: #{tpu_custom_call.1}
  #allocation0 [shape = 'u32[]', space=smem, size = 0x4, offset = 0x4, fixed_abs, tag = 'smem constant byte address 0x4 - core index']
  #allocation1 [shape = 'u32[144,128]{1,0:T(1,128)}', space=vmem, size = 0x12000, scoped, tag = 'internal scratch']
  %s0 = inlined_call_operand.vmem [shape: bf16[64,16,23], index: 0, kind: input, shape index: {}]
  %s1 = inlined_call_operand.vmem [shape: bf16[207,128], index: 1, kind: input, shape index: {}]
  %s2 = inlined_call_operand.vmem [shape: f32[1,128], index: 2, kind: input, shape index: {}]
  %s3 = inlined_call_operand.vmem [shape: bf16[384,128], index: 3, kind: input, shape index: {}]
  %s4 = inlined_call_operand.vmem [shape: f32[1,128], index: 4, kind: input, shape index: {}]
  %s5 = inlined_call_operand.hbm [shape: f32[64,128], index: 5, kind: output, shape index: {}]
  %s6 = sld [smem:[#allocation0]]
  $region53: #{tpu_custom_call.1} parent=0
    _
  %s8 = ssub.s32 1, %s6
  %s9 = scalar_select 0, %s8, %s6
  $region1: #{tpu_custom_call.1} parent=0
    #allocation2 [shape = 'u8[32768]{0}', space=vmem, size = 0x8000, scoped, tag = 'output window, operand 0']
    #allocation3 [shape = 's32[2]{0}', space=sflag, size = 0x8, scoped, tag = 'scoped memory for tpu_custom_call.1']
    %10 = vsyncpa [#allocation3], 0
    %s11 = scalar_lea.sflag [#allocation3], 1
    %12 = vsyncpa %s11, 0
    loop: start=0, step=1, limit=4
    $region2: #{tpu_custom_call.1} parent=1 // loop_pre_header
      _
    $region3: #{tpu_custom_call.1} parent=1 // loop_header
      %s14 = sphi 0, %s18
      %p15 = scmp.ge.s32.totalorder %s14, 4
      %s24 = sphi 0, %s26
      %s27 = sphi 0, %s24
      %s28 = sphi 0, %s27
      %s44 = sphi 0, %s28
      %s48 = sphi 0, %s48
      %s50 = sphi 0, %s48
      %s51 = sphi 0, %s50
      %s65 = sphi 0, %s51
      %s69 = sphi 0, %s69
      %s71 = sphi 0, %s69
      %s72 = sphi 0, %s71
      %s86 = sphi 0, %s72
      %s90 = sphi 0, %s90
      %s92 = sphi 0, %s90
      %s93 = sphi 0, %s92
      %s107 = sphi 0, %s93
      %s111 = sphi 0, %s111
      %s113 = sphi 0, %s111
      %s114 = sphi 0, %s113
      %s128 = sphi 0, %s114
      %s134 = sphi 0, %s136
      %s137 = sphi 0, %s134
      %s138 = sphi 0, %s137
      %s154 = sphi 0, %s138
    $region4: #{tpu_custom_call.1} parent=1 // loop_header_branch
      %17 = sbr.rel (%p15) target = $region8
    $region5: #{tpu_custom_call.1} parent=1 // loop_body
      %s19 = ssub.s32 %s14, 1
      %s20 = ssub.s32 %s14, 2
      %s21 = sadd.s32 %s14, 1
      %s22 = ssub.s32 %s14, %s21
      %p23 = scmp.eq.s32.totalorder %s22, 0
      %s25 = sadd.s32 %s24, 1
      %s26 = scalar_select %p23, %s24, %s25
      %p29 = pneg %p23
      %p30 = scmp.eq.s32.totalorder %s14, 1
      %p31 = por %p29, %p30
      %p32 = scmp.ne.s32.totalorder %s24, %s27
      %p33 = scmp.eq.s32.totalorder %s14, 0
      %p34 = por %p32, %p33
      %p35 = scmp.ne.s32.totalorder %s24, %s27
      %p36 = scmp.eq.s32.totalorder %s19, 1
      %p37 = por %p35, %p36
      %p38 = scmp.ne.s32.totalorder %s27, %s28
      %p39 = scmp.eq.s32.totalorder %s19, 0
      %p40 = por %p38, %p39
      %p41 = scmp.ne.s32.totalorder %s27, %s28
      %p42 = scmp.eq.s32.totalorder %s20, 1
      %p43 = por %p41, %p42
      %p45 = scmp.ne.s32.totalorder %s28, %s44
      %p46 = scmp.eq.s32.totalorder %s20, 0
      %p47 = por %p45, %p46
      %s49 = sadd.s32 %s48, 1
      %p52 = scmp.eq.s32.totalorder %s14, 1
      %p53 = scmp.ne.s32.totalorder %s48, %s50
      %p54 = scmp.eq.s32.totalorder %s14, 0
      %p55 = por %p53, %p54
      %p56 = scmp.ne.s32.totalorder %s48, %s50
      %p57 = scmp.eq.s32.totalorder %s19, 1
      %p58 = por %p56, %p57
      %p59 = scmp.ne.s32.totalorder %s50, %s51
      %p60 = scmp.eq.s32.totalorder %s19, 0
      %p61 = por %p59, %p60
      %p62 = scmp.ne.s32.totalorder %s50, %s51
      %p63 = scmp.eq.s32.totalorder %s20, 1
      %p64 = por %p62, %p63
      %p66 = scmp.ne.s32.totalorder %s51, %s65
      %p67 = scmp.eq.s32.totalorder %s20, 0
      %p68 = por %p66, %p67
      %s70 = sadd.s32 %s69, 1
      %p73 = scmp.eq.s32.totalorder %s14, 1
      %p74 = scmp.ne.s32.totalorder %s69, %s71
      %p75 = scmp.eq.s32.totalorder %s14, 0
      %p76 = por %p74, %p75
      %p77 = scmp.ne.s32.totalorder %s69, %s71
      %p78 = scmp.eq.s32.totalorder %s19, 1
      %p79 = por %p77, %p78
      %p80 = scmp.ne.s32.totalorder %s71, %s72
      %p81 = scmp.eq.s32.totalorder %s19, 0
      %p82 = por %p80, %p81
      %p83 = scmp.ne.s32.totalorder %s71, %s72
      %p84 = scmp.eq.s32.totalorder %s20, 1
      %p85 = por %p83, %p84
      %p87 = scmp.ne.s32.totalorder %s72, %s86
      %p88 = scmp.eq.s32.totalorder %s20, 0
      %p89 = por %p87, %p88
      %s91 = sadd.s32 %s90, 1
      %p94 = scmp.eq.s32.totalorder %s14, 1
      %p95 = scmp.ne.s32.totalorder %s90, %s92
      %p96 = scmp.eq.s32.totalorder %s14, 0
      %p97 = por %p95, %p96
      %p98 = scmp.ne.s32.totalorder %s90, %s92
      %p99 = scmp.eq.s32.totalorder %s19, 1
      %p100 = por %p98, %p99
      %p101 = scmp.ne.s32.totalorder %s92, %s93
      %p102 = scmp.eq.s32.totalorder %s19, 0
      %p103 = por %p101, %p102
      %p104 = scmp.ne.s32.totalorder %s92, %s93
      %p105 = scmp.eq.s32.totalorder %s20, 1
      %p106 = por %p104, %p105
      %p108 = scmp.ne.s32.totalorder %s93, %s107
      %p109 = scmp.eq.s32.totalorder %s20, 0
      %p110 = por %p108, %p109
      %s112 = sadd.s32 %s111, 1
      %p115 = scmp.eq.s32.totalorder %s14, 1
      %p116 = scmp.ne.s32.totalorder %s111, %s113
      %p117 = scmp.eq.s32.totalorder %s14, 0
      %p118 = por %p116, %p117
      %p119 = scmp.ne.s32.totalorder %s111, %s113
      %p120 = scmp.eq.s32.totalorder %s19, 1
      %p121 = por %p119, %p120
      %p122 = scmp.ne.s32.totalorder %s113, %s114
      %p123 = scmp.eq.s32.totalorder %s19, 0
      %p124 = por %p122, %p123
      %p125 = scmp.ne.s32.totalorder %s113, %s114
      %p126 = scmp.eq.s32.totalorder %s20, 1
      %p127 = por %p125, %p126
      %p129 = scmp.ne.s32.totalorder %s114, %s128
      %p130 = scmp.eq.s32.totalorder %s20, 0
      %p131 = por %p129, %p130
      %s132 = ssub.s32 %s14, %s21
      %p133 = scmp.eq.s32.totalorder %s132, 0
      %s135 = sadd.s32 %s134, 1
      %s136 = scalar_select %p133, %s134, %s135
      %p139 = pneg %p133
      %p140 = scmp.eq.s32.totalorder %s14, 1
      %p141 = por %p139, %p140
      %p142 = scmp.ne.s32.totalorder %s134, %s137
      %p143 = scmp.eq.s32.totalorder %s14, 0
      %p144 = por %p142, %p143
      %p145 = scmp.ne.s32.totalorder %s134, %s137
      %p146 = scmp.eq.s32.totalorder %s19, 1
      %p147 = por %p145, %p146
      %p148 = scmp.ne.s32.totalorder %s137, %s138
      %p149 = scmp.eq.s32.totalorder %s19, 0
      %p150 = por %p148, %p149
      %p151 = scmp.ne.s32.totalorder %s137, %s138
      %p152 = scmp.eq.s32.totalorder %s20, 1
      %p153 = por %p151, %p152
      %p155 = scmp.ne.s32.totalorder %s138, %s154
      %p156 = scmp.eq.s32.totalorder %s20, 0
      %p157 = por %p155, %p156
      %p158 = scmp.le.s32.totalorder 1, %s14
      %p159 = scmp.lt.s32.totalorder %s14, 3
      %p160 = pnand %p158, %p159
      %p161 = pneg %p160
      // Predicated region
      $region9: #{tpu_custom_call.1} parent=5 // pred_check
        _
      $region10: #{tpu_custom_call.1} parent=5 // pred_check_branch
        %163 = sbr.rel (%p160) target = $region12
      $region11: #{tpu_custom_call.1} parent=5 // pred_region
        %s164 = ssub.s32 %s14, 1
        // Predicated region
        $region13: #{tpu_custom_call.1} parent=11 // pred_check
          %p165 = pneg %p61
        $region14: #{tpu_custom_call.1} parent=11 // pred_check_branch
          %167 = sbr.rel (%p165) target = $region16
        $region15: #{tpu_custom_call.1} parent=11 // pred_region
          _
        $region16: #{tpu_custom_call.1} parent=11 // pred_fallthru
          _
        // Predicated region
        $region17: #{tpu_custom_call.1} parent=11 // pred_check
          %p168 = pneg %p82
        $region18: #{tpu_custom_call.1} parent=11 // pred_check_branch
          %170 = sbr.rel (%p168) target = $region20
        $region19: #{tpu_custom_call.1} parent=11 // pred_region
          _
        $region20: #{tpu_custom_call.1} parent=11 // pred_fallthru
          _
        // Predicated region
        $region21: #{tpu_custom_call.1} parent=11 // pred_check
          %p171 = pneg %p103
        $region22: #{tpu_custom_call.1} parent=11 // pred_check_branch
          %173 = sbr.rel (%p171) target = $region24
        $region23: #{tpu_custom_call.1} parent=11 // pred_region
          _
        $region24: #{tpu_custom_call.1} parent=11 // pred_fallthru
          _
        // Predicated region
        $region25: #{tpu_custom_call.1} parent=11 // pred_check
          %p174 = pneg %p124
        $region26: #{tpu_custom_call.1} parent=11 // pred_check_branch
          %176 = sbr.rel (%p174) target = $region28
        $region27: #{tpu_custom_call.1} parent=11 // pred_region
          _
        $region28: #{tpu_custom_call.1} parent=11 // pred_fallthru
          _
      $region12: #{tpu_custom_call.1} parent=5 // pred_fallthru
        _
      %p177 = scmp.lt.s32.totalorder %s14, 2
      // Predicated region
      $region29: #{tpu_custom_call.1} parent=5 // pred_check
        %p178 = pneg %p177
      $region30: #{tpu_custom_call.1} parent=5 // pred_check_branch
        %180 = sbr.rel (%p178) target = $region32
      $region31: #{tpu_custom_call.1} parent=5 // pred_region
        // Predicated region
        $region33: #{tpu_custom_call.1} parent=31 // pred_check
          %p181 = pneg %p34
        $region34: #{tpu_custom_call.1} parent=31 // pred_check_branch
          %183 = sbr.rel (%p181) target = $region36
        $region35: #{tpu_custom_call.1} parent=31 // pred_region
          %s184 = smul.u32 32, %s14
          %p185 = scmp.lt.s32.totalorder %s184, 63
          %s186 = scalar_select %p185, %s184, 63
          %s187 = smul.addr %s186, 2
          %s188 = smul.addr %s187, 4
          %s189 = scalar_lea.vmem %s0, %s188
          %s190 = smul.u32 32, %s14
        $region36: #{tpu_custom_call.1} parent=31 // pred_fallthru
          _
      $region32: #{tpu_custom_call.1} parent=5 // pred_fallthru
        _
      %p191 = scmp.le.s32.totalorder 1, %s14
      %p192 = scmp.lt.s32.totalorder %s14, 3
      %p193 = pnand %p191, %p192
      %p194 = pneg %p193
      // Predicated region
      $region37: #{tpu_custom_call.1} parent=5 // pred_check
        _
      $region38: #{tpu_custom_call.1} parent=5 // pred_check_branch
        %196 = sbr.rel (%p193) target = $region40
      $region39: #{tpu_custom_call.1} parent=5 // pred_region
        %s197 = ssub.s32 %s14, 1
        %s198 = smul.u32 32, %s19
        %p199 = scmp.lt.s32.totalorder %s198, 63
        %s200 = scalar_select %p199, %s198, 63
        %s201 = smul.addr %s200, 2
        %s202 = smul.addr %s201, 4
        %s203 = scalar_lea.vmem %s0, %s202
        %p204 = pneg %p40
        %p205 = pneg %p37
        %p206 = pneg %p61
        %p207 = pneg %p58
        %p208 = pneg %p82
        %p209 = pneg %p79
        %p210 = pneg %p103
        %p211 = pneg %p100
        %p212 = pneg %p124
        %p213 = pneg %p121
        %p214 = pneg %p150
        %p215 = pneg %p147
        %s216 = sand.u32 %s137, 1
        %s217 = scalar_lea.sflag [#allocation3], %s216
        %s218 = sand.u32 %s137, 1
        %s219 = smul.addr %s218, 32
        %s220 = scalar_lea.vmem [#allocation2], %s219
        %s221 = smul.u32 32, %s19
        %p222 = scmp.lt.s32.totalorder %s221, 63
        %s223 = scalar_select %p222, %s221, 63
        %s224 = smul.addr %s223, 2
        %s225 = smul.addr %s224, 4
        %s226 = scalar_lea.vmem %s0, %s225
        %s227 = smul.u32 32, %s19
        %s228 = smul.u32 4, %s19
        %v230 = vld [vmem:[%s226] sm:$0xf]
        %v231 = vld [vmem:[%s226 + $0x4] sm:$0xf]
        %v232 = vld [vmem:[%s226 + $0x8] sm:$0xf]
        %v233 = vld [vmem:[%s226 + $0xc] sm:$0xf]
        %v234 = vld [vmem:[%s226 + $0x10] sm:$0xf]
        %v235 = vld [vmem:[%s226 + $0x14] sm:$0xf]
        %v236 = vld [vmem:[%s226 + $0x18] sm:$0xf]
        %v237 = vld [vmem:[%s226 + $0x1c] sm:$0xf]
        %v238 = vld [vmem:[%s226 + $0x20] sm:$0xf]
        %v239 = vld [vmem:[%s226 + $0x24] sm:$0xf]
        %v240 = vld [vmem:[%s226 + $0x28] sm:$0xf]
        %v241 = vld [vmem:[%s226 + $0x2c] sm:$0xf]
        %v242 = vld [vmem:[%s226 + $0x30] sm:$0xf]
        %v243 = vld [vmem:[%s226 + $0x34] sm:$0xf]
        %v244 = vld [vmem:[%s226 + $0x38] sm:$0xf]
        %v245 = vld [vmem:[%s226 + $0x3c] sm:$0xf]
        %v246 = vld [vmem:[%s226 + $0x40] sm:$0xf]
        %v247 = vld [vmem:[%s226 + $0x44] sm:$0xf]
        %v248 = vld [vmem:[%s226 + $0x48] sm:$0xf]
        %v249 = vld [vmem:[%s226 + $0x4c] sm:$0xf]
        %v250 = vld [vmem:[%s226 + $0x50] sm:$0xf]
        %v251 = vld [vmem:[%s226 + $0x54] sm:$0xf]
        %v252 = vld [vmem:[%s226 + $0x58] sm:$0xf]
        %v253 = vld [vmem:[%s226 + $0x5c] sm:$0xf]
        %v254 = vld [vmem:[%s226 + $0x60] sm:$0xf]
        %v255 = vld [vmem:[%s226 + $0x64] sm:$0xf]
        %v256 = vld [vmem:[%s226 + $0x68] sm:$0xf]
        %v257 = vld [vmem:[%s226 + $0x6c] sm:$0xf]
        %v258 = vld [vmem:[%s226 + $0x70] sm:$0xf]
        %v259 = vld [vmem:[%s226 + $0x74] sm:$0xf]
        %v260 = vld [vmem:[%s226 + $0x78] sm:$0xf]
        %v261 = vld [vmem:[%s226 + $0x7c] sm:$0xf]
        %v262 = vld [vmem:[%s226 + $0x80] sm:$0xf]
        %v263 = vld [vmem:[%s226 + $0x84] sm:$0xf]
        %v264 = vld [vmem:[%s226 + $0x88] sm:$0xf]
        %v265 = vld [vmem:[%s226 + $0x8c] sm:$0xf]
        %v266 = vld [vmem:[%s226 + $0x90] sm:$0xf]
        %v267 = vld [vmem:[%s226 + $0x94] sm:$0xf]
        %v268 = vld [vmem:[%s226 + $0x98] sm:$0xf]
        %v269 = vld [vmem:[%s226 + $0x9c] sm:$0xf]
        %v270 = vld [vmem:[%s226 + $0xa0] sm:$0xf]
        %v271 = vld [vmem:[%s226 + $0xa4] sm:$0xf]
        %v272 = vld [vmem:[%s226 + $0xa8] sm:$0xf]
        %v273 = vld [vmem:[%s226 + $0xac] sm:$0xf]
        %v274 = vld [vmem:[%s226 + $0xb0] sm:$0xf]
        %v275 = vld [vmem:[%s226 + $0xb4] sm:$0xf]
        %v276 = vld [vmem:[%s226 + $0xb8] sm:$0xf]
        %v277 = vld [vmem:[%s226 + $0xbc] sm:$0xf]
        %v278 = vld [vmem:[%s226 + $0xc0] sm:$0xf]
        %v279 = vld [vmem:[%s226 + $0xc4] sm:$0xf]
        %v280 = vld [vmem:[%s226 + $0xc8] sm:$0xf]
        %v281 = vld [vmem:[%s226 + $0xcc] sm:$0xf]
        %v282 = vld [vmem:[%s226 + $0xd0] sm:$0xf]
        %v283 = vld [vmem:[%s226 + $0xd4] sm:$0xf]
        %v284 = vld [vmem:[%s226 + $0xd8] sm:$0xf]
        %v285 = vld [vmem:[%s226 + $0xdc] sm:$0xf]
        %v286 = vld [vmem:[%s226 + $0xe0] sm:$0xf]
        %v287 = vld [vmem:[%s226 + $0xe4] sm:$0xf]
        %v288 = vld [vmem:[%s226 + $0xe8] sm:$0xf]
        %v289 = vld [vmem:[%s226 + $0xec] sm:$0xf]
        %v290 = vld [vmem:[%s226 + $0xf0] sm:$0xf]
        %v291 = vld [vmem:[%s226 + $0xf4] sm:$0xf]
        %v292 = vld [vmem:[%s226 + $0xf8] sm:$0xf]
        %v293 = vld [vmem:[%s226 + $0xfc] sm:$0xf]
        %v358 = vunpack.c.l.b16 %v230
        %v359 = vunpack.c.l.b16 %v231
        %v360 = vunpack.c.l.b16 %v232
        %v361 = vunpack.c.l.b16 %v233
        %v362 = vunpack.c.l.b16 %v234
        %v363 = vunpack.c.l.b16 %v235
        %v364 = vunpack.c.l.b16 %v236
        %v365 = vunpack.c.l.b16 %v237
        %v366 = vunpack.c.l.b16 %v238
        %v367 = vunpack.c.l.b16 %v239
        %v368 = vunpack.c.l.b16 %v240
        %v369 = vunpack.c.l.b16 %v241
        %v370 = vunpack.c.l.b16 %v242
        %v371 = vunpack.c.l.b16 %v243
        %v372 = vunpack.c.l.b16 %v244
        %v373 = vunpack.c.l.b16 %v245
        %v374 = vunpack.c.l.b16 %v246
        %v375 = vunpack.c.l.b16 %v247
        %v376 = vunpack.c.l.b16 %v248
        %v377 = vunpack.c.l.b16 %v249
        %v378 = vunpack.c.l.b16 %v250
        %v379 = vunpack.c.l.b16 %v251
        %v380 = vunpack.c.l.b16 %v252
        %v381 = vunpack.c.l.b16 %v253
        %v382 = vunpack.c.l.b16 %v254
        %v383 = vunpack.c.l.b16 %v255
        %v384 = vunpack.c.l.b16 %v256
        %v385 = vunpack.c.l.b16 %v257
        %v386 = vunpack.c.l.b16 %v258
        %v387 = vunpack.c.l.b16 %v259
        %v388 = vunpack.c.l.b16 %v260
        %v389 = vunpack.c.l.b16 %v261
        %v390 = vunpack.c.l.b16 %v262
        %v391 = vunpack.c.l.b16 %v263
        %v392 = vunpack.c.l.b16 %v264
        %v393 = vunpack.c.l.b16 %v265
        %v394 = vunpack.c.l.b16 %v266
        %v395 = vunpack.c.l.b16 %v267
        %v396 = vunpack.c.l.b16 %v268
        %v397 = vunpack.c.l.b16 %v269
        %v398 = vunpack.c.l.b16 %v270
        %v399 = vunpack.c.l.b16 %v271
        %v400 = vunpack.c.l.b16 %v272
        %v401 = vunpack.c.l.b16 %v273
        %v402 = vunpack.c.l.b16 %v274
        %v403 = vunpack.c.l.b16 %v275
        %v404 = vunpack.c.l.b16 %v276
        %v405 = vunpack.c.l.b16 %v277
        %v406 = vunpack.c.l.b16 %v278
        %v407 = vunpack.c.l.b16 %v279
        %v408 = vunpack.c.l.b16 %v280
        %v409 = vunpack.c.l.b16 %v281
        %v410 = vunpack.c.l.b16 %v282
        %v411 = vunpack.c.l.b16 %v283
        %v412 = vunpack.c.l.b16 %v284
        %v413 = vunpack.c.l.b16 %v285
        %v414 = vunpack.c.l.b16 %v286
        %v415 = vunpack.c.l.b16 %v287
        %v416 = vunpack.c.l.b16 %v288
        %v417 = vunpack.c.l.b16 %v289
        %v418 = vunpack.c.l.b16 %v290
        %v419 = vunpack.c.l.b16 %v291
        %v420 = vunpack.c.l.b16 %v292
        %v421 = vunpack.c.l.b16 %v293
        %v422 = vpack.c.b16 %v359, %v358
        %v423 = vpack.c.b16 %v361, %v360
        %v424 = vpack.c.b16 %v363, %v362
        %v425 = vpack.c.b16 %v365, %v364
        %v426 = vpack.c.b16 %v367, %v366
        %v427 = vpack.c.b16 %v369, %v368
        %v428 = vpack.c.b16 %v371, %v370
        %v429 = vpack.c.b16 %v373, %v372
        %v430 = vpack.c.b16 %v375, %v374
        %v431 = vpack.c.b16 %v377, %v376
        %v432 = vpack.c.b16 %v379, %v378
        %v433 = vpack.c.b16 %v381, %v380
        %v434 = vpack.c.b16 %v383, %v382
        %v435 = vpack.c.b16 %v385, %v384
        %v436 = vpack.c.b16 %v387, %v386
        %v437 = vpack.c.b16 %v389, %v388
        %v438 = vpack.c.b16 %v391, %v390
        %v439 = vpack.c.b16 %v393, %v392
        %v440 = vpack.c.b16 %v395, %v394
        %v441 = vpack.c.b16 %v397, %v396
        %v442 = vpack.c.b16 %v399, %v398
        %v443 = vpack.c.b16 %v401, %v400
        %v444 = vpack.c.b16 %v403, %v402
        %v445 = vpack.c.b16 %v405, %v404
        %v446 = vpack.c.b16 %v407, %v406
        %v447 = vpack.c.b16 %v409, %v408
        %v448 = vpack.c.b16 %v411, %v410
        %v449 = vpack.c.b16 %v413, %v412
        %v450 = vpack.c.b16 %v415, %v414
        %v451 = vpack.c.b16 %v417, %v416
        %v452 = vpack.c.b16 %v419, %v418
        %v453 = vpack.c.b16 %v421, %v420
        %v455 = vshrl.u32 %v422, 16
        %v457 = vshll.u32 %v422, 16
        %v459 = vrot.slane %v457, 1
        %v460 = vor.u32 %v455, %v459
        %v462 = vshrl.u32 %v423, 16
        %v464 = vshll.u32 %v423, 16
        %v466 = vrot.slane %v464, 1
        %v467 = vor.u32 %v462, %v466
        %v469 = vshrl.u32 %v424, 16
        %v471 = vshll.u32 %v424, 16
        %v473 = vrot.slane %v471, 1
        %v474 = vor.u32 %v469, %v473
        %v476 = vshrl.u32 %v425, 16
        %v478 = vshll.u32 %v425, 16
        %v480 = vrot.slane %v478, 1
        %v481 = vor.u32 %v476, %v480
        %v483 = vshrl.u32 %v426, 16
        %v485 = vshll.u32 %v426, 16
        %v487 = vrot.slane %v485, 1
        %v488 = vor.u32 %v483, %v487
        %v490 = vshrl.u32 %v427, 16
        %v492 = vshll.u32 %v427, 16
        %v494 = vrot.slane %v492, 1
        %v495 = vor.u32 %v490, %v494
        %v497 = vshrl.u32 %v428, 16
        %v499 = vshll.u32 %v428, 16
        %v501 = vrot.slane %v499, 1
        %v502 = vor.u32 %v497, %v501
        %v504 = vshrl.u32 %v429, 16
        %v506 = vshll.u32 %v429, 16
        %v508 = vrot.slane %v506, 1
        %v509 = vor.u32 %v504, %v508
        %v511 = vshrl.u32 %v430, 16
        %v513 = vshll.u32 %v430, 16
        %v515 = vrot.slane %v513, 1
        %v516 = vor.u32 %v511, %v515
        %v518 = vshrl.u32 %v431, 16
        %v520 = vshll.u32 %v431, 16
        %v522 = vrot.slane %v520, 1
        %v523 = vor.u32 %v518, %v522
        %v525 = vshrl.u32 %v432, 16
        %v527 = vshll.u32 %v432, 16
        %v529 = vrot.slane %v527, 1
        %v530 = vor.u32 %v525, %v529
        %v532 = vshrl.u32 %v433, 16
        %v534 = vshll.u32 %v433, 16
        %v536 = vrot.slane %v534, 1
        %v537 = vor.u32 %v532, %v536
        %v539 = vshrl.u32 %v434, 16
        %v541 = vshll.u32 %v434, 16
        %v543 = vrot.slane %v541, 1
        %v544 = vor.u32 %v539, %v543
        %v546 = vshrl.u32 %v435, 16
        %v548 = vshll.u32 %v435, 16
        %v550 = vrot.slane %v548, 1
        %v551 = vor.u32 %v546, %v550
        %v553 = vshrl.u32 %v436, 16
        %v555 = vshll.u32 %v436, 16
        %v557 = vrot.slane %v555, 1
        %v558 = vor.u32 %v553, %v557
        %v560 = vshrl.u32 %v437, 16
        %v562 = vshll.u32 %v437, 16
        %v564 = vrot.slane %v562, 1
        %v565 = vor.u32 %v560, %v564
        %v567 = vshrl.u32 %v438, 16
        %v569 = vshll.u32 %v438, 16
        %v571 = vrot.slane %v569, 1
        %v572 = vor.u32 %v567, %v571
        %v574 = vshrl.u32 %v439, 16
        %v576 = vshll.u32 %v439, 16
        %v578 = vrot.slane %v576, 1
        %v579 = vor.u32 %v574, %v578
        %v581 = vshrl.u32 %v440, 16
        %v583 = vshll.u32 %v440, 16
        %v585 = vrot.slane %v583, 1
        %v586 = vor.u32 %v581, %v585
        %v588 = vshrl.u32 %v441, 16
        %v590 = vshll.u32 %v441, 16
        %v592 = vrot.slane %v590, 1
        %v593 = vor.u32 %v588, %v592
        %v595 = vshrl.u32 %v442, 16
        %v597 = vshll.u32 %v442, 16
        %v599 = vrot.slane %v597, 1
        %v600 = vor.u32 %v595, %v599
        %v602 = vshrl.u32 %v443, 16
        %v604 = vshll.u32 %v443, 16
        %v606 = vrot.slane %v604, 1
        %v607 = vor.u32 %v602, %v606
        %v609 = vshrl.u32 %v444, 16
        %v611 = vshll.u32 %v444, 16
        %v613 = vrot.slane %v611, 1
        %v614 = vor.u32 %v609, %v613
        %v616 = vshrl.u32 %v445, 16
        %v618 = vshll.u32 %v445, 16
        %v620 = vrot.slane %v618, 1
        %v621 = vor.u32 %v616, %v620
        %v623 = vshrl.u32 %v446, 16
        %v625 = vshll.u32 %v446, 16
        %v627 = vrot.slane %v625, 1
        %v628 = vor.u32 %v623, %v627
        %v630 = vshrl.u32 %v447, 16
        %v632 = vshll.u32 %v447, 16
        %v634 = vrot.slane %v632, 1
        %v635 = vor.u32 %v630, %v634
        %v637 = vshrl.u32 %v448, 16
        %v639 = vshll.u32 %v448, 16
        %v641 = vrot.slane %v639, 1
        %v642 = vor.u32 %v637, %v641
        %v644 = vshrl.u32 %v449, 16
        %v646 = vshll.u32 %v449, 16
        %v648 = vrot.slane %v646, 1
        %v649 = vor.u32 %v644, %v648
        %v651 = vshrl.u32 %v450, 16
        %v653 = vshll.u32 %v450, 16
        %v655 = vrot.slane %v653, 1
        %v656 = vor.u32 %v651, %v655
        %v658 = vshrl.u32 %v451, 16
        %v660 = vshll.u32 %v451, 16
        %v662 = vrot.slane %v660, 1
        %v663 = vor.u32 %v658, %v662
        %v665 = vshrl.u32 %v452, 16
        %v667 = vshll.u32 %v452, 16
        %v669 = vrot.slane %v667, 1
        %v670 = vor.u32 %v665, %v669
        %v672 = vshrl.u32 %v453, 16
        %v674 = vshll.u32 %v453, 16
        %v676 = vrot.slane %v674, 1
        %v677 = vor.u32 %v672, %v676
        %678 = vrot.lane.b32.xlu0 %v460, 23
        %v679 = vpop.permute.xlu0 %678
        %680 = vrot.lane.b32.xlu0 %v467, 23
        %v681 = vpop.permute.xlu0 %680
        %682 = vrot.lane.b32.xlu0 %v474, 23
        %v683 = vpop.permute.xlu0 %682
        %684 = vrot.lane.b32.xlu0 %v481, 23
        %v685 = vpop.permute.xlu0 %684
        %686 = vrot.lane.b32.xlu0 %v488, 23
        %v687 = vpop.permute.xlu0 %686
        %688 = vrot.lane.b32.xlu0 %v495, 23
        %v689 = vpop.permute.xlu0 %688
        %690 = vrot.lane.b32.xlu0 %v502, 23
        %v691 = vpop.permute.xlu0 %690
        %692 = vrot.lane.b32.xlu0 %v509, 23
        %v693 = vpop.permute.xlu0 %692
        %694 = vrot.lane.b32.xlu0 %v516, 23
        %v695 = vpop.permute.xlu0 %694
        %696 = vrot.lane.b32.xlu0 %v523, 23
        %v697 = vpop.permute.xlu0 %696
        %698 = vrot.lane.b32.xlu0 %v530, 23
        %v699 = vpop.permute.xlu0 %698
        %700 = vrot.lane.b32.xlu0 %v537, 23
        %v701 = vpop.permute.xlu0 %700
        %702 = vrot.lane.b32.xlu0 %v544, 23
        %v703 = vpop.permute.xlu0 %702
        %704 = vrot.lane.b32.xlu0 %v551, 23
        %v705 = vpop.permute.xlu0 %704
        %706 = vrot.lane.b32.xlu0 %v558, 23
        %v707 = vpop.permute.xlu0 %706
        %708 = vrot.lane.b32.xlu0 %v565, 23
        %v709 = vpop.permute.xlu0 %708
        %710 = vrot.lane.b32.xlu0 %v572, 23
        %v711 = vpop.permute.xlu0 %710
        %712 = vrot.lane.b32.xlu0 %v579, 23
        %v713 = vpop.permute.xlu0 %712
        %714 = vrot.lane.b32.xlu0 %v586, 23
        %v715 = vpop.permute.xlu0 %714
        %716 = vrot.lane.b32.xlu0 %v593, 23
        %v717 = vpop.permute.xlu0 %716
        %718 = vrot.lane.b32.xlu0 %v600, 23
        %v719 = vpop.permute.xlu0 %718
        %720 = vrot.lane.b32.xlu0 %v607, 23
        %v721 = vpop.permute.xlu0 %720
        %722 = vrot.lane.b32.xlu0 %v614, 23
        %v723 = vpop.permute.xlu0 %722
        %724 = vrot.lane.b32.xlu0 %v621, 23
        %v725 = vpop.permute.xlu0 %724
        %726 = vrot.lane.b32.xlu0 %v628, 23
        %v727 = vpop.permute.xlu0 %726
        %728 = vrot.lane.b32.xlu0 %v635, 23
        %v729 = vpop.permute.xlu0 %728
        %730 = vrot.lane.b32.xlu0 %v642, 23
        %v731 = vpop.permute.xlu0 %730
        %732 = vrot.lane.b32.xlu0 %v649, 23
        %v733 = vpop.permute.xlu0 %732
        %734 = vrot.lane.b32.xlu0 %v656, 23
        %v735 = vpop.permute.xlu0 %734
        %736 = vrot.lane.b32.xlu0 %v663, 23
        %v737 = vpop.permute.xlu0 %736
        %738 = vrot.lane.b32.xlu0 %v670, 23
        %v739 = vpop.permute.xlu0 %738
        %740 = vrot.lane.b32.xlu0 %v677, 23
        %v741 = vpop.permute.xlu0 %740
        %v742 = vrot.slane %v422, 1
        %v743 = vrot.slane %v423, 1
        %v744 = vrot.slane %v424, 1
        %v745 = vrot.slane %v425, 1
        %v746 = vrot.slane %v426, 1
        %v747 = vrot.slane %v427, 1
        %v748 = vrot.slane %v428, 1
        %v749 = vrot.slane %v429, 1
        %v750 = vrot.slane %v430, 1
        %v751 = vrot.slane %v431, 1
        %v752 = vrot.slane %v432, 1
        %v753 = vrot.slane %v433, 1
        %v754 = vrot.slane %v434, 1
        %v755 = vrot.slane %v435, 1
        %v756 = vrot.slane %v436, 1
        %v757 = vrot.slane %v437, 1
        %v758 = vrot.slane %v438, 1
        %v759 = vrot.slane %v439, 1
        %v760 = vrot.slane %v440, 1
        %v761 = vrot.slane %v441, 1
        %v762 = vrot.slane %v442, 1
        %v763 = vrot.slane %v443, 1
        %v764 = vrot.slane %v444, 1
        %v765 = vrot.slane %v445, 1
        %v766 = vrot.slane %v446, 1
        %v767 = vrot.slane %v447, 1
        %v768 = vrot.slane %v448, 1
        %v769 = vrot.slane %v449, 1
        %v770 = vrot.slane %v450, 1
        %v771 = vrot.slane %v451, 1
        %v772 = vrot.slane %v452, 1
        %v773 = vrot.slane %v453, 1
        %774 = vrot.lane.b32.xlu0 %v742, 46
        %v775 = vpop.permute.xlu0 %774
        %776 = vrot.lane.b32.xlu0 %v743, 46
        %v777 = vpop.permute.xlu0 %776
        %778 = vrot.lane.b32.xlu0 %v744, 46
        %v779 = vpop.permute.xlu0 %778
        %780 = vrot.lane.b32.xlu0 %v745, 46
        %v781 = vpop.permute.xlu0 %780
        %782 = vrot.lane.b32.xlu0 %v746, 46
        %v783 = vpop.permute.xlu0 %782
        %784 = vrot.lane.b32.xlu0 %v747, 46
        %v785 = vpop.permute.xlu0 %784
        %786 = vrot.lane.b32.xlu0 %v748, 46
        %v787 = vpop.permute.xlu0 %786
        %788 = vrot.lane.b32.xlu0 %v749, 46
        %v789 = vpop.permute.xlu0 %788
        %790 = vrot.lane.b32.xlu0 %v750, 46
        %v791 = vpop.permute.xlu0 %790
        %792 = vrot.lane.b32.xlu0 %v751, 46
        %v793 = vpop.permute.xlu0 %792
        %794 = vrot.lane.b32.xlu0 %v752, 46
        %v795 = vpop.permute.xlu0 %794
        %796 = vrot.lane.b32.xlu0 %v753, 46
        %v797 = vpop.permute.xlu0 %796
        %798 = vrot.lane.b32.xlu0 %v754, 46
        %v799 = vpop.permute.xlu0 %798
        %800 = vrot.lane.b32.xlu0 %v755, 46
        %v801 = vpop.permute.xlu0 %800
        %802 = vrot.lane.b32.xlu0 %v756, 46
        %v803 = vpop.permute.xlu0 %802
        %804 = vrot.lane.b32.xlu0 %v757, 46
        %v805 = vpop.permute.xlu0 %804
        %806 = vrot.lane.b32.xlu0 %v758, 46
        %v807 = vpop.permute.xlu0 %806
        %808 = vrot.lane.b32.xlu0 %v759, 46
        %v809 = vpop.permute.xlu0 %808
        %810 = vrot.lane.b32.xlu0 %v760, 46
        %v811 = vpop.permute.xlu0 %810
        %812 = vrot.lane.b32.xlu0 %v761, 46
        %v813 = vpop.permute.xlu0 %812
        %814 = vrot.lane.b32.xlu0 %v762, 46
        %v815 = vpop.permute.xlu0 %814
        %816 = vrot.lane.b32.xlu0 %v763, 46
        %v817 = vpop.permute.xlu0 %816
        %818 = vrot.lane.b32.xlu0 %v764, 46
        %v819 = vpop.permute.xlu0 %818
        %820 = vrot.lane.b32.xlu0 %v765, 46
        %v821 = vpop.permute.xlu0 %820
        %822 = vrot.lane.b32.xlu0 %v766, 46
        %v823 = vpop.permute.xlu0 %822
        %824 = vrot.lane.b32.xlu0 %v767, 46
        %v825 = vpop.permute.xlu0 %824
        %826 = vrot.lane.b32.xlu0 %v768, 46
        %v827 = vpop.permute.xlu0 %826
        %828 = vrot.lane.b32.xlu0 %v769, 46
        %v829 = vpop.permute.xlu0 %828
        %830 = vrot.lane.b32.xlu0 %v770, 46
        %v831 = vpop.permute.xlu0 %830
        %832 = vrot.lane.b32.xlu0 %v771, 46
        %v833 = vpop.permute.xlu0 %832
        %834 = vrot.lane.b32.xlu0 %v772, 46
        %v835 = vpop.permute.xlu0 %834
        %836 = vrot.lane.b32.xlu0 %v773, 46
        %v837 = vpop.permute.xlu0 %836
        %v838 = vrot.slane %v455, 1
        %v839 = vrot.slane %v457, 2
        %v840 = vor.u32 %v838, %v839
        %v841 = vrot.slane %v462, 1
        %v842 = vrot.slane %v464, 2
        %v843 = vor.u32 %v841, %v842
        %v844 = vrot.slane %v469, 1
        %v845 = vrot.slane %v471, 2
        %v846 = vor.u32 %v844, %v845
        %v847 = vrot.slane %v476, 1
        %v848 = vrot.slane %v478, 2
        %v849 = vor.u32 %v847, %v848
        %v850 = vrot.slane %v483, 1
        %v851 = vrot.slane %v485, 2
        %v852 = vor.u32 %v850, %v851
        %v853 = vrot.slane %v490, 1
        %v854 = vrot.slane %v492, 2
        %v855 = vor.u32 %v853, %v854
        %v856 = vrot.slane %v497, 1
        %v857 = vrot.slane %v499, 2
        %v858 = vor.u32 %v856, %v857
        %v859 = vrot.slane %v504, 1
        %v860 = vrot.slane %v506, 2
        %v861 = vor.u32 %v859, %v860
        %v862 = vrot.slane %v511, 1
        %v863 = vrot.slane %v513, 2
        %v864 = vor.u32 %v862, %v863
        %v865 = vrot.slane %v518, 1
        %v866 = vrot.slane %v520, 2
        %v867 = vor.u32 %v865, %v866
        %v868 = vrot.slane %v525, 1
        %v869 = vrot.slane %v527, 2
        %v870 = vor.u32 %v868, %v869
        %v871 = vrot.slane %v532, 1
        %v872 = vrot.slane %v534, 2
        %v873 = vor.u32 %v871, %v872
        %v874 = vrot.slane %v539, 1
        %v875 = vrot.slane %v541, 2
        %v876 = vor.u32 %v874, %v875
        %v877 = vrot.slane %v546, 1
        %v878 = vrot.slane %v548, 2
        %v879 = vor.u32 %v877, %v878
        %v880 = vrot.slane %v553, 1
        %v881 = vrot.slane %v555, 2
        %v882 = vor.u32 %v880, %v881
        %v883 = vrot.slane %v560, 1
        %v884 = vrot.slane %v562, 2
        %v885 = vor.u32 %v883, %v884
        %v886 = vrot.slane %v567, 1
        %v887 = vrot.slane %v569, 2
        %v888 = vor.u32 %v886, %v887
        %v889 = vrot.slane %v574, 1
        %v890 = vrot.slane %v576, 2
        %v891 = vor.u32 %v889, %v890
        %v892 = vrot.slane %v581, 1
        %v893 = vrot.slane %v583, 2
        %v894 = vor.u32 %v892, %v893
        %v895 = vrot.slane %v588, 1
        %v896 = vrot.slane %v590, 2
        %v897 = vor.u32 %v895, %v896
        %v898 = vrot.slane %v595, 1
        %v899 = vrot.slane %v597, 2
        %v900 = vor.u32 %v898, %v899
        %v901 = vrot.slane %v602, 1
        %v902 = vrot.slane %v604, 2
        %v903 = vor.u32 %v901, %v902
        %v904 = vrot.slane %v609, 1
        %v905 = vrot.slane %v611, 2
        %v906 = vor.u32 %v904, %v905
        %v907 = vrot.slane %v616, 1
        %v908 = vrot.slane %v618, 2
        %v909 = vor.u32 %v907, %v908
        %v910 = vrot.slane %v623, 1
        %v911 = vrot.slane %v625, 2
        %v912 = vor.u32 %v910, %v911
        %v913 = vrot.slane %v630, 1
        %v914 = vrot.slane %v632, 2
        %v915 = vor.u32 %v913, %v914
        %v916 = vrot.slane %v637, 1
        %v917 = vrot.slane %v639, 2
        %v918 = vor.u32 %v916, %v917
        %v919 = vrot.slane %v644, 1
        %v920 = vrot.slane %v646, 2
        %v921 = vor.u32 %v919, %v920
        %v922 = vrot.slane %v651, 1
        %v923 = vrot.slane %v653, 2
        %v924 = vor.u32 %v922, %v923
        %v925 = vrot.slane %v658, 1
        %v926 = vrot.slane %v660, 2
        %v927 = vor.u32 %v925, %v926
        %v928 = vrot.slane %v665, 1
        %v929 = vrot.slane %v667, 2
        %v930 = vor.u32 %v928, %v929
        %v931 = vrot.slane %v672, 1
        %v932 = vrot.slane %v674, 2
        %v933 = vor.u32 %v931, %v932
        %934 = vrot.lane.b32.xlu0 %v840, 69
        %v935 = vpop.permute.xlu0 %934
        %936 = vrot.lane.b32.xlu0 %v843, 69
        %v937 = vpop.permute.xlu0 %936
        %938 = vrot.lane.b32.xlu0 %v846, 69
        %v939 = vpop.permute.xlu0 %938
        %940 = vrot.lane.b32.xlu0 %v849, 69
        %v941 = vpop.permute.xlu0 %940
        %942 = vrot.lane.b32.xlu0 %v852, 69
        %v943 = vpop.permute.xlu0 %942
        %944 = vrot.lane.b32.xlu0 %v855, 69
        %v945 = vpop.permute.xlu0 %944
        %946 = vrot.lane.b32.xlu0 %v858, 69
        %v947 = vpop.permute.xlu0 %946
        %948 = vrot.lane.b32.xlu0 %v861, 69
        %v949 = vpop.permute.xlu0 %948
        %950 = vrot.lane.b32.xlu0 %v864, 69
        %v951 = vpop.permute.xlu0 %950
        %952 = vrot.lane.b32.xlu0 %v867, 69
        %v953 = vpop.permute.xlu0 %952
        %954 = vrot.lane.b32.xlu0 %v870, 69
        %v955 = vpop.permute.xlu0 %954
        %956 = vrot.lane.b32.xlu0 %v873, 69
        %v957 = vpop.permute.xlu0 %956
        %958 = vrot.lane.b32.xlu0 %v876, 69
        %v959 = vpop.permute.xlu0 %958
        %960 = vrot.lane.b32.xlu0 %v879, 69
        %v961 = vpop.permute.xlu0 %960
        %962 = vrot.lane.b32.xlu0 %v882, 69
        %v963 = vpop.permute.xlu0 %962
        %964 = vrot.lane.b32.xlu0 %v885, 69
        %v965 = vpop.permute.xlu0 %964
        %966 = vrot.lane.b32.xlu0 %v888, 69
        %v967 = vpop.permute.xlu0 %966
        %968 = vrot.lane.b32.xlu0 %v891, 69
        %v969 = vpop.permute.xlu0 %968
        %970 = vrot.lane.b32.xlu0 %v894, 69
        %v971 = vpop.permute.xlu0 %970
        %972 = vrot.lane.b32.xlu0 %v897, 69
        %v973 = vpop.permute.xlu0 %972
        %974 = vrot.lane.b32.xlu0 %v900, 69
        %v975 = vpop.permute.xlu0 %974
        %976 = vrot.lane.b32.xlu0 %v903, 69
        %v977 = vpop.permute.xlu0 %976
        %978 = vrot.lane.b32.xlu0 %v906, 69
        %v979 = vpop.permute.xlu0 %978
        %980 = vrot.lane.b32.xlu0 %v909, 69
        %v981 = vpop.permute.xlu0 %980
        %982 = vrot.lane.b32.xlu0 %v912, 69
        %v983 = vpop.permute.xlu0 %982
        %984 = vrot.lane.b32.xlu0 %v915, 69
        %v985 = vpop.permute.xlu0 %984
        %986 = vrot.lane.b32.xlu0 %v918, 69
        %v987 = vpop.permute.xlu0 %986
        %988 = vrot.lane.b32.xlu0 %v921, 69
        %v989 = vpop.permute.xlu0 %988
        %990 = vrot.lane.b32.xlu0 %v924, 69
        %v991 = vpop.permute.xlu0 %990
        %992 = vrot.lane.b32.xlu0 %v927, 69
        %v993 = vpop.permute.xlu0 %992
        %994 = vrot.lane.b32.xlu0 %v930, 69
        %v995 = vpop.permute.xlu0 %994
        %996 = vrot.lane.b32.xlu0 %v933, 69
        %v997 = vpop.permute.xlu0 %996
        %v998 = vrot.slane %v422, 2
        %v999 = vrot.slane %v423, 2
        %v1000 = vrot.slane %v424, 2
        %v1001 = vrot.slane %v425, 2
        %v1002 = vrot.slane %v426, 2
        %v1003 = vrot.slane %v427, 2
        %v1004 = vrot.slane %v428, 2
        %v1005 = vrot.slane %v429, 2
        %v1006 = vrot.slane %v430, 2
        %v1007 = vrot.slane %v431, 2
        %v1008 = vrot.slane %v432, 2
        %v1009 = vrot.slane %v433, 2
        %v1010 = vrot.slane %v434, 2
        %v1011 = vrot.slane %v435, 2
        %v1012 = vrot.slane %v436, 2
        %v1013 = vrot.slane %v437, 2
        %v1014 = vrot.slane %v438, 2
        %v1015 = vrot.slane %v439, 2
        %v1016 = vrot.slane %v440, 2
        %v1017 = vrot.slane %v441, 2
        %v1018 = vrot.slane %v442, 2
        %v1019 = vrot.slane %v443, 2
        %v1020 = vrot.slane %v444, 2
        %v1021 = vrot.slane %v445, 2
        %v1022 = vrot.slane %v446, 2
        %v1023 = vrot.slane %v447, 2
        %v1024 = vrot.slane %v448, 2
        %v1025 = vrot.slane %v449, 2
        %v1026 = vrot.slane %v450, 2
        %v1027 = vrot.slane %v451, 2
        %v1028 = vrot.slane %v452, 2
        %v1029 = vrot.slane %v453, 2
        %1030 = vrot.lane.b32.xlu0 %v998, 92
        %v1031 = vpop.permute.xlu0 %1030
        %1032 = vrot.lane.b32.xlu0 %v999, 92
        %v1033 = vpop.permute.xlu0 %1032
        %1034 = vrot.lane.b32.xlu0 %v1000, 92
        %v1035 = vpop.permute.xlu0 %1034
        %1036 = vrot.lane.b32.xlu0 %v1001, 92
        %v1037 = vpop.permute.xlu0 %1036
        %1038 = vrot.lane.b32.xlu0 %v1002, 92
        %v1039 = vpop.permute.xlu0 %1038
        %1040 = vrot.lane.b32.xlu0 %v1003, 92
        %v1041 = vpop.permute.xlu0 %1040
        %1042 = vrot.lane.b32.xlu0 %v1004, 92
        %v1043 = vpop.permute.xlu0 %1042
        %1044 = vrot.lane.b32.xlu0 %v1005, 92
        %v1045 = vpop.permute.xlu0 %1044
        %1046 = vrot.lane.b32.xlu0 %v1006, 92
        %v1047 = vpop.permute.xlu0 %1046
        %1048 = vrot.lane.b32.xlu0 %v1007, 92
        %v1049 = vpop.permute.xlu0 %1048
        %1050 = vrot.lane.b32.xlu0 %v1008, 92
        %v1051 = vpop.permute.xlu0 %1050
        %1052 = vrot.lane.b32.xlu0 %v1009, 92
        %v1053 = vpop.permute.xlu0 %1052
        %1054 = vrot.lane.b32.xlu0 %v1010, 92
        %v1055 = vpop.permute.xlu0 %1054
        %1056 = vrot.lane.b32.xlu0 %v1011, 92
        %v1057 = vpop.permute.xlu0 %1056
        %1058 = vrot.lane.b32.xlu0 %v1012, 92
        %v1059 = vpop.permute.xlu0 %1058
        %1060 = vrot.lane.b32.xlu0 %v1013, 92
        %v1061 = vpop.permute.xlu0 %1060
        %1062 = vrot.lane.b32.xlu0 %v1014, 92
        %v1063 = vpop.permute.xlu0 %1062
        %1064 = vrot.lane.b32.xlu0 %v1015, 92
        %v1065 = vpop.permute.xlu0 %1064
        %1066 = vrot.lane.b32.xlu0 %v1016, 92
        %v1067 = vpop.permute.xlu0 %1066
        %1068 = vrot.lane.b32.xlu0 %v1017, 92
        %v1069 = vpop.permute.xlu0 %1068
        %1070 = vrot.lane.b32.xlu0 %v1018, 92
        %v1071 = vpop.permute.xlu0 %1070
        %1072 = vrot.lane.b32.xlu0 %v1019, 92
        %v1073 = vpop.permute.xlu0 %1072
        %1074 = vrot.lane.b32.xlu0 %v1020, 92
        %v1075 = vpop.permute.xlu0 %1074
        %1076 = vrot.lane.b32.xlu0 %v1021, 92
        %v1077 = vpop.permute.xlu0 %1076
        %1078 = vrot.lane.b32.xlu0 %v1022, 92
        %v1079 = vpop.permute.xlu0 %1078
        %1080 = vrot.lane.b32.xlu0 %v1023, 92
        %v1081 = vpop.permute.xlu0 %1080
        %1082 = vrot.lane.b32.xlu0 %v1024, 92
        %v1083 = vpop.permute.xlu0 %1082
        %1084 = vrot.lane.b32.xlu0 %v1025, 92
        %v1085 = vpop.permute.xlu0 %1084
        %1086 = vrot.lane.b32.xlu0 %v1026, 92
        %v1087 = vpop.permute.xlu0 %1086
        %1088 = vrot.lane.b32.xlu0 %v1027, 92
        %v1089 = vpop.permute.xlu0 %1088
        %1090 = vrot.lane.b32.xlu0 %v1028, 92
        %v1091 = vpop.permute.xlu0 %1090
        %1092 = vrot.lane.b32.xlu0 %v1029, 92
        %v1093 = vpop.permute.xlu0 %1092
        %v1094 = vrot.slane %v455, 2
        %v1095 = vrot.slane %v457, 3
        %v1096 = vor.u32 %v1094, %v1095
        %v1097 = vrot.slane %v462, 2
        %v1098 = vrot.slane %v464, 3
        %v1099 = vor.u32 %v1097, %v1098
        %v1100 = vrot.slane %v469, 2
        %v1101 = vrot.slane %v471, 3
        %v1102 = vor.u32 %v1100, %v1101
        %v1103 = vrot.slane %v476, 2
        %v1104 = vrot.slane %v478, 3
        %v1105 = vor.u32 %v1103, %v1104
        %v1106 = vrot.slane %v483, 2
        %v1107 = vrot.slane %v485, 3
        %v1108 = vor.u32 %v1106, %v1107
        %v1109 = vrot.slane %v490, 2
        %v1110 = vrot.slane %v492, 3
        %v1111 = vor.u32 %v1109, %v1110
        %v1112 = vrot.slane %v497, 2
        %v1113 = vrot.slane %v499, 3
        %v1114 = vor.u32 %v1112, %v1113
        %v1115 = vrot.slane %v504, 2
        %v1116 = vrot.slane %v506, 3
        %v1117 = vor.u32 %v1115, %v1116
        %v1118 = vrot.slane %v511, 2
        %v1119 = vrot.slane %v513, 3
        %v1120 = vor.u32 %v1118, %v1119
        %v1121 = vrot.slane %v518, 2
        %v1122 = vrot.slane %v520, 3
        %v1123 = vor.u32 %v1121, %v1122
        %v1124 = vrot.slane %v525, 2
        %v1125 = vrot.slane %v527, 3
        %v1126 = vor.u32 %v1124, %v1125
        %v1127 = vrot.slane %v532, 2
        %v1128 = vrot.slane %v534, 3
        %v1129 = vor.u32 %v1127, %v1128
        %v1130 = vrot.slane %v539, 2
        %v1131 = vrot.slane %v541, 3
        %v1132 = vor.u32 %v1130, %v1131
        %v1133 = vrot.slane %v546, 2
        %v1134 = vrot.slane %v548, 3
        %v1135 = vor.u32 %v1133, %v1134
        %v1136 = vrot.slane %v553, 2
        %v1137 = vrot.slane %v555, 3
        %v1138 = vor.u32 %v1136, %v1137
        %v1139 = vrot.slane %v560, 2
        %v1140 = vrot.slane %v562, 3
        %v1141 = vor.u32 %v1139, %v1140
        %v1142 = vrot.slane %v567, 2
        %v1143 = vrot.slane %v569, 3
        %v1144 = vor.u32 %v1142, %v1143
        %v1145 = vrot.slane %v574, 2
        %v1146 = vrot.slane %v576, 3
        %v1147 = vor.u32 %v1145, %v1146
        %v1148 = vrot.slane %v581, 2
        %v1149 = vrot.slane %v583, 3
        %v1150 = vor.u32 %v1148, %v1149
        %v1151 = vrot.slane %v588, 2
        %v1152 = vrot.slane %v590, 3
        %v1153 = vor.u32 %v1151, %v1152
        %v1154 = vrot.slane %v595, 2
        %v1155 = vrot.slane %v597, 3
        %v1156 = vor.u32 %v1154, %v1155
        %v1157 = vrot.slane %v602, 2
        %v1158 = vrot.slane %v604, 3
        %v1159 = vor.u32 %v1157, %v1158
        %v1160 = vrot.slane %v609, 2
        %v1161 = vrot.slane %v611, 3
        %v1162 = vor.u32 %v1160, %v1161
        %v1163 = vrot.slane %v616, 2
        %v1164 = vrot.slane %v618, 3
        %v1165 = vor.u32 %v1163, %v1164
        %v1166 = vrot.slane %v623, 2
        %v1167 = vrot.slane %v625, 3
        %v1168 = vor.u32 %v1166, %v1167
        %v1169 = vrot.slane %v630, 2
        %v1170 = vrot.slane %v632, 3
        %v1171 = vor.u32 %v1169, %v1170
        %v1172 = vrot.slane %v637, 2
        %v1173 = vrot.slane %v639, 3
        %v1174 = vor.u32 %v1172, %v1173
        %v1175 = vrot.slane %v644, 2
        %v1176 = vrot.slane %v646, 3
        %v1177 = vor.u32 %v1175, %v1176
        %v1178 = vrot.slane %v651, 2
        %v1179 = vrot.slane %v653, 3
        %v1180 = vor.u32 %v1178, %v1179
        %v1181 = vrot.slane %v658, 2
        %v1182 = vrot.slane %v660, 3
        %v1183 = vor.u32 %v1181, %v1182
        %v1184 = vrot.slane %v665, 2
        %v1185 = vrot.slane %v667, 3
        %v1186 = vor.u32 %v1184, %v1185
        %v1187 = vrot.slane %v672, 2
        %v1188 = vrot.slane %v674, 3
        %v1189 = vor.u32 %v1187, %v1188
        %1190 = vrot.lane.b32.xlu0 %v1096, 115
        %v1191 = vpop.permute.xlu0 %1190
        %1192 = vrot.lane.b32.xlu0 %v1099, 115
        %v1193 = vpop.permute.xlu0 %1192
        %1194 = vrot.lane.b32.xlu0 %v1102, 115
        %v1195 = vpop.permute.xlu0 %1194
        %1196 = vrot.lane.b32.xlu0 %v1105, 115
        %v1197 = vpop.permute.xlu0 %1196
        %1198 = vrot.lane.b32.xlu0 %v1108, 115
        %v1199 = vpop.permute.xlu0 %1198
        %1200 = vrot.lane.b32.xlu0 %v1111, 115
        %v1201 = vpop.permute.xlu0 %1200
        %1202 = vrot.lane.b32.xlu0 %v1114, 115
        %v1203 = vpop.permute.xlu0 %1202
        %1204 = vrot.lane.b32.xlu0 %v1117, 115
        %v1205 = vpop.permute.xlu0 %1204
        %1206 = vrot.lane.b32.xlu0 %v1120, 115
        %v1207 = vpop.permute.xlu0 %1206
        %1208 = vrot.lane.b32.xlu0 %v1123, 115
        %v1209 = vpop.permute.xlu0 %1208
        %1210 = vrot.lane.b32.xlu0 %v1126, 115
        %v1211 = vpop.permute.xlu0 %1210
        %1212 = vrot.lane.b32.xlu0 %v1129, 115
        %v1213 = vpop.permute.xlu0 %1212
        %1214 = vrot.lane.b32.xlu0 %v1132, 115
        %v1215 = vpop.permute.xlu0 %1214
        %1216 = vrot.lane.b32.xlu0 %v1135, 115
        %v1217 = vpop.permute.xlu0 %1216
        %1218 = vrot.lane.b32.xlu0 %v1138, 115
        %v1219 = vpop.permute.xlu0 %1218
        %1220 = vrot.lane.b32.xlu0 %v1141, 115
        %v1221 = vpop.permute.xlu0 %1220
        %1222 = vrot.lane.b32.xlu0 %v1144, 115
        %v1223 = vpop.permute.xlu0 %1222
        %1224 = vrot.lane.b32.xlu0 %v1147, 115
        %v1225 = vpop.permute.xlu0 %1224
        %1226 = vrot.lane.b32.xlu0 %v1150, 115
        %v1227 = vpop.permute.xlu0 %1226
        %1228 = vrot.lane.b32.xlu0 %v1153, 115
        %v1229 = vpop.permute.xlu0 %1228
        %1230 = vrot.lane.b32.xlu0 %v1156, 115
        %v1231 = vpop.permute.xlu0 %1230
        %1232 = vrot.lane.b32.xlu0 %v1159, 115
        %v1233 = vpop.permute.xlu0 %1232
        %1234 = vrot.lane.b32.xlu0 %v1162, 115
        %v1235 = vpop.permute.xlu0 %1234
        %1236 = vrot.lane.b32.xlu0 %v1165, 115
        %v1237 = vpop.permute.xlu0 %1236
        %1238 = vrot.lane.b32.xlu0 %v1168, 115
        %v1239 = vpop.permute.xlu0 %1238
        %1240 = vrot.lane.b32.xlu0 %v1171, 115
        %v1241 = vpop.permute.xlu0 %1240
        %1242 = vrot.lane.b32.xlu0 %v1174, 115
        %v1243 = vpop.permute.xlu0 %1242
        %1244 = vrot.lane.b32.xlu0 %v1177, 115
        %v1245 = vpop.permute.xlu0 %1244
        %1246 = vrot.lane.b32.xlu0 %v1180, 115
        %v1247 = vpop.permute.xlu0 %1246
        %1248 = vrot.lane.b32.xlu0 %v1183, 115
        %v1249 = vpop.permute.xlu0 %1248
        %1250 = vrot.lane.b32.xlu0 %v1186, 115
        %v1251 = vpop.permute.xlu0 %1250
        %1252 = vrot.lane.b32.xlu0 %v1189, 115
        %v1253 = vpop.permute.xlu0 %1252
        %v1254 = vrot.slane %v422, 3
        %v1255 = vrot.slane %v423, 3
        %v1256 = vrot.slane %v424, 3
        %v1257 = vrot.slane %v425, 3
        %v1258 = vrot.slane %v426, 3
        %v1259 = vrot.slane %v427, 3
        %v1260 = vrot.slane %v428, 3
        %v1261 = vrot.slane %v429, 3
        %v1262 = vrot.slane %v430, 3
        %v1263 = vrot.slane %v431, 3
        %v1264 = vrot.slane %v432, 3
        %v1265 = vrot.slane %v433, 3
        %v1266 = vrot.slane %v434, 3
        %v1267 = vrot.slane %v435, 3
        %v1268 = vrot.slane %v436, 3
        %v1269 = vrot.slane %v437, 3
        %v1270 = vrot.slane %v438, 3
        %v1271 = vrot.slane %v439, 3
        %v1272 = vrot.slane %v440, 3
        %v1273 = vrot.slane %v441, 3
        %v1274 = vrot.slane %v442, 3
        %v1275 = vrot.slane %v443, 3
        %v1276 = vrot.slane %v444, 3
        %v1277 = vrot.slane %v445, 3
        %v1278 = vrot.slane %v446, 3
        %v1279 = vrot.slane %v447, 3
        %v1280 = vrot.slane %v448, 3
        %v1281 = vrot.slane %v449, 3
        %v1282 = vrot.slane %v450, 3
        %v1283 = vrot.slane %v451, 3
        %v1284 = vrot.slane %v452, 3
        %v1285 = vrot.slane %v453, 3
        %1286 = vrot.lane.b32.xlu0 %v1254, 10
        %v1287 = vpop.permute.xlu0 %1286
        %1288 = vrot.lane.b32.xlu0 %v1255, 10
        %v1289 = vpop.permute.xlu0 %1288
        %1290 = vrot.lane.b32.xlu0 %v1256, 10
        %v1291 = vpop.permute.xlu0 %1290
        %1292 = vrot.lane.b32.xlu0 %v1257, 10
        %v1293 = vpop.permute.xlu0 %1292
        %1294 = vrot.lane.b32.xlu0 %v1258, 10
        %v1295 = vpop.permute.xlu0 %1294
        %1296 = vrot.lane.b32.xlu0 %v1259, 10
        %v1297 = vpop.permute.xlu0 %1296
        %1298 = vrot.lane.b32.xlu0 %v1260, 10
        %v1299 = vpop.permute.xlu0 %1298
        %1300 = vrot.lane.b32.xlu0 %v1261, 10
        %v1301 = vpop.permute.xlu0 %1300
        %1302 = vrot.lane.b32.xlu0 %v1262, 10
        %v1303 = vpop.permute.xlu0 %1302
        %1304 = vrot.lane.b32.xlu0 %v1263, 10
        %v1305 = vpop.permute.xlu0 %1304
        %1306 = vrot.lane.b32.xlu0 %v1264, 10
        %v1307 = vpop.permute.xlu0 %1306
        %1308 = vrot.lane.b32.xlu0 %v1265, 10
        %v1309 = vpop.permute.xlu0 %1308
        %1310 = vrot.lane.b32.xlu0 %v1266, 10
        %v1311 = vpop.permute.xlu0 %1310
        %1312 = vrot.lane.b32.xlu0 %v1267, 10
        %v1313 = vpop.permute.xlu0 %1312
        %1314 = vrot.lane.b32.xlu0 %v1268, 10
        %v1315 = vpop.permute.xlu0 %1314
        %1316 = vrot.lane.b32.xlu0 %v1269, 10
        %v1317 = vpop.permute.xlu0 %1316
        %1318 = vrot.lane.b32.xlu0 %v1270, 10
        %v1319 = vpop.permute.xlu0 %1318
        %1320 = vrot.lane.b32.xlu0 %v1271, 10
        %v1321 = vpop.permute.xlu0 %1320
        %1322 = vrot.lane.b32.xlu0 %v1272, 10
        %v1323 = vpop.permute.xlu0 %1322
        %1324 = vrot.lane.b32.xlu0 %v1273, 10
        %v1325 = vpop.permute.xlu0 %1324
        %1326 = vrot.lane.b32.xlu0 %v1274, 10
        %v1327 = vpop.permute.xlu0 %1326
        %1328 = vrot.lane.b32.xlu0 %v1275, 10
        %v1329 = vpop.permute.xlu0 %1328
        %1330 = vrot.lane.b32.xlu0 %v1276, 10
        %v1331 = vpop.permute.xlu0 %1330
        %1332 = vrot.lane.b32.xlu0 %v1277, 10
        %v1333 = vpop.permute.xlu0 %1332
        %1334 = vrot.lane.b32.xlu0 %v1278, 10
        %v1335 = vpop.permute.xlu0 %1334
        %1336 = vrot.lane.b32.xlu0 %v1279, 10
        %v1337 = vpop.permute.xlu0 %1336
        %1338 = vrot.lane.b32.xlu0 %v1280, 10
        %v1339 = vpop.permute.xlu0 %1338
        %1340 = vrot.lane.b32.xlu0 %v1281, 10
        %v1341 = vpop.permute.xlu0 %1340
        %1342 = vrot.lane.b32.xlu0 %v1282, 10
        %v1343 = vpop.permute.xlu0 %1342
        %1344 = vrot.lane.b32.xlu0 %v1283, 10
        %v1345 = vpop.permute.xlu0 %1344
        %1346 = vrot.lane.b32.xlu0 %v1284, 10
        %v1347 = vpop.permute.xlu0 %1346
        %1348 = vrot.lane.b32.xlu0 %v1285, 10
        %v1349 = vpop.permute.xlu0 %1348
        %v1350 = vrot.slane %v455, 3
        %v1351 = vrot.slane %v457, 4
        %v1352 = vor.u32 %v1350, %v1351
        %v1353 = vrot.slane %v462, 3
        %v1354 = vrot.slane %v464, 4
        %v1355 = vor.u32 %v1353, %v1354
        %v1356 = vrot.slane %v469, 3
        %v1357 = vrot.slane %v471, 4
        %v1358 = vor.u32 %v1356, %v1357
        %v1359 = vrot.slane %v476, 3
        %v1360 = vrot.slane %v478, 4
        %v1361 = vor.u32 %v1359, %v1360
        %v1362 = vrot.slane %v483, 3
        %v1363 = vrot.slane %v485, 4
        %v1364 = vor.u32 %v1362, %v1363
        %v1365 = vrot.slane %v490, 3
        %v1366 = vrot.slane %v492, 4
        %v1367 = vor.u32 %v1365, %v1366
        %v1368 = vrot.slane %v497, 3
        %v1369 = vrot.slane %v499, 4
        %v1370 = vor.u32 %v1368, %v1369
        %v1371 = vrot.slane %v504, 3
        %v1372 = vrot.slane %v506, 4
        %v1373 = vor.u32 %v1371, %v1372
        %v1374 = vrot.slane %v511, 3
        %v1375 = vrot.slane %v513, 4
        %v1376 = vor.u32 %v1374, %v1375
        %v1377 = vrot.slane %v518, 3
        %v1378 = vrot.slane %v520, 4
        %v1379 = vor.u32 %v1377, %v1378
        %v1380 = vrot.slane %v525, 3
        %v1381 = vrot.slane %v527, 4
        %v1382 = vor.u32 %v1380, %v1381
        %v1383 = vrot.slane %v532, 3
        %v1384 = vrot.slane %v534, 4
        %v1385 = vor.u32 %v1383, %v1384
        %v1386 = vrot.slane %v539, 3
        %v1387 = vrot.slane %v541, 4
        %v1388 = vor.u32 %v1386, %v1387
        %v1389 = vrot.slane %v546, 3
        %v1390 = vrot.slane %v548, 4
        %v1391 = vor.u32 %v1389, %v1390
        %v1392 = vrot.slane %v553, 3
        %v1393 = vrot.slane %v555, 4
        %v1394 = vor.u32 %v1392, %v1393
        %v1395 = vrot.slane %v560, 3
        %v1396 = vrot.slane %v562, 4
        %v1397 = vor.u32 %v1395, %v1396
        %v1398 = vrot.slane %v567, 3
        %v1399 = vrot.slane %v569, 4
        %v1400 = vor.u32 %v1398, %v1399
        %v1401 = vrot.slane %v574, 3
        %v1402 = vrot.slane %v576, 4
        %v1403 = vor.u32 %v1401, %v1402
        %v1404 = vrot.slane %v581, 3
        %v1405 = vrot.slane %v583, 4
        %v1406 = vor.u32 %v1404, %v1405
        %v1407 = vrot.slane %v588, 3
        %v1408 = vrot.slane %v590, 4
        %v1409 = vor.u32 %v1407, %v1408
        %v1410 = vrot.slane %v595, 3
        %v1411 = vrot.slane %v597, 4
        %v1412 = vor.u32 %v1410, %v1411
        %v1413 = vrot.slane %v602, 3
        %v1414 = vrot.slane %v604, 4
        %v1415 = vor.u32 %v1413, %v1414
        %v1416 = vrot.slane %v609, 3
        %v1417 = vrot.slane %v611, 4
        %v1418 = vor.u32 %v1416, %v1417
        %v1419 = vrot.slane %v616, 3
        %v1420 = vrot.slane %v618, 4
        %v1421 = vor.u32 %v1419, %v1420
        %v1422 = vrot.slane %v623, 3
        %v1423 = vrot.slane %v625, 4
        %v1424 = vor.u32 %v1422, %v1423
        %v1425 = vrot.slane %v630, 3
        %v1426 = vrot.slane %v632, 4
        %v1427 = vor.u32 %v1425, %v1426
        %v1428 = vrot.slane %v637, 3
        %v1429 = vrot.slane %v639, 4
        %v1430 = vor.u32 %v1428, %v1429
        %v1431 = vrot.slane %v644, 3
        %v1432 = vrot.slane %v646, 4
        %v1433 = vor.u32 %v1431, %v1432
        %v1434 = vrot.slane %v651, 3
        %v1435 = vrot.slane %v653, 4
        %v1436 = vor.u32 %v1434, %v1435
        %v1437 = vrot.slane %v658, 3
        %v1438 = vrot.slane %v660, 4
        %v1439 = vor.u32 %v1437, %v1438
        %v1440 = vrot.slane %v665, 3
        %v1441 = vrot.slane %v667, 4
        %v1442 = vor.u32 %v1440, %v1441
        %v1443 = vrot.slane %v672, 3
        %v1444 = vrot.slane %v674, 4
        %v1445 = vor.u32 %v1443, %v1444
        %1446 = vrot.lane.b32.xlu0 %v1352, 33
        %v1447 = vpop.permute.xlu0 %1446
        %1448 = vrot.lane.b32.xlu0 %v1355, 33
        %v1449 = vpop.permute.xlu0 %1448
        %1450 = vrot.lane.b32.xlu0 %v1358, 33
        %v1451 = vpop.permute.xlu0 %1450
        %1452 = vrot.lane.b32.xlu0 %v1361, 33
        %v1453 = vpop.permute.xlu0 %1452
        %1454 = vrot.lane.b32.xlu0 %v1364, 33
        %v1455 = vpop.permute.xlu0 %1454
        %1456 = vrot.lane.b32.xlu0 %v1367, 33
        %v1457 = vpop.permute.xlu0 %1456
        %1458 = vrot.lane.b32.xlu0 %v1370, 33
        %v1459 = vpop.permute.xlu0 %1458
        %1460 = vrot.lane.b32.xlu0 %v1373, 33
        %v1461 = vpop.permute.xlu0 %1460
        %1462 = vrot.lane.b32.xlu0 %v1376, 33
        %v1463 = vpop.permute.xlu0 %1462
        %1464 = vrot.lane.b32.xlu0 %v1379, 33
        %v1465 = vpop.permute.xlu0 %1464
        %1466 = vrot.lane.b32.xlu0 %v1382, 33
        %v1467 = vpop.permute.xlu0 %1466
        %1468 = vrot.lane.b32.xlu0 %v1385, 33
        %v1469 = vpop.permute.xlu0 %1468
        %1470 = vrot.lane.b32.xlu0 %v1388, 33
        %v1471 = vpop.permute.xlu0 %1470
        %1472 = vrot.lane.b32.xlu0 %v1391, 33
        %v1473 = vpop.permute.xlu0 %1472
        %1474 = vrot.lane.b32.xlu0 %v1394, 33
        %v1475 = vpop.permute.xlu0 %1474
        %1476 = vrot.lane.b32.xlu0 %v1397, 33
        %v1477 = vpop.permute.xlu0 %1476
        %1478 = vrot.lane.b32.xlu0 %v1400, 33
        %v1479 = vpop.permute.xlu0 %1478
        %1480 = vrot.lane.b32.xlu0 %v1403, 33
        %v1481 = vpop.permute.xlu0 %1480
        %1482 = vrot.lane.b32.xlu0 %v1406, 33
        %v1483 = vpop.permute.xlu0 %1482
        %1484 = vrot.lane.b32.xlu0 %v1409, 33
        %v1485 = vpop.permute.xlu0 %1484
        %1486 = vrot.lane.b32.xlu0 %v1412, 33
        %v1487 = vpop.permute.xlu0 %1486
        %1488 = vrot.lane.b32.xlu0 %v1415, 33
        %v1489 = vpop.permute.xlu0 %1488
        %1490 = vrot.lane.b32.xlu0 %v1418, 33
        %v1491 = vpop.permute.xlu0 %1490
        %1492 = vrot.lane.b32.xlu0 %v1421, 33
        %v1493 = vpop.permute.xlu0 %1492
        %1494 = vrot.lane.b32.xlu0 %v1424, 33
        %v1495 = vpop.permute.xlu0 %1494
        %1496 = vrot.lane.b32.xlu0 %v1427, 33
        %v1497 = vpop.permute.xlu0 %1496
        %1498 = vrot.lane.b32.xlu0 %v1430, 33
        %v1499 = vpop.permute.xlu0 %1498
        %1500 = vrot.lane.b32.xlu0 %v1433, 33
        %v1501 = vpop.permute.xlu0 %1500
        %1502 = vrot.lane.b32.xlu0 %v1436, 33
        %v1503 = vpop.permute.xlu0 %1502
        %1504 = vrot.lane.b32.xlu0 %v1439, 33
        %v1505 = vpop.permute.xlu0 %1504
        %1506 = vrot.lane.b32.xlu0 %v1442, 33
        %v1507 = vpop.permute.xlu0 %1506
        %1508 = vrot.lane.b32.xlu0 %v1445, 33
        %v1509 = vpop.permute.xlu0 %1508
        %v1510 = vpack.c.b16 %v359, %v359
        %v1511 = vpack.c.b16 %v361, %v361
        %v1512 = vpack.c.b16 %v363, %v363
        %v1513 = vpack.c.b16 %v365, %v365
        %v1514 = vpack.c.b16 %v367, %v367
        %v1515 = vpack.c.b16 %v369, %v369
        %v1516 = vpack.c.b16 %v371, %v371
        %v1517 = vpack.c.b16 %v373, %v373
        %v1518 = vpack.c.b16 %v375, %v375
        %v1519 = vpack.c.b16 %v377, %v377
        %v1520 = vpack.c.b16 %v379, %v379
        %v1521 = vpack.c.b16 %v381, %v381
        %v1522 = vpack.c.b16 %v383, %v383
        %v1523 = vpack.c.b16 %v385, %v385
        %v1524 = vpack.c.b16 %v387, %v387
        %v1525 = vpack.c.b16 %v389, %v389
        %v1526 = vpack.c.b16 %v391, %v391
        %v1527 = vpack.c.b16 %v393, %v393
        %v1528 = vpack.c.b16 %v395, %v395
        %v1529 = vpack.c.b16 %v397, %v397
        %v1530 = vpack.c.b16 %v399, %v399
        %v1531 = vpack.c.b16 %v401, %v401
        %v1532 = vpack.c.b16 %v403, %v403
        %v1533 = vpack.c.b16 %v405, %v405
        %v1534 = vpack.c.b16 %v407, %v407
        %v1535 = vpack.c.b16 %v409, %v409
        %v1536 = vpack.c.b16 %v411, %v411
        %v1537 = vpack.c.b16 %v413, %v413
        %v1538 = vpack.c.b16 %v415, %v415
        %v1539 = vpack.c.b16 %v417, %v417
        %v1540 = vpack.c.b16 %v419, %v419
        %v1541 = vpack.c.b16 %v421, %v421
        %1542 = vrot.lane.b32.xlu0 %v1510, 56
        %v1543 = vpop.permute.xlu0 %1542
        %1544 = vrot.lane.b32.xlu0 %v1511, 56
        %v1545 = vpop.permute.xlu0 %1544
        %1546 = vrot.lane.b32.xlu0 %v1512, 56
        %v1547 = vpop.permute.xlu0 %1546
        %1548 = vrot.lane.b32.xlu0 %v1513, 56
        %v1549 = vpop.permute.xlu0 %1548
        %1550 = vrot.lane.b32.xlu0 %v1514, 56
        %v1551 = vpop.permute.xlu0 %1550
        %1552 = vrot.lane.b32.xlu0 %v1515, 56
        %v1553 = vpop.permute.xlu0 %1552
        %1554 = vrot.lane.b32.xlu0 %v1516, 56
        %v1555 = vpop.permute.xlu0 %1554
        %1556 = vrot.lane.b32.xlu0 %v1517, 56
        %v1557 = vpop.permute.xlu0 %1556
        %1558 = vrot.lane.b32.xlu0 %v1518, 56
        %v1559 = vpop.permute.xlu0 %1558
        %1560 = vrot.lane.b32.xlu0 %v1519, 56
        %v1561 = vpop.permute.xlu0 %1560
        %1562 = vrot.lane.b32.xlu0 %v1520, 56
        %v1563 = vpop.permute.xlu0 %1562
        %1564 = vrot.lane.b32.xlu0 %v1521, 56
        %v1565 = vpop.permute.xlu0 %1564
        %1566 = vrot.lane.b32.xlu0 %v1522, 56
        %v1567 = vpop.permute.xlu0 %1566
        %1568 = vrot.lane.b32.xlu0 %v1523, 56
        %v1569 = vpop.permute.xlu0 %1568
        %1570 = vrot.lane.b32.xlu0 %v1524, 56
        %v1571 = vpop.permute.xlu0 %1570
        %1572 = vrot.lane.b32.xlu0 %v1525, 56
        %v1573 = vpop.permute.xlu0 %1572
        %1574 = vrot.lane.b32.xlu0 %v1526, 56
        %v1575 = vpop.permute.xlu0 %1574
        %1576 = vrot.lane.b32.xlu0 %v1527, 56
        %v1577 = vpop.permute.xlu0 %1576
        %1578 = vrot.lane.b32.xlu0 %v1528, 56
        %v1579 = vpop.permute.xlu0 %1578
        %1580 = vrot.lane.b32.xlu0 %v1529, 56
        %v1581 = vpop.permute.xlu0 %1580
        %1582 = vrot.lane.b32.xlu0 %v1530, 56
        %v1583 = vpop.permute.xlu0 %1582
        %1584 = vrot.lane.b32.xlu0 %v1531, 56
        %v1585 = vpop.permute.xlu0 %1584
        %1586 = vrot.lane.b32.xlu0 %v1532, 56
        %v1587 = vpop.permute.xlu0 %1586
        %1588 = vrot.lane.b32.xlu0 %v1533, 56
        %v1589 = vpop.permute.xlu0 %1588
        %1590 = vrot.lane.b32.xlu0 %v1534, 56
        %v1591 = vpop.permute.xlu0 %1590
        %1592 = vrot.lane.b32.xlu0 %v1535, 56
        %v1593 = vpop.permute.xlu0 %1592
        %1594 = vrot.lane.b32.xlu0 %v1536, 56
        %v1595 = vpop.permute.xlu0 %1594
        %1596 = vrot.lane.b32.xlu0 %v1537, 56
        %v1597 = vpop.permute.xlu0 %1596
        %1598 = vrot.lane.b32.xlu0 %v1538, 56
        %v1599 = vpop.permute.xlu0 %1598
        %1600 = vrot.lane.b32.xlu0 %v1539, 56
        %v1601 = vpop.permute.xlu0 %1600
        %1602 = vrot.lane.b32.xlu0 %v1540, 56
        %v1603 = vpop.permute.xlu0 %1602
        %1604 = vrot.lane.b32.xlu0 %v1541, 56
        %v1605 = vpop.permute.xlu0 %1604
        %vm1606 = vcmask 187392
        %v1609 = vsel %vm1606, %v230, %v679
        %v1612 = vsel %vm1606, %v232, %v681
        %v1615 = vsel %vm1606, %v234, %v683
        %v1618 = vsel %vm1606, %v236, %v685
        %v1621 = vsel %vm1606, %v238, %v687
        %v1624 = vsel %vm1606, %v240, %v689
        %v1627 = vsel %vm1606, %v242, %v691
        %v1630 = vsel %vm1606, %v244, %v693
        %v1633 = vsel %vm1606, %v246, %v695
        %v1636 = vsel %vm1606, %v248, %v697
        %v1639 = vsel %vm1606, %v250, %v699
        %v1642 = vsel %vm1606, %v252, %v701
        %v1645 = vsel %vm1606, %v254, %v703
        %v1648 = vsel %vm1606, %v256, %v705
        %v1651 = vsel %vm1606, %v258, %v707
        %v1654 = vsel %vm1606, %v260, %v709
        %v1657 = vsel %vm1606, %v262, %v711
        %v1660 = vsel %vm1606, %v264, %v713
        %v1663 = vsel %vm1606, %v266, %v715
        %v1666 = vsel %vm1606, %v268, %v717
        %v1669 = vsel %vm1606, %v270, %v719
        %v1672 = vsel %vm1606, %v272, %v721
        %v1675 = vsel %vm1606, %v274, %v723
        %v1678 = vsel %vm1606, %v276, %v725
        %v1681 = vsel %vm1606, %v278, %v727
        %v1684 = vsel %vm1606, %v280, %v729
        %v1687 = vsel %vm1606, %v282, %v731
        %v1690 = vsel %vm1606, %v284, %v733
        %v1693 = vsel %vm1606, %v286, %v735
        %v1696 = vsel %vm1606, %v288, %v737
        %v1699 = vsel %vm1606, %v290, %v739
        %v1702 = vsel %vm1606, %v292, %v741
        %vm1703 = vcmask 375808
        %v1705 = vsel %vm1703, %v1609, %v775
        %v1707 = vsel %vm1703, %v1612, %v777
        %v1709 = vsel %vm1703, %v1615, %v779
        %v1711 = vsel %vm1703, %v1618, %v781
        %v1713 = vsel %vm1703, %v1621, %v783
        %v1715 = vsel %vm1703, %v1624, %v785
        %v1717 = vsel %vm1703, %v1627, %v787
        %v1719 = vsel %vm1703, %v1630, %v789
        %v1721 = vsel %vm1703, %v1633, %v791
        %v1723 = vsel %vm1703, %v1636, %v793
        %v1725 = vsel %vm1703, %v1639, %v795
        %v1727 = vsel %vm1703, %v1642, %v797
        %v1729 = vsel %vm1703, %v1645, %v799
        %v1731 = vsel %vm1703, %v1648, %v801
        %v1733 = vsel %vm1703, %v1651, %v803
        %v1735 = vsel %vm1703, %v1654, %v805
        %v1737 = vsel %vm1703, %v1657, %v807
        %v1739 = vsel %vm1703, %v1660, %v809
        %v1741 = vsel %vm1703, %v1663, %v811
        %v1743 = vsel %vm1703, %v1666, %v813
        %v1745 = vsel %vm1703, %v1669, %v815
        %v1747 = vsel %vm1703, %v1672, %v817
        %v1749 = vsel %vm1703, %v1675, %v819
        %v1751 = vsel %vm1703, %v1678, %v821
        %v1753 = vsel %vm1703, %v1681, %v823
        %v1755 = vsel %vm1703, %v1684, %v825
        %v1757 = vsel %vm1703, %v1687, %v827
        %v1759 = vsel %vm1703, %v1690, %v829
        %v1761 = vsel %vm1703, %v1693, %v831
        %v1763 = vsel %vm1703, %v1696, %v833
        %v1765 = vsel %vm1703, %v1699, %v835
        %v1767 = vsel %vm1703, %v1702, %v837
        %vm1768 = vcmask 564224
        %v1770 = vsel %vm1768, %v1705, %v935
        %v1772 = vsel %vm1768, %v1707, %v937
        %v1774 = vsel %vm1768, %v1709, %v939
        %v1776 = vsel %vm1768, %v1711, %v941
        %v1778 = vsel %vm1768, %v1713, %v943
        %v1780 = vsel %vm1768, %v1715, %v945
        %v1782 = vsel %vm1768, %v1717, %v947
        %v1784 = vsel %vm1768, %v1719, %v949
        %v1786 = vsel %vm1768, %v1721, %v951
        %v1788 = vsel %vm1768, %v1723, %v953
        %v1790 = vsel %vm1768, %v1725, %v955
        %v1792 = vsel %vm1768, %v1727, %v957
        %v1794 = vsel %vm1768, %v1729, %v959
        %v1796 = vsel %vm1768, %v1731, %v961
        %v1798 = vsel %vm1768, %v1733, %v963
        %v1800 = vsel %vm1768, %v1735, %v965
        %v1802 = vsel %vm1768, %v1737, %v967
        %v1804 = vsel %vm1768, %v1739, %v969
        %v1806 = vsel %vm1768, %v1741, %v971
        %v1808 = vsel %vm1768, %v1743, %v973
        %v1810 = vsel %vm1768, %v1745, %v975
        %v1812 = vsel %vm1768, %v1747, %v977
        %v1814 = vsel %vm1768, %v1749, %v979
        %v1816 = vsel %vm1768, %v1751, %v981
        %v1818 = vsel %vm1768, %v1753, %v983
        %v1820 = vsel %vm1768, %v1755, %v985
        %v1822 = vsel %vm1768, %v1757, %v987
        %v1824 = vsel %vm1768, %v1759, %v989
        %v1826 = vsel %vm1768, %v1761, %v991
        %v1828 = vsel %vm1768, %v1763, %v993
        %v1830 = vsel %vm1768, %v1765, %v995
        %v1832 = vsel %vm1768, %v1767, %v997
        %vm1833 = vcmask 752640
        %v1835 = vsel %vm1833, %v1770, %v1031
        %v1837 = vsel %vm1833, %v1772, %v1033
        %v1839 = vsel %vm1833, %v1774, %v1035
        %v1841 = vsel %vm1833, %v1776, %v1037
        %v1843 = vsel %vm1833, %v1778, %v1039
        %v1845 = vsel %vm1833, %v1780, %v1041
        %v1847 = vsel %vm1833, %v1782, %v1043
        %v1849 = vsel %vm1833, %v1784, %v1045
        %v1851 = vsel %vm1833, %v1786, %v1047
        %v1853 = vsel %vm1833, %v1788, %v1049
        %v1855 = vsel %vm1833, %v1790, %v1051
        %v1857 = vsel %vm1833, %v1792, %v1053
        %v1859 = vsel %vm1833, %v1794, %v1055
        %v1861 = vsel %vm1833, %v1796, %v1057
        %v1863 = vsel %vm1833, %v1798, %v1059
        %v1865 = vsel %vm1833, %v1800, %v1061
        %v1867 = vsel %vm1833, %v1802, %v1063
        %v1869 = vsel %vm1833, %v1804, %v1065
        %v1871 = vsel %vm1833, %v1806, %v1067
        %v1873 = vsel %vm1833, %v1808, %v1069
        %v1875 = vsel %vm1833, %v1810, %v1071
        %v1877 = vsel %vm1833, %v1812, %v1073
        %v1879 = vsel %vm1833, %v1814, %v1075
        %v1881 = vsel %vm1833, %v1816, %v1077
        %v1883 = vsel %vm1833, %v1818, %v1079
        %v1885 = vsel %vm1833, %v1820, %v1081
        %v1887 = vsel %vm1833, %v1822, %v1083
        %v1889 = vsel %vm1833, %v1824, %v1085
        %v1891 = vsel %vm1833, %v1826, %v1087
        %v1893 = vsel %vm1833, %v1828, %v1089
        %v1895 = vsel %vm1833, %v1830, %v1091
        %v1897 = vsel %vm1833, %v1832, %v1093
        %vm1898 = vcmask 941056
        %v1900 = vsel %vm1898, %v1835, %v1191
        %v1902 = vsel %vm1898, %v1837, %v1193
        %v1904 = vsel %vm1898, %v1839, %v1195
        %v1906 = vsel %vm1898, %v1841, %v1197
        %v1908 = vsel %vm1898, %v1843, %v1199
        %v1910 = vsel %vm1898, %v1845, %v1201
        %v1912 = vsel %vm1898, %v1847, %v1203
        %v1914 = vsel %vm1898, %v1849, %v1205
        %v1916 = vsel %vm1898, %v1851, %v1207
        %v1918 = vsel %vm1898, %v1853, %v1209
        %v1920 = vsel %vm1898, %v1855, %v1211
        %v1922 = vsel %vm1898, %v1857, %v1213
        %v1924 = vsel %vm1898, %v1859, %v1215
        %v1926 = vsel %vm1898, %v1861, %v1217
        %v1928 = vsel %vm1898, %v1863, %v1219
        %v1930 = vsel %vm1898, %v1865, %v1221
        %v1932 = vsel %vm1898, %v1867, %v1223
        %v1934 = vsel %vm1898, %v1869, %v1225
        %v1936 = vsel %vm1898, %v1871, %v1227
        %v1938 = vsel %vm1898, %v1873, %v1229
        %v1940 = vsel %vm1898, %v1875, %v1231
        %v1942 = vsel %vm1898, %v1877, %v1233
        %v1944 = vsel %vm1898, %v1879, %v1235
        %v1946 = vsel %vm1898, %v1881, %v1237
        %v1948 = vsel %vm1898, %v1883, %v1239
        %v1950 = vsel %vm1898, %v1885, %v1241
        %v1952 = vsel %vm1898, %v1887, %v1243
        %v1954 = vsel %vm1898, %v1889, %v1245
        %v1956 = vsel %vm1898, %v1891, %v1247
        %v1958 = vsel %vm1898, %v1893, %v1249
        %v1960 = vsel %vm1898, %v1895, %v1251
        %v1962 = vsel %vm1898, %v1897, %v1253
        %vm1963 = vcmask 80896
        %v1965 = vsel %vm1963, %v1191, %v1287
        %v1967 = vsel %vm1963, %v1193, %v1289
        %v1969 = vsel %vm1963, %v1195, %v1291
        %v1971 = vsel %vm1963, %v1197, %v1293
        %v1973 = vsel %vm1963, %v1199, %v1295
        %v1975 = vsel %vm1963, %v1201, %v1297
        %v1977 = vsel %vm1963, %v1203, %v1299
        %v1979 = vsel %vm1963, %v1205, %v1301
        %v1981 = vsel %vm1963, %v1207, %v1303
        %v1983 = vsel %vm1963, %v1209, %v1305
        %v1985 = vsel %vm1963, %v1211, %v1307
        %v1987 = vsel %vm1963, %v1213, %v1309
        %v1989 = vsel %vm1963, %v1215, %v1311
        %v1991 = vsel %vm1963, %v1217, %v1313
        %v1993 = vsel %vm1963, %v1219, %v1315
        %v1995 = vsel %vm1963, %v1221, %v1317
        %v1997 = vsel %vm1963, %v1223, %v1319
        %v1999 = vsel %vm1963, %v1225, %v1321
        %v2001 = vsel %vm1963, %v1227, %v1323
        %v2003 = vsel %vm1963, %v1229, %v1325
        %v2005 = vsel %vm1963, %v1231, %v1327
        %v2007 = vsel %vm1963, %v1233, %v1329
        %v2009 = vsel %vm1963, %v1235, %v1331
        %v2011 = vsel %vm1963, %v1237, %v1333
        %v2013 = vsel %vm1963, %v1239, %v1335
        %v2015 = vsel %vm1963, %v1241, %v1337
        %v2017 = vsel %vm1963, %v1243, %v1339
        %v2019 = vsel %vm1963, %v1245, %v1341
        %v2021 = vsel %vm1963, %v1247, %v1343
        %v2023 = vsel %vm1963, %v1249, %v1345
        %v2025 = vsel %vm1963, %v1251, %v1347
        %v2027 = vsel %vm1963, %v1253, %v1349
        %vm2028 = vcmask 269312
        %v2030 = vsel %vm2028, %v1965, %v1447
        %v2032 = vsel %vm2028, %v1967, %v1449
        %v2034 = vsel %vm2028, %v1969, %v1451
        %v2036 = vsel %vm2028, %v1971, %v1453
        %v2038 = vsel %vm2028, %v1973, %v1455
        %v2040 = vsel %vm2028, %v1975, %v1457
        %v2042 = vsel %vm2028, %v1977, %v1459
        %v2044 = vsel %vm2028, %v1979, %v1461
        %v2046 = vsel %vm2028, %v1981, %v1463
        %v2048 = vsel %vm2028, %v1983, %v1465
        %v2050 = vsel %vm2028, %v1985, %v1467
        %v2052 = vsel %vm2028, %v1987, %v1469
        %v2054 = vsel %vm2028, %v1989, %v1471
        %v2056 = vsel %vm2028, %v1991, %v1473
        %v2058 = vsel %vm2028, %v1993, %v1475
        %v2060 = vsel %vm2028, %v1995, %v1477
        %v2062 = vsel %vm2028, %v1997, %v1479
        %v2064 = vsel %vm2028, %v1999, %v1481
        %v2066 = vsel %vm2028, %v2001, %v1483
        %v2068 = vsel %vm2028, %v2003, %v1485
        %v2070 = vsel %vm2028, %v2005, %v1487
        %v2072 = vsel %vm2028, %v2007, %v1489
        %v2074 = vsel %vm2028, %v2009, %v1491
        %v2076 = vsel %vm2028, %v2011, %v1493
        %v2078 = vsel %vm2028, %v2013, %v1495
        %v2080 = vsel %vm2028, %v2015, %v1497
        %v2082 = vsel %vm2028, %v2017, %v1499
        %v2084 = vsel %vm2028, %v2019, %v1501
        %v2086 = vsel %vm2028, %v2021, %v1503
        %v2088 = vsel %vm2028, %v2023, %v1505
        %v2090 = vsel %vm2028, %v2025, %v1507
        %v2092 = vsel %vm2028, %v2027, %v1509
        %vm2093 = vcmask 457728
        %v2095 = vsel %vm2093, %v2030, %v1543
        %v2097 = vsel %vm2093, %v2032, %v1545
        %v2099 = vsel %vm2093, %v2034, %v1547
        %v2101 = vsel %vm2093, %v2036, %v1549
        %v2103 = vsel %vm2093, %v2038, %v1551
        %v2105 = vsel %vm2093, %v2040, %v1553
        %v2107 = vsel %vm2093, %v2042, %v1555
        %v2109 = vsel %vm2093, %v2044, %v1557
        %v2111 = vsel %vm2093, %v2046, %v1559
        %v2113 = vsel %vm2093, %v2048, %v1561
        %v2115 = vsel %vm2093, %v2050, %v1563
        %v2117 = vsel %vm2093, %v2052, %v1565
        %v2119 = vsel %vm2093, %v2054, %v1567
        %v2121 = vsel %vm2093, %v2056, %v1569
        %v2123 = vsel %vm2093, %v2058, %v1571
        %v2125 = vsel %vm2093, %v2060, %v1573
        %v2127 = vsel %vm2093, %v2062, %v1575
        %v2129 = vsel %vm2093, %v2064, %v1577
        %v2131 = vsel %vm2093, %v2066, %v1579
        %v2133 = vsel %vm2093, %v2068, %v1581
        %v2135 = vsel %vm2093, %v2070, %v1583
        %v2137 = vsel %vm2093, %v2072, %v1585
        %v2139 = vsel %vm2093, %v2074, %v1587
        %v2141 = vsel %vm2093, %v2076, %v1589
        %v2143 = vsel %vm2093, %v2078, %v1591
        %v2145 = vsel %vm2093, %v2080, %v1593
        %v2147 = vsel %vm2093, %v2082, %v1595
        %v2149 = vsel %vm2093, %v2084, %v1597
        %v2151 = vsel %vm2093, %v2086, %v1599
        %v2153 = vsel %vm2093, %v2088, %v1601
        %v2155 = vsel %vm2093, %v2090, %v1603
        %v2157 = vsel %vm2093, %v2092, %v1605
        %v2222 = vunpack.c.l.b16 %v1900
        %v2223 = vunpack.c.l.b16 %v2095
        %v2224 = vunpack.c.l.b16 %v1902
        %v2225 = vunpack.c.l.b16 %v2097
        %v2226 = vunpack.c.l.b16 %v1904
        %v2227 = vunpack.c.l.b16 %v2099
        %v2228 = vunpack.c.l.b16 %v1906
        %v2229 = vunpack.c.l.b16 %v2101
        %v2230 = vunpack.c.l.b16 %v1908
        %v2231 = vunpack.c.l.b16 %v2103
        %v2232 = vunpack.c.l.b16 %v1910
        %v2233 = vunpack.c.l.b16 %v2105
        %v2234 = vunpack.c.l.b16 %v1912
        %v2235 = vunpack.c.l.b16 %v2107
        %v2236 = vunpack.c.l.b16 %v1914
        %v2237 = vunpack.c.l.b16 %v2109
        %v2238 = vunpack.c.l.b16 %v1916
        %v2239 = vunpack.c.l.b16 %v2111
        %v2240 = vunpack.c.l.b16 %v1918
        %v2241 = vunpack.c.l.b16 %v2113
        %v2242 = vunpack.c.l.b16 %v1920
        %v2243 = vunpack.c.l.b16 %v2115
        %v2244 = vunpack.c.l.b16 %v1922
        %v2245 = vunpack.c.l.b16 %v2117
        %v2246 = vunpack.c.l.b16 %v1924
        %v2247 = vunpack.c.l.b16 %v2119
        %v2248 = vunpack.c.l.b16 %v1926
        %v2249 = vunpack.c.l.b16 %v2121
        %v2250 = vunpack.c.l.b16 %v1928
        %v2251 = vunpack.c.l.b16 %v2123
        %v2252 = vunpack.c.l.b16 %v1930
        %v2253 = vunpack.c.l.b16 %v2125
        %v2254 = vunpack.c.l.b16 %v1932
        %v2255 = vunpack.c.l.b16 %v2127
        %v2256 = vunpack.c.l.b16 %v1934
        %v2257 = vunpack.c.l.b16 %v2129
        %v2258 = vunpack.c.l.b16 %v1936
        %v2259 = vunpack.c.l.b16 %v2131
        %v2260 = vunpack.c.l.b16 %v1938
        %v2261 = vunpack.c.l.b16 %v2133
        %v2262 = vunpack.c.l.b16 %v1940
        %v2263 = vunpack.c.l.b16 %v2135
        %v2264 = vunpack.c.l.b16 %v1942
        %v2265 = vunpack.c.l.b16 %v2137
        %v2266 = vunpack.c.l.b16 %v1944
        %v2267 = vunpack.c.l.b16 %v2139
        %v2268 = vunpack.c.l.b16 %v1946
        %v2269 = vunpack.c.l.b16 %v2141
        %v2270 = vunpack.c.l.b16 %v1948
        %v2271 = vunpack.c.l.b16 %v2143
        %v2272 = vunpack.c.l.b16 %v1950
        %v2273 = vunpack.c.l.b16 %v2145
        %v2274 = vunpack.c.l.b16 %v1952
        %v2275 = vunpack.c.l.b16 %v2147
        %v2276 = vunpack.c.l.b16 %v1954
        %v2277 = vunpack.c.l.b16 %v2149
        %v2278 = vunpack.c.l.b16 %v1956
        %v2279 = vunpack.c.l.b16 %v2151
        %v2280 = vunpack.c.l.b16 %v1958
        %v2281 = vunpack.c.l.b16 %v2153
        %v2282 = vunpack.c.l.b16 %v1960
        %v2283 = vunpack.c.l.b16 %v2155
        %v2284 = vunpack.c.l.b16 %v1962
        %v2285 = vunpack.c.l.b16 %v2157
        %v2286 = vld [vmem:[%s1] sm:$0xf]
        %v2287 = vld [vmem:[%s1 + $0x4] sm:$0xf]
        %v2288 = vld [vmem:[%s1 + $0x8] sm:$0xf]
        %v2289 = vld [vmem:[%s1 + $0xc] sm:$0xf]
        %v2290 = vld [vmem:[%s1 + $0x10] sm:$0xf]
        %v2291 = vld [vmem:[%s1 + $0x14] sm:$0xf]
        %v2292 = vld [vmem:[%s1 + $0x18] sm:$0xf]
        %v2293 = vld [vmem:[%s1 + $0x1c] sm:$0xf]
        %v2294 = vld [vmem:[%s1 + $0x20] sm:$0xf]
        %v2295 = vld [vmem:[%s1 + $0x24] sm:$0xf]
        %v2296 = vld [vmem:[%s1 + $0x28] sm:$0xf]
        %v2297 = vld [vmem:[%s1 + $0x2c] sm:$0xf]
        %v2298 = vld [vmem:[%s1 + $0x30] sm:$0xf]
        %v2299 = vld [vmem:[%s1 + $0x34] sm:$0xf]
        %v2300 = vld [vmem:[%s1 + $0x38] sm:$0xf]
        %v2301 = vld [vmem:[%s1 + $0x3c] sm:$0xf]
        %v2302 = vld [vmem:[%s1 + $0x40] sm:$0xf]
        %v2303 = vld [vmem:[%s1 + $0x44] sm:$0xf]
        %v2304 = vld [vmem:[%s1 + $0x48] sm:$0xf]
        %v2305 = vld [vmem:[%s1 + $0x4c] sm:$0xf]
        %v2306 = vld [vmem:[%s1 + $0x50] sm:$0xf]
        %v2307 = vld [vmem:[%s1 + $0x54] sm:$0xf]
        %v2308 = vld [vmem:[%s1 + $0x58] sm:$0xf]
        %v2309 = vld [vmem:[%s1 + $0x5c] sm:$0xf]
        %v2310 = vld [vmem:[%s1 + $0x60] sm:$0xf]
        %v2311 = vld [vmem:[%s1 + $0x64] sm:$0xf]
        %v2312 = vld [vmem:[%s2] sm:$0x1]
        %v2314 = vlaneseq
        %v2315 = vshrl.u32 %v2314, 7
        %v2316 = vsub.s32 0, %v2315
        %v2317 = vrot.slane %v2312, %v2316
        %v2319 = vpack.c.b16 %v2224, %v2222
        %v2320 = vpack.c.b16 %v2225, %v2223
        %v2321 = vpack.c.b16 %v2228, %v2226
        %v2322 = vpack.c.b16 %v2229, %v2227
        %v2323 = vpack.c.b16 %v2232, %v2230
        %v2324 = vpack.c.b16 %v2233, %v2231
        %v2325 = vpack.c.b16 %v2236, %v2234
        %v2326 = vpack.c.b16 %v2237, %v2235
        %v2327 = vpack.c.b16 %v2240, %v2238
        %v2328 = vpack.c.b16 %v2241, %v2239
        %v2329 = vpack.c.b16 %v2244, %v2242
        %v2330 = vpack.c.b16 %v2245, %v2243
        %v2331 = vpack.c.b16 %v2248, %v2246
        %v2332 = vpack.c.b16 %v2249, %v2247
        %v2333 = vpack.c.b16 %v2252, %v2250
        %v2334 = vpack.c.b16 %v2253, %v2251
        %v2335 = vpack.c.b16 %v2256, %v2254
        %v2336 = vpack.c.b16 %v2257, %v2255
        %v2337 = vpack.c.b16 %v2260, %v2258
        %v2338 = vpack.c.b16 %v2261, %v2259
        %v2339 = vpack.c.b16 %v2264, %v2262
        %v2340 = vpack.c.b16 %v2265, %v2263
        %v2341 = vpack.c.b16 %v2268, %v2266
        %v2342 = vpack.c.b16 %v2269, %v2267
        %v2343 = vpack.c.b16 %v2272, %v2270
        %v2344 = vpack.c.b16 %v2273, %v2271
        %v2345 = vpack.c.b16 %v2276, %v2274
        %v2346 = vpack.c.b16 %v2277, %v2275
        %v2347 = vpack.c.b16 %v2280, %v2278
        %v2348 = vpack.c.b16 %v2281, %v2279
        %v2349 = vpack.c.b16 %v2284, %v2282
        %v2350 = vpack.c.b16 %v2285, %v2283
        %v2393 = vunpack.c.l.b16 %v2286
        %v2394 = vunpack.c.l.b16 %v2287
        %v2395 = vunpack.c.l.b16 %v2288
        %v2396 = vunpack.c.l.b16 %v2289
        %v2397 = vunpack.c.l.b16 %v2290
        %v2398 = vunpack.c.l.b16 %v2291
        %v2399 = vunpack.c.l.b16 %v2292
        %v2400 = vunpack.c.l.b16 %v2293
        %v2401 = vunpack.c.l.b16 %v2294
        %v2402 = vunpack.c.l.b16 %v2295
        %v2403 = vunpack.c.l.b16 %v2296
        %v2404 = vunpack.c.l.b16 %v2297
        %v2405 = vunpack.c.l.b16 %v2298
        %v2406 = vunpack.c.l.b16 %v2299
        %v2407 = vunpack.c.l.b16 %v2300
        %v2408 = vunpack.c.l.b16 %v2301
        %v2409 = vunpack.c.l.b16 %v2302
        %v2410 = vunpack.c.l.b16 %v2303
        %v2411 = vunpack.c.l.b16 %v2304
        %v2412 = vunpack.c.l.b16 %v2305
        %v2413 = vunpack.c.l.b16 %v2306
        %v2414 = vunpack.c.l.b16 %v2307
        %v2415 = vunpack.c.l.b16 %v2308
        %v2416 = vunpack.c.l.b16 %v2309
        %v2417 = vunpack.c.l.b16 %v2310
        %v2418 = vunpack.c.l.b16 %v2311
        %v2419 = vpack.c.b16 %v2394, %v2393
        %v2420 = vpack.c.b16 %v2396, %v2395
        %v2421 = vpack.c.b16 %v2398, %v2397
        %v2422 = vpack.c.b16 %v2400, %v2399
        %v2423 = vpack.c.b16 %v2402, %v2401
        %v2424 = vpack.c.b16 %v2404, %v2403
        %v2425 = vpack.c.b16 %v2406, %v2405
        %v2426 = vpack.c.b16 %v2408, %v2407
        %v2427 = vpack.c.b16 %v2410, %v2409
        %v2428 = vpack.c.b16 %v2412, %v2411
        %v2429 = vpack.c.b16 %v2414, %v2413
        %v2430 = vpack.c.b16 %v2416, %v2415
        %v2431 = vpack.c.b16 %v2418, %v2417
        %vm2444 = vcmask 646144
        %v2446 = vsel %vm2444, %v2320, 0
        %v2449 = vsel %vm2444, %v2322, 0
        %v2452 = vsel %vm2444, %v2324, 0
        %v2455 = vsel %vm2444, %v2326, 0
        %v2458 = vsel %vm2444, %v2328, 0
        %v2461 = vsel %vm2444, %v2330, 0
        %v2464 = vsel %vm2444, %v2332, 0
        %v2467 = vsel %vm2444, %v2334, 0
        %v2470 = vsel %vm2444, %v2336, 0
        %v2473 = vsel %vm2444, %v2338, 0
        %v2476 = vsel %vm2444, %v2340, 0
        %v2479 = vsel %vm2444, %v2342, 0
        %v2482 = vsel %vm2444, %v2344, 0
        %v2485 = vsel %vm2444, %v2346, 0
        %v2488 = vsel %vm2444, %v2348, 0
        %v2491 = vsel %vm2444, %v2350, 0
        %vm2493 = vcmask 1046528
        %vm2494 = vcmask 1047552
        %v2495 = vsel %vm2493, 4294967295, 65535
        %v2496 = vsel %vm2494, %v2495, 0
        %v2498 = vand.u32 %v2431, %v2496
        %2500 = vmatprep.subr.bf16.mxu0 0
        %2501 = vmatpush1.bf16.msra.mxu0 %v2419
        %2502 = vmatprep.subr.bf16.mxu0 0
        %2503 = vmatpush1.bf16.msra.mxu0 %v2420
        %2504 = vmatprep.subr.bf16.mxu0 0
        %2505 = vmatpush1.bf16.msra.mxu0 %v2421
        %2506 = vmatprep.subr.bf16.mxu0 0
        %2507 = vmatpush1.bf16.msra.mxu0 %v2422
        %2508 = vmatprep.subr.bf16.mxu0 0
        %2509 = vmatpush1.bf16.msra.mxu0 %v2423
        %2510 = vmatprep.subr.bf16.mxu0 0
        %2511 = vmatpush1.bf16.msra.mxu0 %v2424
        %2512 = vmatprep.subr.bf16.mxu0 0
        %2513 = vmatpush1.bf16.msra.mxu0 %v2425
        %2514 = vmatprep.subr.bf16.mxu0 0
        %2515 = vmatpush1.bf16.msra.mxu0 %v2426
        %2516 = vmatprep.subr.bf16.mxu0 0
        %2517 = vmatpush1.bf16.msra.mxu0 %v2427
        %2518 = vmatprep.subr.bf16.mxu0 0
        %2519 = vmatpush1.bf16.msra.mxu0 %v2428
        %2520 = vmatprep.subr.bf16.mxu0 0
        %2521 = vmatpush1.bf16.msra.mxu0 %v2429
        %2522 = vmatprep.subr.bf16.mxu0 0
        %2523 = vmatpush1.bf16.msra.mxu0 %v2430
        %2524 = vmatprep.subr.bf16.mxu0 0
        %2525 = vmatpush1.bf16.msra.mxu0 %v2498
        %2526 = vmatprep.subr.bf16.mxu0 0
        %2527 = vmatpush1.bf16.msra.mxu0 0
        %2528 = vmatprep.subr.bf16.mxu0 0
        %2529 = vmatpush1.bf16.msra.mxu0 0
        %2530 = vmatprep.subr.bf16.mxu0 0
        %2531 = vmatpush1.bf16.msra.mxu0 0
        %2532 = vmatprep.mubr.bf16.mxu0 %v2446
        %2533 = vmatmul.mubr.bf16.gmra.mrb[0].mxu0 %v2319
        %v2534 = vpop.f32.mrb[0].mxu0
        %v2535 = vadd.f32 %v2317, %v2534
        %v2536 = vpop.f32.mrb[0].mxu0
        %v2537 = vpop.f32.mrb[0].mxu0
        %v2538 = vadd.f32 %v2317, %v2537
        %v2539 = vpop.f32.mrb[0].mxu0
        %2540 = vmatprep.mubr.bf16.mxu0 %v2449
        %2541 = vmatmul.mubr.bf16.gmra.mrb[0].mxu0 %v2321
        %v2542 = vpop.f32.mrb[0].mxu0
        %v2543 = vadd.f32 %v2317, %v2542
        %v2544 = vpop.f32.mrb[0].mxu0
        %v2545 = vpop.f32.mrb[0].mxu0
        %v2546 = vadd.f32 %v2317, %v2545
        %v2547 = vpop.f32.mrb[0].mxu0
        %2548 = vmatprep.mubr.bf16.mxu0 %v2452
        %2549 = vmatmul.mubr.bf16.gmra.mrb[0].mxu0 %v2323
        %v2550 = vpop.f32.mrb[0].mxu0
        %v2551 = vadd.f32 %v2317, %v2550
        %v2552 = vpop.f32.mrb[0].mxu0
        %v2553 = vpop.f32.mrb[0].mxu0
        %v2554 = vadd.f32 %v2317, %v2553
        %v2555 = vpop.f32.mrb[0].mxu0
        %2556 = vmatprep.mubr.bf16.mxu0 %v2455
        %2557 = vmatmul.mubr.bf16.gmra.mrb[0].mxu0 %v2325
        %v2558 = vpop.f32.mrb[0].mxu0
        %v2559 = vadd.f32 %v2317, %v2558
        %v2560 = vpop.f32.mrb[0].mxu0
        %v2561 = vpop.f32.mrb[0].mxu0
        %v2562 = vadd.f32 %v2317, %v2561
        %v2563 = vpop.f32.mrb[0].mxu0
        %2564 = vmatprep.mubr.bf16.mxu0 %v2458
        %2565 = vmatmul.mubr.bf16.gmra.mrb[0].mxu0 %v2327
        %v2566 = vpop.f32.mrb[0].mxu0
        %v2567 = vadd.f32 %v2317, %v2566
        %v2568 = vpop.f32.mrb[0].mxu0
        %v2569 = vpop.f32.mrb[0].mxu0
        %v2570 = vadd.f32 %v2317, %v2569
        %v2571 = vpop.f32.mrb[0].mxu0
        %2572 = vmatprep.mubr.bf16.mxu0 %v2461
        %2573 = vmatmul.mubr.bf16.gmra.mrb[0].mxu0 %v2329
        %v2574 = vpop.f32.mrb[0].mxu0
        %v2575 = vadd.f32 %v2317, %v2574
        %v2576 = vpop.f32.mrb[0].mxu0
        %v2577 = vpop.f32.mrb[0].mxu0
        %v2578 = vadd.f32 %v2317, %v2577
        %v2579 = vpop.f32.mrb[0].mxu0
        %2580 = vmatprep.mubr.bf16.mxu0 %v2464
        %2581 = vmatmul.mubr.bf16.gmra.mrb[0].mxu0 %v2331
        %v2582 = vpop.f32.mrb[0].mxu0
        %v2583 = vadd.f32 %v2317, %v2582
        %v2584 = vpop.f32.mrb[0].mxu0
        %v2585 = vpop.f32.mrb[0].mxu0
        %v2586 = vadd.f32 %v2317, %v2585
        %v2587 = vpop.f32.mrb[0].mxu0
        %2588 = vmatprep.mubr.bf16.mxu0 %v2467
        %2589 = vmatmul.mubr.bf16.gmra.mrb[0].mxu0 %v2333
        %v2590 = vpop.f32.mrb[0].mxu0
        %v2591 = vadd.f32 %v2317, %v2590
        %v2592 = vpop.f32.mrb[0].mxu0
        %v2593 = vpop.f32.mrb[0].mxu0
        %v2594 = vadd.f32 %v2317, %v2593
        %v2595 = vpop.f32.mrb[0].mxu0
        %2596 = vmatprep.mubr.bf16.mxu0 %v2470
        %2597 = vmatmul.mubr.bf16.gmra.mrb[0].mxu0 %v2335
        %v2598 = vpop.f32.mrb[0].mxu0
        %v2599 = vadd.f32 %v2317, %v2598
        %v2600 = vpop.f32.mrb[0].mxu0
        %v2601 = vpop.f32.mrb[0].mxu0
        %v2602 = vadd.f32 %v2317, %v2601
        %v2603 = vpop.f32.mrb[0].mxu0
        %2604 = vmatprep.mubr.bf16.mxu0 %v2473
        %2605 = vmatmul.mubr.bf16.gmra.mrb[0].mxu0 %v2337
        %v2606 = vpop.f32.mrb[0].mxu0
        %v2607 = vadd.f32 %v2317, %v2606
        %v2608 = vpop.f32.mrb[0].mxu0
        %v2609 = vpop.f32.mrb[0].mxu0
        %v2610 = vadd.f32 %v2317, %v2609
        %v2611 = vpop.f32.mrb[0].mxu0
        %2612 = vmatprep.mubr.bf16.mxu0 %v2476
        %2613 = vmatmul.mubr.bf16.gmra.mrb[0].mxu0 %v2339
        %v2614 = vpop.f32.mrb[0].mxu0
        %v2615 = vadd.f32 %v2317, %v2614
        %v2616 = vpop.f32.mrb[0].mxu0
        %v2617 = vpop.f32.mrb[0].mxu0
        %v2618 = vadd.f32 %v2317, %v2617
        %v2619 = vpop.f32.mrb[0].mxu0
        %2620 = vmatprep.mubr.bf16.mxu0 %v2479
        %2621 = vmatmul.mubr.bf16.gmra.mrb[0].mxu0 %v2341
        %v2622 = vpop.f32.mrb[0].mxu0
        %v2623 = vadd.f32 %v2317, %v2622
        %v2624 = vpop.f32.mrb[0].mxu0
        %v2625 = vpop.f32.mrb[0].mxu0
        %v2626 = vadd.f32 %v2317, %v2625
        %v2627 = vpop.f32.mrb[0].mxu0
        %2628 = vmatprep.mubr.bf16.mxu0 %v2482
        %2629 = vmatmul.mubr.bf16.gmra.mrb[0].mxu0 %v2343
        %v2630 = vpop.f32.mrb[0].mxu0
        %v2631 = vadd.f32 %v2317, %v2630
        %v2632 = vpop.f32.mrb[0].mxu0
        %v2633 = vpop.f32.mrb[0].mxu0
        %v2634 = vadd.f32 %v2317, %v2633
        %v2635 = vpop.f32.mrb[0].mxu0
        %2636 = vmatprep.mubr.bf16.mxu0 %v2485
        %2637 = vmatmul.mubr.bf16.gmra.mrb[0].mxu0 %v2345
        %v2638 = vpop.f32.mrb[0].mxu0
        %v2639 = vadd.f32 %v2317, %v2638
        %v2640 = vpop.f32.mrb[0].mxu0
        %v2641 = vpop.f32.mrb[0].mxu0
        %v2642 = vadd.f32 %v2317, %v2641
        %v2643 = vpop.f32.mrb[0].mxu0
        %2644 = vmatprep.mubr.bf16.mxu0 %v2488
        %2645 = vmatmul.mubr.bf16.gmra.mrb[0].mxu0 %v2347
        %v2646 = vpop.f32.mrb[0].mxu0
        %v2647 = vadd.f32 %v2317, %v2646
        %v2648 = vpop.f32.mrb[0].mxu0
        %v2649 = vpop.f32.mrb[0].mxu0
        %v2650 = vadd.f32 %v2317, %v2649
        %v2651 = vpop.f32.mrb[0].mxu0
        %2652 = vmatprep.mubr.bf16.mxu0 %v2491
        %2653 = vmatmul.mubr.bf16.gmra.mrb[0].mxu0 %v2349
        %v2654 = vpop.f32.mrb[0].mxu0
        %v2655 = vadd.f32 %v2317, %v2654
        %v2656 = vpop.f32.mrb[0].mxu0
        %v2657 = vpop.f32.mrb[0].mxu0
        %v2658 = vadd.f32 %v2317, %v2657
        %v2659 = vpop.f32.mrb[0].mxu0
        %2660 = vdwg.mxu0
        %vm2661 = vcmp.gt.f32.partialorder %v2535, 0.0
        %vm2662 = vcmp.gt.f32.partialorder %v2538, 0.0
        %vm2663 = vcmp.gt.f32.partialorder %v2543, 0.0
        %vm2664 = vcmp.gt.f32.partialorder %v2546, 0.0
        %vm2665 = vcmp.gt.f32.partialorder %v2551, 0.0
        %vm2666 = vcmp.gt.f32.partialorder %v2554, 0.0
        %vm2667 = vcmp.gt.f32.partialorder %v2559, 0.0
        %vm2668 = vcmp.gt.f32.partialorder %v2562, 0.0
        %vm2669 = vcmp.gt.f32.partialorder %v2567, 0.0
        %vm2670 = vcmp.gt.f32.partialorder %v2570, 0.0
        %vm2671 = vcmp.gt.f32.partialorder %v2575, 0.0
        %vm2672 = vcmp.gt.f32.partialorder %v2578, 0.0
        %vm2673 = vcmp.gt.f32.partialorder %v2583, 0.0
        %vm2674 = vcmp.gt.f32.partialorder %v2586, 0.0
        %vm2675 = vcmp.gt.f32.partialorder %v2591, 0.0
        %vm2676 = vcmp.gt.f32.partialorder %v2594, 0.0
        %vm2677 = vcmp.gt.f32.partialorder %v2599, 0.0
        %vm2678 = vcmp.gt.f32.partialorder %v2602, 0.0
        %vm2679 = vcmp.gt.f32.partialorder %v2607, 0.0
        %vm2680 = vcmp.gt.f32.partialorder %v2610, 0.0
        %vm2681 = vcmp.gt.f32.partialorder %v2615, 0.0
        %vm2682 = vcmp.gt.f32.partialorder %v2618, 0.0
        %vm2683 = vcmp.gt.f32.partialorder %v2623, 0.0
        %vm2684 = vcmp.gt.f32.partialorder %v2626, 0.0
        %vm2685 = vcmp.gt.f32.partialorder %v2631, 0.0
        %vm2686 = vcmp.gt.f32.partialorder %v2634, 0.0
        %vm2687 = vcmp.gt.f32.partialorder %v2639, 0.0
        %vm2688 = vcmp.gt.f32.partialorder %v2642, 0.0
        %vm2689 = vcmp.gt.f32.partialorder %v2647, 0.0
        %vm2690 = vcmp.gt.f32.partialorder %v2650, 0.0
        %vm2691 = vcmp.gt.f32.partialorder %v2655, 0.0
        %vm2692 = vcmp.gt.f32.partialorder %v2658, 0.0
        %v2693 = vmul.f32 %v2535, 1.442695
        %v2694 = vpow.pop %v2693
        %v2695 = vmul.f32 %v2538, 1.442695
        %v2696 = vpow.pop %v2695
        %v2697 = vmul.f32 %v2543, 1.442695
        %v2698 = vpow.pop %v2697
        %v2699 = vmul.f32 %v2546, 1.442695
        %v2700 = vpow.pop %v2699
        %v2701 = vmul.f32 %v2551, 1.442695
        %v2702 = vpow.pop %v2701
        %v2703 = vmul.f32 %v2554, 1.442695
        %v2704 = vpow.pop %v2703
        %v2705 = vmul.f32 %v2559, 1.442695
        %v2706 = vpow.pop %v2705
        %v2707 = vmul.f32 %v2562, 1.442695
        %v2708 = vpow.pop %v2707
        %v2709 = vmul.f32 %v2567, 1.442695
        %v2710 = vpow.pop %v2709
        %v2711 = vmul.f32 %v2570, 1.442695
        %v2712 = vpow.pop %v2711
        %v2713 = vmul.f32 %v2575, 1.442695
        %v2714 = vpow.pop %v2713
        %v2715 = vmul.f32 %v2578, 1.442695
        %v2716 = vpow.pop %v2715
        %v2717 = vmul.f32 %v2583, 1.442695
        %v2718 = vpow.pop %v2717
        %v2719 = vmul.f32 %v2586, 1.442695
        %v2720 = vpow.pop %v2719
        %v2721 = vmul.f32 %v2591, 1.442695
        %v2722 = vpow.pop %v2721
        %v2723 = vmul.f32 %v2594, 1.442695
        %v2724 = vpow.pop %v2723
        %v2725 = vmul.f32 %v2599, 1.442695
        %v2726 = vpow.pop %v2725
        %v2727 = vmul.f32 %v2602, 1.442695
        %v2728 = vpow.pop %v2727
        %v2729 = vmul.f32 %v2607, 1.442695
        %v2730 = vpow.pop %v2729
        %v2731 = vmul.f32 %v2610, 1.442695
        %v2732 = vpow.pop %v2731
        %v2733 = vmul.f32 %v2615, 1.442695
        %v2734 = vpow.pop %v2733
        %v2735 = vmul.f32 %v2618, 1.442695
        %v2736 = vpow.pop %v2735
        %v2737 = vmul.f32 %v2623, 1.442695
        %v2738 = vpow.pop %v2737
        %v2739 = vmul.f32 %v2626, 1.442695
        %v2740 = vpow.pop %v2739
        %v2741 = vmul.f32 %v2631, 1.442695
        %v2742 = vpow.pop %v2741
        %v2743 = vmul.f32 %v2634, 1.442695
        %v2744 = vpow.pop %v2743
        %v2745 = vmul.f32 %v2639, 1.442695
        %v2746 = vpow.pop %v2745
        %v2747 = vmul.f32 %v2642, 1.442695
        %v2748 = vpow.pop %v2747
        %v2749 = vmul.f32 %v2647, 1.442695
        %v2750 = vpow.pop %v2749
        %v2751 = vmul.f32 %v2650, 1.442695
        %v2752 = vpow.pop %v2751
        %v2753 = vmul.f32 %v2655, 1.442695
        %v2754 = vpow.pop %v2753
        %v2755 = vmul.f32 %v2658, 1.442695
        %v2756 = vpow.pop %v2755
        %v2757 = vsub.f32 %v2694, 1.0
        %v2758 = vsub.f32 %v2696, 1.0
        %v2759 = vsub.f32 %v2698, 1.0
        %v2760 = vsub.f32 %v2700, 1.0
        %v2761 = vsub.f32 %v2702, 1.0
        %v2762 = vsub.f32 %v2704, 1.0
        %v2763 = vsub.f32 %v2706, 1.0
        %v2764 = vsub.f32 %v2708, 1.0
        %v2765 = vsub.f32 %v2710, 1.0
        %v2766 = vsub.f32 %v2712, 1.0
        %v2767 = vsub.f32 %v2714, 1.0
        %v2768 = vsub.f32 %v2716, 1.0
        %v2769 = vsub.f32 %v2718, 1.0
        %v2770 = vsub.f32 %v2720, 1.0
        %v2771 = vsub.f32 %v2722, 1.0
        %v2772 = vsub.f32 %v2724, 1.0
        %v2773 = vsub.f32 %v2726, 1.0
        %v2774 = vsub.f32 %v2728, 1.0
        %v2775 = vsub.f32 %v2730, 1.0
        %v2776 = vsub.f32 %v2732, 1.0
        %v2777 = vsub.f32 %v2734, 1.0
        %v2778 = vsub.f32 %v2736, 1.0
        %v2779 = vsub.f32 %v2738, 1.0
        %v2780 = vsub.f32 %v2740, 1.0
        %v2781 = vsub.f32 %v2742, 1.0
        %v2782 = vsub.f32 %v2744, 1.0
        %v2783 = vsub.f32 %v2746, 1.0
        %v2784 = vsub.f32 %v2748, 1.0
        %v2785 = vsub.f32 %v2750, 1.0
        %v2786 = vsub.f32 %v2752, 1.0
        %v2787 = vsub.f32 %v2754, 1.0
        %v2788 = vsub.f32 %v2756, 1.0
        %v2789 = vmul.f32 %v2757, 1.6732632
        %v2790 = vmul.f32 %v2758, 1.6732632
        %v2791 = vmul.f32 %v2759, 1.6732632
        %v2792 = vmul.f32 %v2760, 1.6732632
        %v2793 = vmul.f32 %v2761, 1.6732632
        %v2794 = vmul.f32 %v2762, 1.6732632
        %v2795 = vmul.f32 %v2763, 1.6732632
        %v2796 = vmul.f32 %v2764, 1.6732632
        %v2797 = vmul.f32 %v2765, 1.6732632
        %v2798 = vmul.f32 %v2766, 1.6732632
        %v2799 = vmul.f32 %v2767, 1.6732632
        %v2800 = vmul.f32 %v2768, 1.6732632
        %v2801 = vmul.f32 %v2769, 1.6732632
        %v2802 = vmul.f32 %v2770, 1.6732632
        %v2803 = vmul.f32 %v2771, 1.6732632
        %v2804 = vmul.f32 %v2772, 1.6732632
        %v2805 = vmul.f32 %v2773, 1.6732632
        %v2806 = vmul.f32 %v2774, 1.6732632
        %v2807 = vmul.f32 %v2775, 1.6732632
        %v2808 = vmul.f32 %v2776, 1.6732632
        %v2809 = vmul.f32 %v2777, 1.6732632
        %v2810 = vmul.f32 %v2778, 1.6732632
        %v2811 = vmul.f32 %v2779, 1.6732632
        %v2812 = vmul.f32 %v2780, 1.6732632
        %v2813 = vmul.f32 %v2781, 1.6732632
        %v2814 = vmul.f32 %v2782, 1.6732632
        %v2815 = vmul.f32 %v2783, 1.6732632
        %v2816 = vmul.f32 %v2784, 1.6732632
        %v2817 = vmul.f32 %v2785, 1.6732632
        %v2818 = vmul.f32 %v2786, 1.6732632
        %v2819 = vmul.f32 %v2787, 1.6732632
        %v2820 = vmul.f32 %v2788, 1.6732632
        %v2821 = vsel %vm2661, %v2535, %v2789
        %v2822 = vsel %vm2662, %v2538, %v2790
        %v2823 = vsel %vm2663, %v2543, %v2791
        %v2824 = vsel %vm2664, %v2546, %v2792
        %v2825 = vsel %vm2665, %v2551, %v2793
        %v2826 = vsel %vm2666, %v2554, %v2794
        %v2827 = vsel %vm2667, %v2559, %v2795
        %v2828 = vsel %vm2668, %v2562, %v2796
        %v2829 = vsel %vm2669, %v2567, %v2797
        %v2830 = vsel %vm2670, %v2570, %v2798
        %v2831 = vsel %vm2671, %v2575, %v2799
        %v2832 = vsel %vm2672, %v2578, %v2800
        %v2833 = vsel %vm2673, %v2583, %v2801
        %v2834 = vsel %vm2674, %v2586, %v2802
        %v2835 = vsel %vm2675, %v2591, %v2803
        %v2836 = vsel %vm2676, %v2594, %v2804
        %v2837 = vsel %vm2677, %v2599, %v2805
        %v2838 = vsel %vm2678, %v2602, %v2806
        %v2839 = vsel %vm2679, %v2607, %v2807
        %v2840 = vsel %vm2680, %v2610, %v2808
        %v2841 = vsel %vm2681, %v2615, %v2809
        %v2842 = vsel %vm2682, %v2618, %v2810
        %v2843 = vsel %vm2683, %v2623, %v2811
        %v2844 = vsel %vm2684, %v2626, %v2812
        %v2845 = vsel %vm2685, %v2631, %v2813
        %v2846 = vsel %vm2686, %v2634, %v2814
        %v2847 = vsel %vm2687, %v2639, %v2815
        %v2848 = vsel %vm2688, %v2642, %v2816
        %v2849 = vsel %vm2689, %v2647, %v2817
        %v2850 = vsel %vm2690, %v2650, %v2818
        %v2851 = vsel %vm2691, %v2655, %v2819
        %v2852 = vsel %vm2692, %v2658, %v2820
        %v2853 = vmul.f32 %v2821, 1.050701
        %v2854 = vmul.f32 %v2822, 1.050701
        %v2855 = vmul.f32 %v2823, 1.050701
        %v2856 = vmul.f32 %v2824, 1.050701
        %v2857 = vmul.f32 %v2825, 1.050701
        %v2858 = vmul.f32 %v2826, 1.050701
        %v2859 = vmul.f32 %v2827, 1.050701
        %v2860 = vmul.f32 %v2828, 1.050701
        %v2861 = vmul.f32 %v2829, 1.050701
        %v2862 = vmul.f32 %v2830, 1.050701
        %v2863 = vmul.f32 %v2831, 1.050701
        %v2864 = vmul.f32 %v2832, 1.050701
        %v2865 = vmul.f32 %v2833, 1.050701
        %v2866 = vmul.f32 %v2834, 1.050701
        %v2867 = vmul.f32 %v2835, 1.050701
        %v2868 = vmul.f32 %v2836, 1.050701
        %v2869 = vmul.f32 %v2837, 1.050701
        %v2870 = vmul.f32 %v2838, 1.050701
        %v2871 = vmul.f32 %v2839, 1.050701
        %v2872 = vmul.f32 %v2840, 1.050701
        %v2873 = vmul.f32 %v2841, 1.050701
        %v2874 = vmul.f32 %v2842, 1.050701
        %v2875 = vmul.f32 %v2843, 1.050701
        %v2876 = vmul.f32 %v2844, 1.050701
        %v2877 = vmul.f32 %v2845, 1.050701
        %v2878 = vmul.f32 %v2846, 1.050701
        %v2879 = vmul.f32 %v2847, 1.050701
        %v2880 = vmul.f32 %v2848, 1.050701
        %v2881 = vmul.f32 %v2849, 1.050701
        %v2882 = vmul.f32 %v2850, 1.050701
        %v2883 = vmul.f32 %v2851, 1.050701
        %v2884 = vmul.f32 %v2852, 1.050701
        %v2885 = vpack.c.bf16 %v2853, %v2853
        %v2886 = vpack.c.bf16 %v2854, %v2854
        %v2887 = vpack.c.bf16 %v2855, %v2855
        %v2888 = vpack.c.bf16 %v2856, %v2856
        %v2889 = vpack.c.bf16 %v2857, %v2857
        %v2890 = vpack.c.bf16 %v2858, %v2858
        %v2891 = vpack.c.bf16 %v2859, %v2859
        %v2892 = vpack.c.bf16 %v2860, %v2860
        %v2893 = vpack.c.bf16 %v2861, %v2861
        %v2894 = vpack.c.bf16 %v2862, %v2862
        %v2895 = vpack.c.bf16 %v2863, %v2863
        %v2896 = vpack.c.bf16 %v2864, %v2864
        %v2897 = vpack.c.bf16 %v2865, %v2865
        %v2898 = vpack.c.bf16 %v2866, %v2866
        %v2899 = vpack.c.bf16 %v2867, %v2867
        %v2900 = vpack.c.bf16 %v2868, %v2868
        %v2901 = vpack.c.bf16 %v2869, %v2869
        %v2902 = vpack.c.bf16 %v2870, %v2870
        %v2903 = vpack.c.bf16 %v2871, %v2871
        %v2904 = vpack.c.bf16 %v2872, %v2872
        %v2905 = vpack.c.bf16 %v2873, %v2873
        %v2906 = vpack.c.bf16 %v2874, %v2874
        %v2907 = vpack.c.bf16 %v2875, %v2875
        %v2908 = vpack.c.bf16 %v2876, %v2876
        %v2909 = vpack.c.bf16 %v2877, %v2877
        %v2910 = vpack.c.bf16 %v2878, %v2878
        %v2911 = vpack.c.bf16 %v2879, %v2879
        %v2912 = vpack.c.bf16 %v2880, %v2880
        %v2913 = vpack.c.bf16 %v2881, %v2881
        %v2914 = vpack.c.bf16 %v2882, %v2882
        %v2915 = vpack.c.bf16 %v2883, %v2883
        %v2916 = vpack.c.bf16 %v2884, %v2884
        %v2918 = vshrl.u32 %v2885, 16
        %v2920 = vshll.u32 %v2885, 16
        %v2922 = vrot.slane %v2920, 1
        %v2923 = vor.u32 %v2918, %v2922
        %v2925 = vshrl.u32 %v2886, 16
        %v2927 = vshll.u32 %v2886, 16
        %v2929 = vrot.slane %v2927, 1
        %v2930 = vor.u32 %v2925, %v2929
        %v2932 = vshrl.u32 %v2887, 16
        %v2934 = vshll.u32 %v2887, 16
        %v2936 = vrot.slane %v2934, 1
        %v2937 = vor.u32 %v2932, %v2936
        %v2939 = vshrl.u32 %v2888, 16
        %v2941 = vshll.u32 %v2888, 16
        %v2943 = vrot.slane %v2941, 1
        %v2944 = vor.u32 %v2939, %v2943
        %v2946 = vshrl.u32 %v2889, 16
        %v2948 = vshll.u32 %v2889, 16
        %v2950 = vrot.slane %v2948, 1
        %v2951 = vor.u32 %v2946, %v2950
        %v2953 = vshrl.u32 %v2890, 16
        %v2955 = vshll.u32 %v2890, 16
        %v2957 = vrot.slane %v2955, 1
        %v2958 = vor.u32 %v2953, %v2957
        %v2960 = vshrl.u32 %v2891, 16
        %v2962 = vshll.u32 %v2891, 16
        %v2964 = vrot.slane %v2962, 1
        %v2965 = vor.u32 %v2960, %v2964
        %v2967 = vshrl.u32 %v2892, 16
        %v2969 = vshll.u32 %v2892, 16
        %v2971 = vrot.slane %v2969, 1
        %v2972 = vor.u32 %v2967, %v2971
        %v2974 = vshrl.u32 %v2893, 16
        %v2976 = vshll.u32 %v2893, 16
        %v2978 = vrot.slane %v2976, 1
        %v2979 = vor.u32 %v2974, %v2978
        %v2981 = vshrl.u32 %v2894, 16
        %v2983 = vshll.u32 %v2894, 16
        %v2985 = vrot.slane %v2983, 1
        %v2986 = vor.u32 %v2981, %v2985
        %v2988 = vshrl.u32 %v2895, 16
        %v2990 = vshll.u32 %v2895, 16
        %v2992 = vrot.slane %v2990, 1
        %v2993 = vor.u32 %v2988, %v2992
        %v2995 = vshrl.u32 %v2896, 16
        %v2997 = vshll.u32 %v2896, 16
        %v2999 = vrot.slane %v2997, 1
        %v3000 = vor.u32 %v2995, %v2999
        %v3002 = vshrl.u32 %v2897, 16
        %v3004 = vshll.u32 %v2897, 16
        %v3006 = vrot.slane %v3004, 1
        %v3007 = vor.u32 %v3002, %v3006
        %v3009 = vshrl.u32 %v2898, 16
        %v3011 = vshll.u32 %v2898, 16
        %v3013 = vrot.slane %v3011, 1
        %v3014 = vor.u32 %v3009, %v3013
        %v3016 = vshrl.u32 %v2899, 16
        %v3018 = vshll.u32 %v2899, 16
        %v3020 = vrot.slane %v3018, 1
        %v3021 = vor.u32 %v3016, %v3020
        %v3023 = vshrl.u32 %v2900, 16
        %v3025 = vshll.u32 %v2900, 16
        %v3027 = vrot.slane %v3025, 1
        %v3028 = vor.u32 %v3023, %v3027
        %v3030 = vshrl.u32 %v2901, 16
        %v3032 = vshll.u32 %v2901, 16
        %v3034 = vrot.slane %v3032, 1
        %v3035 = vor.u32 %v3030, %v3034
        %v3037 = vshrl.u32 %v2902, 16
        %v3039 = vshll.u32 %v2902, 16
        %v3041 = vrot.slane %v3039, 1
        %v3042 = vor.u32 %v3037, %v3041
        %v3044 = vshrl.u32 %v2903, 16
        %v3046 = vshll.u32 %v2903, 16
        %v3048 = vrot.slane %v3046, 1
        %v3049 = vor.u32 %v3044, %v3048
        %v3051 = vshrl.u32 %v2904, 16
        %v3053 = vshll.u32 %v2904, 16
        %v3055 = vrot.slane %v3053, 1
        %v3056 = vor.u32 %v3051, %v3055
        %v3058 = vshrl.u32 %v2905, 16
        %v3060 = vshll.u32 %v2905, 16
        %v3062 = vrot.slane %v3060, 1
        %v3063 = vor.u32 %v3058, %v3062
        %v3065 = vshrl.u32 %v2906, 16
        %v3067 = vshll.u32 %v2906, 16
        %v3069 = vrot.slane %v3067, 1
        %v3070 = vor.u32 %v3065, %v3069
        %v3072 = vshrl.u32 %v2907, 16
        %v3074 = vshll.u32 %v2907, 16
        %v3076 = vrot.slane %v3074, 1
        %v3077 = vor.u32 %v3072, %v3076
        %v3079 = vshrl.u32 %v2908, 16
        %v3081 = vshll.u32 %v2908, 16
        %v3083 = vrot.slane %v3081, 1
        %v3084 = vor.u32 %v3079, %v3083
        %v3086 = vshrl.u32 %v2909, 16
        %v3088 = vshll.u32 %v2909, 16
        %v3090 = vrot.slane %v3088, 1
        %v3091 = vor.u32 %v3086, %v3090
        %v3093 = vshrl.u32 %v2910, 16
        %v3095 = vshll.u32 %v2910, 16
        %v3097 = vrot.slane %v3095, 1
        %v3098 = vor.u32 %v3093, %v3097
        %v3100 = vshrl.u32 %v2911, 16
        %v3102 = vshll.u32 %v2911, 16
        %v3104 = vrot.slane %v3102, 1
        %v3105 = vor.u32 %v3100, %v3104
        %v3107 = vshrl.u32 %v2912, 16
        %v3109 = vshll.u32 %v2912, 16
        %v3111 = vrot.slane %v3109, 1
        %v3112 = vor.u32 %v3107, %v3111
        %v3114 = vshrl.u32 %v2913, 16
        %v3116 = vshll.u32 %v2913, 16
        %v3118 = vrot.slane %v3116, 1
        %v3119 = vor.u32 %v3114, %v3118
        %v3121 = vshrl.u32 %v2914, 16
        %v3123 = vshll.u32 %v2914, 16
        %v3125 = vrot.slane %v3123, 1
        %v3126 = vor.u32 %v3121, %v3125
        %v3128 = vshrl.u32 %v2915, 16
        %v3130 = vshll.u32 %v2915, 16
        %v3132 = vrot.slane %v3130, 1
        %v3133 = vor.u32 %v3128, %v3132
        %v3135 = vshrl.u32 %v2916, 16
        %v3137 = vshll.u32 %v2916, 16
        %v3139 = vrot.slane %v3137, 1
        %v3140 = vor.u32 %v3135, %v3139
        %v3173 = vrot.slane %v2885, 1
        %v3174 = vrot.slane %v2886, 1
        %v3175 = vrot.slane %v2887, 1
        %v3176 = vrot.slane %v2888, 1
        %v3177 = vrot.slane %v2889, 1
        %v3178 = vrot.slane %v2890, 1
        %v3179 = vrot.slane %v2891, 1
        %v3180 = vrot.slane %v2892, 1
        %v3181 = vrot.slane %v2893, 1
        %v3182 = vrot.slane %v2894, 1
        %v3183 = vrot.slane %v2895, 1
        %v3184 = vrot.slane %v2896, 1
        %v3185 = vrot.slane %v2897, 1
        %v3186 = vrot.slane %v2898, 1
        %v3187 = vrot.slane %v2899, 1
        %v3188 = vrot.slane %v2900, 1
        %v3189 = vrot.slane %v2901, 1
        %v3190 = vrot.slane %v2902, 1
        %v3191 = vrot.slane %v2903, 1
        %v3192 = vrot.slane %v2904, 1
        %v3193 = vrot.slane %v2905, 1
        %v3194 = vrot.slane %v2906, 1
        %v3195 = vrot.slane %v2907, 1
        %v3196 = vrot.slane %v2908, 1
        %v3197 = vrot.slane %v2909, 1
        %v3198 = vrot.slane %v2910, 1
        %v3199 = vrot.slane %v2911, 1
        %v3200 = vrot.slane %v2912, 1
        %v3201 = vrot.slane %v2913, 1
        %v3202 = vrot.slane %v2914, 1
        %v3203 = vrot.slane %v2915, 1
        %v3204 = vrot.slane %v2916, 1
        %v3205 = vcombine.low %v2885, %v2923
        %v3207 = vunpack.c.l.s4 1966171168
        %v3208 = vunpack.c.0.s8 %v3207
        %v3209 = vlaneseq
        %v3210 = vshrl.u32 %v3209, 7
        %v3211 = vsub.s32 %v3208, %v3210
        %v3212 = vrot.slane %v3205, %v3211
        %v3214 = vunpack.c.l.s4 1966171168
        %v3215 = vunpack.c.0.s8 %v3214
        %v3216 = vlaneseq
        %v3217 = vshrl.u32 %v3216, 7
        %v3218 = vsub.s32 %v3215, %v3217
        %v3219 = vrot.slane %v3173, %v3218
        %v3220 = vcombine.low %v3212, %v3219
        %v3221 = vcombine.high %v3212, %v3219
        %v3223 = vunpack.c.l.s4 1966171168
        %v3224 = vunpack.c.0.s8 %v3223
        %v3225 = vlaneseq
        %v3226 = vshrl.u32 %v3225, 7
        %v3227 = vsub.s32 %v3224, %v3226
        %v3228 = vrot.slane %v3220, %v3227
        %v3230 = vunpack.c.l.s4 1966171168
        %v3231 = vunpack.c.0.s8 %v3230
        %v3232 = vlaneseq
        %v3233 = vshrl.u32 %v3232, 7
        %v3234 = vsub.s32 %v3231, %v3233
        %v3235 = vrot.slane %v3221, %v3234
        %v3236 = vcombine.high %v3228, %v3228
        %v3237 = vcombine.low %v2886, %v2930
        %v3239 = vunpack.c.l.s4 1966171168
        %v3240 = vunpack.c.0.s8 %v3239
        %v3241 = vlaneseq
        %v3242 = vshrl.u32 %v3241, 7
        %v3243 = vsub.s32 %v3240, %v3242
        %v3244 = vrot.slane %v3237, %v3243
        %v3246 = vunpack.c.l.s4 1966171168
        %v3247 = vunpack.c.0.s8 %v3246
        %v3248 = vlaneseq
        %v3249 = vshrl.u32 %v3248, 7
        %v3250 = vsub.s32 %v3247, %v3249
        %v3251 = vrot.slane %v3174, %v3250
        %v3252 = vcombine.low %v3244, %v3251
        %v3253 = vcombine.high %v3244, %v3251
        %v3255 = vunpack.c.l.s4 1966171168
        %v3256 = vunpack.c.0.s8 %v3255
        %v3257 = vlaneseq
        %v3258 = vshrl.u32 %v3257, 7
        %v3259 = vsub.s32 %v3256, %v3258
        %v3260 = vrot.slane %v3252, %v3259
        %v3262 = vunpack.c.l.s4 1966171168
        %v3263 = vunpack.c.0.s8 %v3262
        %v3264 = vlaneseq
        %v3265 = vshrl.u32 %v3264, 7
        %v3266 = vsub.s32 %v3263, %v3265
        %v3267 = vrot.slane %v3253, %v3266
        %v3268 = vcombine.high %v3260, %v3260
        %v3269 = vcombine.low %v2887, %v2937
        %v3271 = vunpack.c.l.s4 1966171168
        %v3272 = vunpack.c.0.s8 %v3271
        %v3273 = vlaneseq
        %v3274 = vshrl.u32 %v3273, 7
        %v3275 = vsub.s32 %v3272, %v3274
        %v3276 = vrot.slane %v3269, %v3275
        %v3278 = vunpack.c.l.s4 1966171168
        %v3279 = vunpack.c.0.s8 %v3278
        %v3280 = vlaneseq
        %v3281 = vshrl.u32 %v3280, 7
        %v3282 = vsub.s32 %v3279, %v3281
        %v3283 = vrot.slane %v3175, %v3282
        %v3284 = vcombine.low %v3276, %v3283
        %v3285 = vcombine.high %v3276, %v3283
        %v3287 = vunpack.c.l.s4 1966171168
        %v3288 = vunpack.c.0.s8 %v3287
        %v3289 = vlaneseq
        %v3290 = vshrl.u32 %v3289, 7
        %v3291 = vsub.s32 %v3288, %v3290
        %v3292 = vrot.slane %v3284, %v3291
        %v3294 = vunpack.c.l.s4 1966171168
        %v3295 = vunpack.c.0.s8 %v3294
        %v3296 = vlaneseq
        %v3297 = vshrl.u32 %v3296, 7
        %v3298 = vsub.s32 %v3295, %v3297
        %v3299 = vrot.slane %v3285, %v3298
        %v3300 = vcombine.high %v3292, %v3292
        %v3301 = vcombine.low %v2888, %v2944
        %v3303 = vunpack.c.l.s4 1966171168
        %v3304 = vunpack.c.0.s8 %v3303
        %v3305 = vlaneseq
        %v3306 = vshrl.u32 %v3305, 7
        %v3307 = vsub.s32 %v3304, %v3306
        %v3308 = vrot.slane %v3301, %v3307
        %v3310 = vunpack.c.l.s4 1966171168
        %v3311 = vunpack.c.0.s8 %v3310
        %v3312 = vlaneseq
        %v3313 = vshrl.u32 %v3312, 7
        %v3314 = vsub.s32 %v3311, %v3313
        %v3315 = vrot.slane %v3176, %v3314
        %v3316 = vcombine.low %v3308, %v3315
        %v3317 = vcombine.high %v3308, %v3315
        %v3319 = vunpack.c.l.s4 1966171168
        %v3320 = vunpack.c.0.s8 %v3319
        %v3321 = vlaneseq
        %v3322 = vshrl.u32 %v3321, 7
        %v3323 = vsub.s32 %v3320, %v3322
        %v3324 = vrot.slane %v3316, %v3323
        %v3326 = vunpack.c.l.s4 1966171168
        %v3327 = vunpack.c.0.s8 %v3326
        %v3328 = vlaneseq
        %v3329 = vshrl.u32 %v3328, 7
        %v3330 = vsub.s32 %v3327, %v3329
        %v3331 = vrot.slane %v3317, %v3330
        %v3332 = vcombine.high %v3324, %v3324
        %v3333 = vcombine.low %v2889, %v2951
        %v3335 = vunpack.c.l.s4 1966171168
        %v3336 = vunpack.c.0.s8 %v3335
        %v3337 = vlaneseq
        %v3338 = vshrl.u32 %v3337, 7
        %v3339 = vsub.s32 %v3336, %v3338
        %v3340 = vrot.slane %v3333, %v3339
        %v3342 = vunpack.c.l.s4 1966171168
        %v3343 = vunpack.c.0.s8 %v3342
        %v3344 = vlaneseq
        %v3345 = vshrl.u32 %v3344, 7
        %v3346 = vsub.s32 %v3343, %v3345
        %v3347 = vrot.slane %v3177, %v3346
        %v3348 = vcombine.low %v3340, %v3347
        %v3349 = vcombine.high %v3340, %v3347
        %v3351 = vunpack.c.l.s4 1966171168
        %v3352 = vunpack.c.0.s8 %v3351
        %v3353 = vlaneseq
        %v3354 = vshrl.u32 %v3353, 7
        %v3355 = vsub.s32 %v3352, %v3354
        %v3356 = vrot.slane %v3348, %v3355
        %v3358 = vunpack.c.l.s4 1966171168
        %v3359 = vunpack.c.0.s8 %v3358
        %v3360 = vlaneseq
        %v3361 = vshrl.u32 %v3360, 7
        %v3362 = vsub.s32 %v3359, %v3361
        %v3363 = vrot.slane %v3349, %v3362
        %v3364 = vcombine.high %v3356, %v3356
        %v3365 = vcombine.low %v2890, %v2958
        %v3367 = vunpack.c.l.s4 1966171168
        %v3368 = vunpack.c.0.s8 %v3367
        %v3369 = vlaneseq
        %v3370 = vshrl.u32 %v3369, 7
        %v3371 = vsub.s32 %v3368, %v3370
        %v3372 = vrot.slane %v3365, %v3371
        %v3374 = vunpack.c.l.s4 1966171168
        %v3375 = vunpack.c.0.s8 %v3374
        %v3376 = vlaneseq
        %v3377 = vshrl.u32 %v3376, 7
        %v3378 = vsub.s32 %v3375, %v3377
        %v3379 = vrot.slane %v3178, %v3378
        %v3380 = vcombine.low %v3372, %v3379
        %v3381 = vcombine.high %v3372, %v3379
        %v3383 = vunpack.c.l.s4 1966171168
        %v3384 = vunpack.c.0.s8 %v3383
        %v3385 = vlaneseq
        %v3386 = vshrl.u32 %v3385, 7
        %v3387 = vsub.s32 %v3384, %v3386
        %v3388 = vrot.slane %v3380, %v3387
        %v3390 = vunpack.c.l.s4 1966171168
        %v3391 = vunpack.c.0.s8 %v3390
        %v3392 = vlaneseq
        %v3393 = vshrl.u32 %v3392, 7
        %v3394 = vsub.s32 %v3391, %v3393
        %v3395 = vrot.slane %v3381, %v3394
        %v3396 = vcombine.high %v3388, %v3388
        %v3397 = vcombine.low %v2891, %v2965
        %v3399 = vunpack.c.l.s4 1966171168
        %v3400 = vunpack.c.0.s8 %v3399
        %v3401 = vlaneseq
        %v3402 = vshrl.u32 %v3401, 7
        %v3403 = vsub.s32 %v3400, %v3402
        %v3404 = vrot.slane %v3397, %v3403
        %v3406 = vunpack.c.l.s4 1966171168
        %v3407 = vunpack.c.0.s8 %v3406
        %v3408 = vlaneseq
        %v3409 = vshrl.u32 %v3408, 7
        %v3410 = vsub.s32 %v3407, %v3409
        %v3411 = vrot.slane %v3179, %v3410
        %v3412 = vcombine.low %v3404, %v3411
        %v3413 = vcombine.high %v3404, %v3411
        %v3415 = vunpack.c.l.s4 1966171168
        %v3416 = vunpack.c.0.s8 %v3415
        %v3417 = vlaneseq
        %v3418 = vshrl.u32 %v3417, 7
        %v3419 = vsub.s32 %v3416, %v3418
        %v3420 = vrot.slane %v3412, %v3419
        %v3422 = vunpack.c.l.s4 1966171168
        %v3423 = vunpack.c.0.s8 %v3422
        %v3424 = vlaneseq
        %v3425 = vshrl.u32 %v3424, 7
        %v3426 = vsub.s32 %v3423, %v3425
        %v3427 = vrot.slane %v3413, %v3426
        %v3428 = vcombine.high %v3420, %v3420
        %v3429 = vcombine.low %v2892, %v2972
        %v3431 = vunpack.c.l.s4 1966171168
        %v3432 = vunpack.c.0.s8 %v3431
        %v3433 = vlaneseq
        %v3434 = vshrl.u32 %v3433, 7
        %v3435 = vsub.s32 %v3432, %v3434
        %v3436 = vrot.slane %v3429, %v3435
        %v3438 = vunpack.c.l.s4 1966171168
        %v3439 = vunpack.c.0.s8 %v3438
        %v3440 = vlaneseq
        %v3441 = vshrl.u32 %v3440, 7
        %v3442 = vsub.s32 %v3439, %v3441
        %v3443 = vrot.slane %v3180, %v3442
        %v3444 = vcombine.low %v3436, %v3443
        %v3445 = vcombine.high %v3436, %v3443
        %v3447 = vunpack.c.l.s4 1966171168
        %v3448 = vunpack.c.0.s8 %v3447
        %v3449 = vlaneseq
        %v3450 = vshrl.u32 %v3449, 7
        %v3451 = vsub.s32 %v3448, %v3450
        %v3452 = vrot.slane %v3444, %v3451
        %v3454 = vunpack.c.l.s4 1966171168
        %v3455 = vunpack.c.0.s8 %v3454
        %v3456 = vlaneseq
        %v3457 = vshrl.u32 %v3456, 7
        %v3458 = vsub.s32 %v3455, %v3457
        %v3459 = vrot.slane %v3445, %v3458
        %v3460 = vcombine.high %v3452, %v3452
        %v3461 = vcombine.low %v2893, %v2979
        %v3463 = vunpack.c.l.s4 1966171168
        %v3464 = vunpack.c.0.s8 %v3463
        %v3465 = vlaneseq
        %v3466 = vshrl.u32 %v3465, 7
        %v3467 = vsub.s32 %v3464, %v3466
        %v3468 = vrot.slane %v3461, %v3467
        %v3470 = vunpack.c.l.s4 1966171168
        %v3471 = vunpack.c.0.s8 %v3470
        %v3472 = vlaneseq
        %v3473 = vshrl.u32 %v3472, 7
        %v3474 = vsub.s32 %v3471, %v3473
        %v3475 = vrot.slane %v3181, %v3474
        %v3476 = vcombine.low %v3468, %v3475
        %v3477 = vcombine.high %v3468, %v3475
        %v3479 = vunpack.c.l.s4 1966171168
        %v3480 = vunpack.c.0.s8 %v3479
        %v3481 = vlaneseq
        %v3482 = vshrl.u32 %v3481, 7
        %v3483 = vsub.s32 %v3480, %v3482
        %v3484 = vrot.slane %v3476, %v3483
        %v3486 = vunpack.c.l.s4 1966171168
        %v3487 = vunpack.c.0.s8 %v3486
        %v3488 = vlaneseq
        %v3489 = vshrl.u32 %v3488, 7
        %v3490 = vsub.s32 %v3487, %v3489
        %v3491 = vrot.slane %v3477, %v3490
        %v3492 = vcombine.high %v3484, %v3484
        %v3493 = vcombine.low %v2894, %v2986
        %v3495 = vunpack.c.l.s4 1966171168
        %v3496 = vunpack.c.0.s8 %v3495
        %v3497 = vlaneseq
        %v3498 = vshrl.u32 %v3497, 7
        %v3499 = vsub.s32 %v3496, %v3498
        %v3500 = vrot.slane %v3493, %v3499
        %v3502 = vunpack.c.l.s4 1966171168
        %v3503 = vunpack.c.0.s8 %v3502
        %v3504 = vlaneseq
        %v3505 = vshrl.u32 %v3504, 7
        %v3506 = vsub.s32 %v3503, %v3505
        %v3507 = vrot.slane %v3182, %v3506
        %v3508 = vcombine.low %v3500, %v3507
        %v3509 = vcombine.high %v3500, %v3507
        %v3511 = vunpack.c.l.s4 1966171168
        %v3512 = vunpack.c.0.s8 %v3511
        %v3513 = vlaneseq
        %v3514 = vshrl.u32 %v3513, 7
        %v3515 = vsub.s32 %v3512, %v3514
        %v3516 = vrot.slane %v3508, %v3515
        %v3518 = vunpack.c.l.s4 1966171168
        %v3519 = vunpack.c.0.s8 %v3518
        %v3520 = vlaneseq
        %v3521 = vshrl.u32 %v3520, 7
        %v3522 = vsub.s32 %v3519, %v3521
        %v3523 = vrot.slane %v3509, %v3522
        %v3524 = vcombine.high %v3516, %v3516
        %v3525 = vcombine.low %v2895, %v2993
        %v3527 = vunpack.c.l.s4 1966171168
        %v3528 = vunpack.c.0.s8 %v3527
        %v3529 = vlaneseq
        %v3530 = vshrl.u32 %v3529, 7
        %v3531 = vsub.s32 %v3528, %v3530
        %v3532 = vrot.slane %v3525, %v3531
        %v3534 = vunpack.c.l.s4 1966171168
        %v3535 = vunpack.c.0.s8 %v3534
        %v3536 = vlaneseq
        %v3537 = vshrl.u32 %v3536, 7
        %v3538 = vsub.s32 %v3535, %v3537
        %v3539 = vrot.slane %v3183, %v3538
        %v3540 = vcombine.low %v3532, %v3539
        %v3541 = vcombine.high %v3532, %v3539
        %v3543 = vunpack.c.l.s4 1966171168
        %v3544 = vunpack.c.0.s8 %v3543
        %v3545 = vlaneseq
        %v3546 = vshrl.u32 %v3545, 7
        %v3547 = vsub.s32 %v3544, %v3546
        %v3548 = vrot.slane %v3540, %v3547
        %v3550 = vunpack.c.l.s4 1966171168
        %v3551 = vunpack.c.0.s8 %v3550
        %v3552 = vlaneseq
        %v3553 = vshrl.u32 %v3552, 7
        %v3554 = vsub.s32 %v3551, %v3553
        %v3555 = vrot.slane %v3541, %v3554
        %v3556 = vcombine.high %v3548, %v3548
        %v3557 = vcombine.low %v2896, %v3000
        %v3559 = vunpack.c.l.s4 1966171168
        %v3560 = vunpack.c.0.s8 %v3559
        %v3561 = vlaneseq
        %v3562 = vshrl.u32 %v3561, 7
        %v3563 = vsub.s32 %v3560, %v3562
        %v3564 = vrot.slane %v3557, %v3563
        %v3566 = vunpack.c.l.s4 1966171168
        %v3567 = vunpack.c.0.s8 %v3566
        %v3568 = vlaneseq
        %v3569 = vshrl.u32 %v3568, 7
        %v3570 = vsub.s32 %v3567, %v3569
        %v3571 = vrot.slane %v3184, %v3570
        %v3572 = vcombine.low %v3564, %v3571
        %v3573 = vcombine.high %v3564, %v3571
        %v3575 = vunpack.c.l.s4 1966171168
        %v3576 = vunpack.c.0.s8 %v3575
        %v3577 = vlaneseq
        %v3578 = vshrl.u32 %v3577, 7
        %v3579 = vsub.s32 %v3576, %v3578
        %v3580 = vrot.slane %v3572, %v3579
        %v3582 = vunpack.c.l.s4 1966171168
        %v3583 = vunpack.c.0.s8 %v3582
        %v3584 = vlaneseq
        %v3585 = vshrl.u32 %v3584, 7
        %v3586 = vsub.s32 %v3583, %v3585
        %v3587 = vrot.slane %v3573, %v3586
        %v3588 = vcombine.high %v3580, %v3580
        %v3589 = vcombine.low %v2897, %v3007
        %v3591 = vunpack.c.l.s4 1966171168
        %v3592 = vunpack.c.0.s8 %v3591
        %v3593 = vlaneseq
        %v3594 = vshrl.u32 %v3593, 7
        %v3595 = vsub.s32 %v3592, %v3594
        %v3596 = vrot.slane %v3589, %v3595
        %v3598 = vunpack.c.l.s4 1966171168
        %v3599 = vunpack.c.0.s8 %v3598
        %v3600 = vlaneseq
        %v3601 = vshrl.u32 %v3600, 7
        %v3602 = vsub.s32 %v3599, %v3601
        %v3603 = vrot.slane %v3185, %v3602
        %v3604 = vcombine.low %v3596, %v3603
        %v3605 = vcombine.high %v3596, %v3603
        %v3607 = vunpack.c.l.s4 1966171168
        %v3608 = vunpack.c.0.s8 %v3607
        %v3609 = vlaneseq
        %v3610 = vshrl.u32 %v3609, 7
        %v3611 = vsub.s32 %v3608, %v3610
        %v3612 = vrot.slane %v3604, %v3611
        %v3614 = vunpack.c.l.s4 1966171168
        %v3615 = vunpack.c.0.s8 %v3614
        %v3616 = vlaneseq
        %v3617 = vshrl.u32 %v3616, 7
        %v3618 = vsub.s32 %v3615, %v3617
        %v3619 = vrot.slane %v3605, %v3618
        %v3620 = vcombine.high %v3612, %v3612
        %v3621 = vcombine.low %v2898, %v3014
        %v3623 = vunpack.c.l.s4 1966171168
        %v3624 = vunpack.c.0.s8 %v3623
        %v3625 = vlaneseq
        %v3626 = vshrl.u32 %v3625, 7
        %v3627 = vsub.s32 %v3624, %v3626
        %v3628 = vrot.slane %v3621, %v3627
        %v3630 = vunpack.c.l.s4 1966171168
        %v3631 = vunpack.c.0.s8 %v3630
        %v3632 = vlaneseq
        %v3633 = vshrl.u32 %v3632, 7
        %v3634 = vsub.s32 %v3631, %v3633
        %v3635 = vrot.slane %v3186, %v3634
        %v3636 = vcombine.low %v3628, %v3635
        %v3637 = vcombine.high %v3628, %v3635
        %v3639 = vunpack.c.l.s4 1966171168
        %v3640 = vunpack.c.0.s8 %v3639
        %v3641 = vlaneseq
        %v3642 = vshrl.u32 %v3641, 7
        %v3643 = vsub.s32 %v3640, %v3642
        %v3644 = vrot.slane %v3636, %v3643
        %v3646 = vunpack.c.l.s4 1966171168
        %v3647 = vunpack.c.0.s8 %v3646
        %v3648 = vlaneseq
        %v3649 = vshrl.u32 %v3648, 7
        %v3650 = vsub.s32 %v3647, %v3649
        %v3651 = vrot.slane %v3637, %v3650
        %v3652 = vcombine.high %v3644, %v3644
        %v3653 = vcombine.low %v2899, %v3021
        %v3655 = vunpack.c.l.s4 1966171168
        %v3656 = vunpack.c.0.s8 %v3655
        %v3657 = vlaneseq
        %v3658 = vshrl.u32 %v3657, 7
        %v3659 = vsub.s32 %v3656, %v3658
        %v3660 = vrot.slane %v3653, %v3659
        %v3662 = vunpack.c.l.s4 1966171168
        %v3663 = vunpack.c.0.s8 %v3662
        %v3664 = vlaneseq
        %v3665 = vshrl.u32 %v3664, 7
        %v3666 = vsub.s32 %v3663, %v3665
        %v3667 = vrot.slane %v3187, %v3666
        %v3668 = vcombine.low %v3660, %v3667
        %v3669 = vcombine.high %v3660, %v3667
        %v3671 = vunpack.c.l.s4 1966171168
        %v3672 = vunpack.c.0.s8 %v3671
        %v3673 = vlaneseq
        %v3674 = vshrl.u32 %v3673, 7
        %v3675 = vsub.s32 %v3672, %v3674
        %v3676 = vrot.slane %v3668, %v3675
        %v3678 = vunpack.c.l.s4 1966171168
        %v3679 = vunpack.c.0.s8 %v3678
        %v3680 = vlaneseq
        %v3681 = vshrl.u32 %v3680, 7
        %v3682 = vsub.s32 %v3679, %v3681
        %v3683 = vrot.slane %v3669, %v3682
        %v3684 = vcombine.high %v3676, %v3676
        %v3685 = vcombine.low %v2900, %v3028
        %v3687 = vunpack.c.l.s4 1966171168
        %v3688 = vunpack.c.0.s8 %v3687
        %v3689 = vlaneseq
        %v3690 = vshrl.u32 %v3689, 7
        %v3691 = vsub.s32 %v3688, %v3690
        %v3692 = vrot.slane %v3685, %v3691
        %v3694 = vunpack.c.l.s4 1966171168
        %v3695 = vunpack.c.0.s8 %v3694
        %v3696 = vlaneseq
        %v3697 = vshrl.u32 %v3696, 7
        %v3698 = vsub.s32 %v3695, %v3697
        %v3699 = vrot.slane %v3188, %v3698
        %v3700 = vcombine.low %v3692, %v3699
        %v3701 = vcombine.high %v3692, %v3699
        %v3703 = vunpack.c.l.s4 1966171168
        %v3704 = vunpack.c.0.s8 %v3703
        %v3705 = vlaneseq
        %v3706 = vshrl.u32 %v3705, 7
        %v3707 = vsub.s32 %v3704, %v3706
        %v3708 = vrot.slane %v3700, %v3707
        %v3710 = vunpack.c.l.s4 1966171168
        %v3711 = vunpack.c.0.s8 %v3710
        %v3712 = vlaneseq
        %v3713 = vshrl.u32 %v3712, 7
        %v3714 = vsub.s32 %v3711, %v3713
        %v3715 = vrot.slane %v3701, %v3714
        %v3716 = vcombine.high %v3708, %v3708
        %v3717 = vcombine.low %v2901, %v3035
        %v3719 = vunpack.c.l.s4 1966171168
        %v3720 = vunpack.c.0.s8 %v3719
        %v3721 = vlaneseq
        %v3722 = vshrl.u32 %v3721, 7
        %v3723 = vsub.s32 %v3720, %v3722
        %v3724 = vrot.slane %v3717, %v3723
        %v3726 = vunpack.c.l.s4 1966171168
        %v3727 = vunpack.c.0.s8 %v3726
        %v3728 = vlaneseq
        %v3729 = vshrl.u32 %v3728, 7
        %v3730 = vsub.s32 %v3727, %v3729
        %v3731 = vrot.slane %v3189, %v3730
        %v3732 = vcombine.low %v3724, %v3731
        %v3733 = vcombine.high %v3724, %v3731
        %v3735 = vunpack.c.l.s4 1966171168
        %v3736 = vunpack.c.0.s8 %v3735
        %v3737 = vlaneseq
        %v3738 = vshrl.u32 %v3737, 7
        %v3739 = vsub.s32 %v3736, %v3738
        %v3740 = vrot.slane %v3732, %v3739
        %v3742 = vunpack.c.l.s4 1966171168
        %v3743 = vunpack.c.0.s8 %v3742
        %v3744 = vlaneseq
        %v3745 = vshrl.u32 %v3744, 7
        %v3746 = vsub.s32 %v3743, %v3745
        %v3747 = vrot.slane %v3733, %v3746
        %v3748 = vcombine.high %v3740, %v3740
        %v3749 = vcombine.low %v2902, %v3042
        %v3751 = vunpack.c.l.s4 1966171168
        %v3752 = vunpack.c.0.s8 %v3751
        %v3753 = vlaneseq
        %v3754 = vshrl.u32 %v3753, 7
        %v3755 = vsub.s32 %v3752, %v3754
        %v3756 = vrot.slane %v3749, %v3755
        %v3758 = vunpack.c.l.s4 1966171168
        %v3759 = vunpack.c.0.s8 %v3758
        %v3760 = vlaneseq
        %v3761 = vshrl.u32 %v3760, 7
        %v3762 = vsub.s32 %v3759, %v3761
        %v3763 = vrot.slane %v3190, %v3762
        %v3764 = vcombine.low %v3756, %v3763
        %v3765 = vcombine.high %v3756, %v3763
        %v3767 = vunpack.c.l.s4 1966171168
        %v3768 = vunpack.c.0.s8 %v3767
        %v3769 = vlaneseq
        %v3770 = vshrl.u32 %v3769, 7
        %v3771 = vsub.s32 %v3768, %v3770
        %v3772 = vrot.slane %v3764, %v3771
        %v3774 = vunpack.c.l.s4 1966171168
        %v3775 = vunpack.c.0.s8 %v3774
        %v3776 = vlaneseq
        %v3777 = vshrl.u32 %v3776, 7
        %v3778 = vsub.s32 %v3775, %v3777
        %v3779 = vrot.slane %v3765, %v3778
        %v3780 = vcombine.high %v3772, %v3772
        %v3781 = vcombine.low %v2903, %v3049
        %v3783 = vunpack.c.l.s4 1966171168
        %v3784 = vunpack.c.0.s8 %v3783
        %v3785 = vlaneseq
        %v3786 = vshrl.u32 %v3785, 7
        %v3787 = vsub.s32 %v3784, %v3786
        %v3788 = vrot.slane %v3781, %v3787
        %v3790 = vunpack.c.l.s4 1966171168
        %v3791 = vunpack.c.0.s8 %v3790
        %v3792 = vlaneseq
        %v3793 = vshrl.u32 %v3792, 7
        %v3794 = vsub.s32 %v3791, %v3793
        %v3795 = vrot.slane %v3191, %v3794
        %v3796 = vcombine.low %v3788, %v3795
        %v3797 = vcombine.high %v3788, %v3795
        %v3799 = vunpack.c.l.s4 1966171168
        %v3800 = vunpack.c.0.s8 %v3799
        %v3801 = vlaneseq
        %v3802 = vshrl.u32 %v3801, 7
        %v3803 = vsub.s32 %v3800, %v3802
        %v3804 = vrot.slane %v3796, %v3803
        %v3806 = vunpack.c.l.s4 1966171168
        %v3807 = vunpack.c.0.s8 %v3806
        %v3808 = vlaneseq
        %v3809 = vshrl.u32 %v3808, 7
        %v3810 = vsub.s32 %v3807, %v3809
        %v3811 = vrot.slane %v3797, %v3810
        %v3812 = vcombine.high %v3804, %v3804
        %v3813 = vcombine.low %v2904, %v3056
        %v3815 = vunpack.c.l.s4 1966171168
        %v3816 = vunpack.c.0.s8 %v3815
        %v3817 = vlaneseq
        %v3818 = vshrl.u32 %v3817, 7
        %v3819 = vsub.s32 %v3816, %v3818
        %v3820 = vrot.slane %v3813, %v3819
        %v3822 = vunpack.c.l.s4 1966171168
        %v3823 = vunpack.c.0.s8 %v3822
        %v3824 = vlaneseq
        %v3825 = vshrl.u32 %v3824, 7
        %v3826 = vsub.s32 %v3823, %v3825
        %v3827 = vrot.slane %v3192, %v3826
        %v3828 = vcombine.low %v3820, %v3827
        %v3829 = vcombine.high %v3820, %v3827
        %v3831 = vunpack.c.l.s4 1966171168
        %v3832 = vunpack.c.0.s8 %v3831
        %v3833 = vlaneseq
        %v3834 = vshrl.u32 %v3833, 7
        %v3835 = vsub.s32 %v3832, %v3834
        %v3836 = vrot.slane %v3828, %v3835
        %v3838 = vunpack.c.l.s4 1966171168
        %v3839 = vunpack.c.0.s8 %v3838
        %v3840 = vlaneseq
        %v3841 = vshrl.u32 %v3840, 7
        %v3842 = vsub.s32 %v3839, %v3841
        %v3843 = vrot.slane %v3829, %v3842
        %v3844 = vcombine.high %v3836, %v3836
        %v3845 = vcombine.low %v2905, %v3063
        %v3847 = vunpack.c.l.s4 1966171168
        %v3848 = vunpack.c.0.s8 %v3847
        %v3849 = vlaneseq
        %v3850 = vshrl.u32 %v3849, 7
        %v3851 = vsub.s32 %v3848, %v3850
        %v3852 = vrot.slane %v3845, %v3851
        %v3854 = vunpack.c.l.s4 1966171168
        %v3855 = vunpack.c.0.s8 %v3854
        %v3856 = vlaneseq
        %v3857 = vshrl.u32 %v3856, 7
        %v3858 = vsub.s32 %v3855, %v3857
        %v3859 = vrot.slane %v3193, %v3858
        %v3860 = vcombine.low %v3852, %v3859
        %v3861 = vcombine.high %v3852, %v3859
        %v3863 = vunpack.c.l.s4 1966171168
        %v3864 = vunpack.c.0.s8 %v3863
        %v3865 = vlaneseq
        %v3866 = vshrl.u32 %v3865, 7
        %v3867 = vsub.s32 %v3864, %v3866
        %v3868 = vrot.slane %v3860, %v3867
        %v3870 = vunpack.c.l.s4 1966171168
        %v3871 = vunpack.c.0.s8 %v3870
        %v3872 = vlaneseq
        %v3873 = vshrl.u32 %v3872, 7
        %v3874 = vsub.s32 %v3871, %v3873
        %v3875 = vrot.slane %v3861, %v3874
        %v3876 = vcombine.high %v3868, %v3868
        %v3877 = vcombine.low %v2906, %v3070
        %v3879 = vunpack.c.l.s4 1966171168
        %v3880 = vunpack.c.0.s8 %v3879
        %v3881 = vlaneseq
        %v3882 = vshrl.u32 %v3881, 7
        %v3883 = vsub.s32 %v3880, %v3882
        %v3884 = vrot.slane %v3877, %v3883
        %v3886 = vunpack.c.l.s4 1966171168
        %v3887 = vunpack.c.0.s8 %v3886
        %v3888 = vlaneseq
        %v3889 = vshrl.u32 %v3888, 7
        %v3890 = vsub.s32 %v3887, %v3889
        %v3891 = vrot.slane %v3194, %v3890
        %v3892 = vcombine.low %v3884, %v3891
        %v3893 = vcombine.high %v3884, %v3891
        %v3895 = vunpack.c.l.s4 1966171168
        %v3896 = vunpack.c.0.s8 %v3895
        %v3897 = vlaneseq
        %v3898 = vshrl.u32 %v3897, 7
        %v3899 = vsub.s32 %v3896, %v3898
        %v3900 = vrot.slane %v3892, %v3899
        %v3902 = vunpack.c.l.s4 1966171168
        %v3903 = vunpack.c.0.s8 %v3902
        %v3904 = vlaneseq
        %v3905 = vshrl.u32 %v3904, 7
        %v3906 = vsub.s32 %v3903, %v3905
        %v3907 = vrot.slane %v3893, %v3906
        %v3908 = vcombine.high %v3900, %v3900
        %v3909 = vcombine.low %v2907, %v3077
        %v3911 = vunpack.c.l.s4 1966171168
        %v3912 = vunpack.c.0.s8 %v3911
        %v3913 = vlaneseq
        %v3914 = vshrl.u32 %v3913, 7
        %v3915 = vsub.s32 %v3912, %v3914
        %v3916 = vrot.slane %v3909, %v3915
        %v3918 = vunpack.c.l.s4 1966171168
        %v3919 = vunpack.c.0.s8 %v3918
        %v3920 = vlaneseq
        %v3921 = vshrl.u32 %v3920, 7
        %v3922 = vsub.s32 %v3919, %v3921
        %v3923 = vrot.slane %v3195, %v3922
        %v3924 = vcombine.low %v3916, %v3923
        %v3925 = vcombine.high %v3916, %v3923
        %v3927 = vunpack.c.l.s4 1966171168
        %v3928 = vunpack.c.0.s8 %v3927
        %v3929 = vlaneseq
        %v3930 = vshrl.u32 %v3929, 7
        %v3931 = vsub.s32 %v3928, %v3930
        %v3932 = vrot.slane %v3924, %v3931
        %v3934 = vunpack.c.l.s4 1966171168
        %v3935 = vunpack.c.0.s8 %v3934
        %v3936 = vlaneseq
        %v3937 = vshrl.u32 %v3936, 7
        %v3938 = vsub.s32 %v3935, %v3937
        %v3939 = vrot.slane %v3925, %v3938
        %v3940 = vcombine.high %v3932, %v3932
        %v3941 = vcombine.low %v2908, %v3084
        %v3943 = vunpack.c.l.s4 1966171168
        %v3944 = vunpack.c.0.s8 %v3943
        %v3945 = vlaneseq
        %v3946 = vshrl.u32 %v3945, 7
        %v3947 = vsub.s32 %v3944, %v3946
        %v3948 = vrot.slane %v3941, %v3947
        %v3950 = vunpack.c.l.s4 1966171168
        %v3951 = vunpack.c.0.s8 %v3950
        %v3952 = vlaneseq
        %v3953 = vshrl.u32 %v3952, 7
        %v3954 = vsub.s32 %v3951, %v3953
        %v3955 = vrot.slane %v3196, %v3954
        %v3956 = vcombine.low %v3948, %v3955
        %v3957 = vcombine.high %v3948, %v3955
        %v3959 = vunpack.c.l.s4 1966171168
        %v3960 = vunpack.c.0.s8 %v3959
        %v3961 = vlaneseq
        %v3962 = vshrl.u32 %v3961, 7
        %v3963 = vsub.s32 %v3960, %v3962
        %v3964 = vrot.slane %v3956, %v3963
        %v3966 = vunpack.c.l.s4 1966171168
        %v3967 = vunpack.c.0.s8 %v3966
        %v3968 = vlaneseq
        %v3969 = vshrl.u32 %v3968, 7
        %v3970 = vsub.s32 %v3967, %v3969
        %v3971 = vrot.slane %v3957, %v3970
        %v3972 = vcombine.high %v3964, %v3964
        %v3973 = vcombine.low %v2909, %v3091
        %v3975 = vunpack.c.l.s4 1966171168
        %v3976 = vunpack.c.0.s8 %v3975
        %v3977 = vlaneseq
        %v3978 = vshrl.u32 %v3977, 7
        %v3979 = vsub.s32 %v3976, %v3978
        %v3980 = vrot.slane %v3973, %v3979
        %v3982 = vunpack.c.l.s4 1966171168
        %v3983 = vunpack.c.0.s8 %v3982
        %v3984 = vlaneseq
        %v3985 = vshrl.u32 %v3984, 7
        %v3986 = vsub.s32 %v3983, %v3985
        %v3987 = vrot.slane %v3197, %v3986
        %v3988 = vcombine.low %v3980, %v3987
        %v3989 = vcombine.high %v3980, %v3987
        %v3991 = vunpack.c.l.s4 1966171168
        %v3992 = vunpack.c.0.s8 %v3991
        %v3993 = vlaneseq
        %v3994 = vshrl.u32 %v3993, 7
        %v3995 = vsub.s32 %v3992, %v3994
        %v3996 = vrot.slane %v3988, %v3995
        %v3998 = vunpack.c.l.s4 1966171168
        %v3999 = vunpack.c.0.s8 %v3998
        %v4000 = vlaneseq
        %v4001 = vshrl.u32 %v4000, 7
        %v4002 = vsub.s32 %v3999, %v4001
        %v4003 = vrot.slane %v3989, %v4002
        %v4004 = vcombine.high %v3996, %v3996
        %v4005 = vcombine.low %v2910, %v3098
        %v4007 = vunpack.c.l.s4 1966171168
        %v4008 = vunpack.c.0.s8 %v4007
        %v4009 = vlaneseq
        %v4010 = vshrl.u32 %v4009, 7
        %v4011 = vsub.s32 %v4008, %v4010
        %v4012 = vrot.slane %v4005, %v4011
        %v4014 = vunpack.c.l.s4 1966171168
        %v4015 = vunpack.c.0.s8 %v4014
        %v4016 = vlaneseq
        %v4017 = vshrl.u32 %v4016, 7
        %v4018 = vsub.s32 %v4015, %v4017
        %v4019 = vrot.slane %v3198, %v4018
        %v4020 = vcombine.low %v4012, %v4019
        %v4021 = vcombine.high %v4012, %v4019
        %v4023 = vunpack.c.l.s4 1966171168
        %v4024 = vunpack.c.0.s8 %v4023
        %v4025 = vlaneseq
        %v4026 = vshrl.u32 %v4025, 7
        %v4027 = vsub.s32 %v4024, %v4026
        %v4028 = vrot.slane %v4020, %v4027
        %v4030 = vunpack.c.l.s4 1966171168
        %v4031 = vunpack.c.0.s8 %v4030
        %v4032 = vlaneseq
        %v4033 = vshrl.u32 %v4032, 7
        %v4034 = vsub.s32 %v4031, %v4033
        %v4035 = vrot.slane %v4021, %v4034
        %v4036 = vcombine.high %v4028, %v4028
        %v4037 = vcombine.low %v2911, %v3105
        %v4039 = vunpack.c.l.s4 1966171168
        %v4040 = vunpack.c.0.s8 %v4039
        %v4041 = vlaneseq
        %v4042 = vshrl.u32 %v4041, 7
        %v4043 = vsub.s32 %v4040, %v4042
        %v4044 = vrot.slane %v4037, %v4043
        %v4046 = vunpack.c.l.s4 1966171168
        %v4047 = vunpack.c.0.s8 %v4046
        %v4048 = vlaneseq
        %v4049 = vshrl.u32 %v4048, 7
        %v4050 = vsub.s32 %v4047, %v4049
        %v4051 = vrot.slane %v3199, %v4050
        %v4052 = vcombine.low %v4044, %v4051
        %v4053 = vcombine.high %v4044, %v4051
        %v4055 = vunpack.c.l.s4 1966171168
        %v4056 = vunpack.c.0.s8 %v4055
        %v4057 = vlaneseq
        %v4058 = vshrl.u32 %v4057, 7
        %v4059 = vsub.s32 %v4056, %v4058
        %v4060 = vrot.slane %v4052, %v4059
        %v4062 = vunpack.c.l.s4 1966171168
        %v4063 = vunpack.c.0.s8 %v4062
        %v4064 = vlaneseq
        %v4065 = vshrl.u32 %v4064, 7
        %v4066 = vsub.s32 %v4063, %v4065
        %v4067 = vrot.slane %v4053, %v4066
        %v4068 = vcombine.high %v4060, %v4060
        %v4069 = vcombine.low %v2912, %v3112
        %v4071 = vunpack.c.l.s4 1966171168
        %v4072 = vunpack.c.0.s8 %v4071
        %v4073 = vlaneseq
        %v4074 = vshrl.u32 %v4073, 7
        %v4075 = vsub.s32 %v4072, %v4074
        %v4076 = vrot.slane %v4069, %v4075
        %v4078 = vunpack.c.l.s4 1966171168
        %v4079 = vunpack.c.0.s8 %v4078
        %v4080 = vlaneseq
        %v4081 = vshrl.u32 %v4080, 7
        %v4082 = vsub.s32 %v4079, %v4081
        %v4083 = vrot.slane %v3200, %v4082
        %v4084 = vcombine.low %v4076, %v4083
        %v4085 = vcombine.high %v4076, %v4083
        %v4087 = vunpack.c.l.s4 1966171168
        %v4088 = vunpack.c.0.s8 %v4087
        %v4089 = vlaneseq
        %v4090 = vshrl.u32 %v4089, 7
        %v4091 = vsub.s32 %v4088, %v4090
        %v4092 = vrot.slane %v4084, %v4091
        %v4094 = vunpack.c.l.s4 1966171168
        %v4095 = vunpack.c.0.s8 %v4094
        %v4096 = vlaneseq
        %v4097 = vshrl.u32 %v4096, 7
        %v4098 = vsub.s32 %v4095, %v4097
        %v4099 = vrot.slane %v4085, %v4098
        %v4100 = vcombine.high %v4092, %v4092
        %v4101 = vcombine.low %v2913, %v3119
        %v4103 = vunpack.c.l.s4 1966171168
        %v4104 = vunpack.c.0.s8 %v4103
        %v4105 = vlaneseq
        %v4106 = vshrl.u32 %v4105, 7
        %v4107 = vsub.s32 %v4104, %v4106
        %v4108 = vrot.slane %v4101, %v4107
        %v4110 = vunpack.c.l.s4 1966171168
        %v4111 = vunpack.c.0.s8 %v4110
        %v4112 = vlaneseq
        %v4113 = vshrl.u32 %v4112, 7
        %v4114 = vsub.s32 %v4111, %v4113
        %v4115 = vrot.slane %v3201, %v4114
        %v4116 = vcombine.low %v4108, %v4115
        %v4117 = vcombine.high %v4108, %v4115
        %v4119 = vunpack.c.l.s4 1966171168
        %v4120 = vunpack.c.0.s8 %v4119
        %v4121 = vlaneseq
        %v4122 = vshrl.u32 %v4121, 7
        %v4123 = vsub.s32 %v4120, %v4122
        %v4124 = vrot.slane %v4116, %v4123
        %v4126 = vunpack.c.l.s4 1966171168
        %v4127 = vunpack.c.0.s8 %v4126
        %v4128 = vlaneseq
        %v4129 = vshrl.u32 %v4128, 7
        %v4130 = vsub.s32 %v4127, %v4129
        %v4131 = vrot.slane %v4117, %v4130
        %v4132 = vcombine.high %v4124, %v4124
        %v4133 = vcombine.low %v2914, %v3126
        %v4135 = vunpack.c.l.s4 1966171168
        %v4136 = vunpack.c.0.s8 %v4135
        %v4137 = vlaneseq
        %v4138 = vshrl.u32 %v4137, 7
        %v4139 = vsub.s32 %v4136, %v4138
        %v4140 = vrot.slane %v4133, %v4139
        %v4142 = vunpack.c.l.s4 1966171168
        %v4143 = vunpack.c.0.s8 %v4142
        %v4144 = vlaneseq
        %v4145 = vshrl.u32 %v4144, 7
        %v4146 = vsub.s32 %v4143, %v4145
        %v4147 = vrot.slane %v3202, %v4146
        %v4148 = vcombine.low %v4140, %v4147
        %v4149 = vcombine.high %v4140, %v4147
        %v4151 = vunpack.c.l.s4 1966171168
        %v4152 = vunpack.c.0.s8 %v4151
        %v4153 = vlaneseq
        %v4154 = vshrl.u32 %v4153, 7
        %v4155 = vsub.s32 %v4152, %v4154
        %v4156 = vrot.slane %v4148, %v4155
        %v4158 = vunpack.c.l.s4 1966171168
        %v4159 = vunpack.c.0.s8 %v4158
        %v4160 = vlaneseq
        %v4161 = vshrl.u32 %v4160, 7
        %v4162 = vsub.s32 %v4159, %v4161
        %v4163 = vrot.slane %v4149, %v4162
        %v4164 = vcombine.high %v4156, %v4156
        %v4165 = vcombine.low %v2915, %v3133
        %v4167 = vunpack.c.l.s4 1966171168
        %v4168 = vunpack.c.0.s8 %v4167
        %v4169 = vlaneseq
        %v4170 = vshrl.u32 %v4169, 7
        %v4171 = vsub.s32 %v4168, %v4170
        %v4172 = vrot.slane %v4165, %v4171
        %v4174 = vunpack.c.l.s4 1966171168
        %v4175 = vunpack.c.0.s8 %v4174
        %v4176 = vlaneseq
        %v4177 = vshrl.u32 %v4176, 7
        %v4178 = vsub.s32 %v4175, %v4177
        %v4179 = vrot.slane %v3203, %v4178
        %v4180 = vcombine.low %v4172, %v4179
        %v4181 = vcombine.high %v4172, %v4179
        %v4183 = vunpack.c.l.s4 1966171168
        %v4184 = vunpack.c.0.s8 %v4183
        %v4185 = vlaneseq
        %v4186 = vshrl.u32 %v4185, 7
        %v4187 = vsub.s32 %v4184, %v4186
        %v4188 = vrot.slane %v4180, %v4187
        %v4190 = vunpack.c.l.s4 1966171168
        %v4191 = vunpack.c.0.s8 %v4190
        %v4192 = vlaneseq
        %v4193 = vshrl.u32 %v4192, 7
        %v4194 = vsub.s32 %v4191, %v4193
        %v4195 = vrot.slane %v4181, %v4194
        %v4196 = vcombine.high %v4188, %v4188
        %v4197 = vcombine.low %v2916, %v3140
        %v4199 = vunpack.c.l.s4 1966171168
        %v4200 = vunpack.c.0.s8 %v4199
        %v4201 = vlaneseq
        %v4202 = vshrl.u32 %v4201, 7
        %v4203 = vsub.s32 %v4200, %v4202
        %v4204 = vrot.slane %v4197, %v4203
        %v4206 = vunpack.c.l.s4 1966171168
        %v4207 = vunpack.c.0.s8 %v4206
        %v4208 = vlaneseq
        %v4209 = vshrl.u32 %v4208, 7
        %v4210 = vsub.s32 %v4207, %v4209
        %v4211 = vrot.slane %v3204, %v4210
        %v4212 = vcombine.low %v4204, %v4211
        %v4213 = vcombine.high %v4204, %v4211
        %v4215 = vunpack.c.l.s4 1966171168
        %v4216 = vunpack.c.0.s8 %v4215
        %v4217 = vlaneseq
        %v4218 = vshrl.u32 %v4217, 7
        %v4219 = vsub.s32 %v4216, %v4218
        %v4220 = vrot.slane %v4212, %v4219
        %v4222 = vunpack.c.l.s4 1966171168
        %v4223 = vunpack.c.0.s8 %v4222
        %v4224 = vlaneseq
        %v4225 = vshrl.u32 %v4224, 7
        %v4226 = vsub.s32 %v4223, %v4225
        %v4227 = vrot.slane %v4213, %v4226
        %v4228 = vcombine.high %v4220, %v4220
        %v4229 = vld [vmem:[%s3] sm:$0xf]
        %v4230 = vld [vmem:[%s3 + $0x4] sm:$0xf]
        %v4231 = vld [vmem:[%s3 + $0x8] sm:$0xf]
        %v4232 = vld [vmem:[%s3 + $0xc] sm:$0xf]
        %v4233 = vld [vmem:[%s3 + $0x10] sm:$0xf]
        %v4234 = vld [vmem:[%s3 + $0x14] sm:$0xf]
        %v4235 = vld [vmem:[%s3 + $0x18] sm:$0xf]
        %v4236 = vld [vmem:[%s3 + $0x1c] sm:$0xf]
        %v4237 = vld [vmem:[%s3 + $0x20] sm:$0xf]
        %v4238 = vld [vmem:[%s3 + $0x24] sm:$0xf]
        %v4239 = vld [vmem:[%s3 + $0x28] sm:$0xf]
        %v4240 = vld [vmem:[%s3 + $0x2c] sm:$0xf]
        %v4241 = vld [vmem:[%s3 + $0x30] sm:$0xf]
        %v4242 = vld [vmem:[%s3 + $0x34] sm:$0xf]
        %v4243 = vld [vmem:[%s3 + $0x38] sm:$0xf]
        %v4244 = vld [vmem:[%s3 + $0x3c] sm:$0xf]
        %v4245 = vld [vmem:[%s3 + $0x40] sm:$0xf]
        %v4246 = vld [vmem:[%s3 + $0x44] sm:$0xf]
        %v4247 = vld [vmem:[%s3 + $0x48] sm:$0xf]
        %v4248 = vld [vmem:[%s3 + $0x4c] sm:$0xf]
        %v4249 = vld [vmem:[%s3 + $0x50] sm:$0xf]
        %v4250 = vld [vmem:[%s3 + $0x54] sm:$0xf]
        %v4251 = vld [vmem:[%s3 + $0x58] sm:$0xf]
        %v4252 = vld [vmem:[%s3 + $0x5c] sm:$0xf]
        %v4253 = vld [vmem:[%s3 + $0x60] sm:$0xf]
        %v4254 = vld [vmem:[%s3 + $0x64] sm:$0xf]
        %v4255 = vld [vmem:[%s3 + $0x68] sm:$0xf]
        %v4256 = vld [vmem:[%s3 + $0x6c] sm:$0xf]
        %v4257 = vld [vmem:[%s3 + $0x70] sm:$0xf]
        %v4258 = vld [vmem:[%s3 + $0x74] sm:$0xf]
        %v4259 = vld [vmem:[%s3 + $0x78] sm:$0xf]
        %v4260 = vld [vmem:[%s3 + $0x7c] sm:$0xf]
        %v4261 = vld [vmem:[%s3 + $0x80] sm:$0xf]
        %v4262 = vld [vmem:[%s3 + $0x84] sm:$0xf]
        %v4263 = vld [vmem:[%s3 + $0x88] sm:$0xf]
        %v4264 = vld [vmem:[%s3 + $0x8c] sm:$0xf]
        %v4265 = vld [vmem:[%s3 + $0x90] sm:$0xf]
        %v4266 = vld [vmem:[%s3 + $0x94] sm:$0xf]
        %v4267 = vld [vmem:[%s3 + $0x98] sm:$0xf]
        %v4268 = vld [vmem:[%s3 + $0x9c] sm:$0xf]
        %v4269 = vld [vmem:[%s3 + $0xa0] sm:$0xf]
        %v4270 = vld [vmem:[%s3 + $0xa4] sm:$0xf]
        %v4271 = vld [vmem:[%s3 + $0xa8] sm:$0xf]
        %v4272 = vld [vmem:[%s3 + $0xac] sm:$0xf]
        %v4273 = vld [vmem:[%s3 + $0xb0] sm:$0xf]
        %v4274 = vld [vmem:[%s3 + $0xb4] sm:$0xf]
        %v4275 = vld [vmem:[%s3 + $0xb8] sm:$0xf]
        %v4276 = vld [vmem:[%s3 + $0xbc] sm:$0xf]
        %v4277 = vld [vmem:[%s4] sm:$0x1]
        %v4279 = vlaneseq
        %v4280 = vshrl.u32 %v4279, 7
        %v4281 = vsub.s32 0, %v4280
        %v4282 = vrot.slane %v4277, %v4281
        %v4284 = vcombine.low %v3228, %v3235
        %v4285 = vcombine.low %v3236, %v3260
        %v4286 = vcombine.low %v3267, %v3268
        %v4287 = vcombine.low %v3292, %v3299
        %v4289 = vunpack.c.l.s4 1966171168
        %v4290 = vunpack.c.0.s8 %v4289
        %v4291 = vlaneseq
        %v4292 = vshrl.u32 %v4291, 7
        %v4293 = vsub.s32 %v4290, %v4292
        %v4294 = vrot.slane %v4284, %v4293
        %v4296 = vunpack.c.l.s4 1966171168
        %v4297 = vunpack.c.0.s8 %v4296
        %v4298 = vlaneseq
        %v4299 = vshrl.u32 %v4298, 7
        %v4300 = vsub.s32 %v4297, %v4299
        %v4301 = vrot.slane %v4285, %v4300
        %v4303 = vunpack.c.l.s4 1966171168
        %v4304 = vunpack.c.0.s8 %v4303
        %v4305 = vlaneseq
        %v4306 = vshrl.u32 %v4305, 7
        %v4307 = vsub.s32 %v4304, %v4306
        %v4308 = vrot.slane %v4286, %v4307
        %v4310 = vunpack.c.l.s4 1966171168
        %v4311 = vunpack.c.0.s8 %v4310
        %v4312 = vlaneseq
        %v4313 = vshrl.u32 %v4312, 7
        %v4314 = vsub.s32 %v4311, %v4313
        %v4315 = vrot.slane %v4287, %v4314
        %v4316 = vcombine.low %v4294, %v4301
        %v4317 = vcombine.high %v4294, %v4301
        %v4318 = vcombine.low %v4308, %v4315
        %v4319 = vcombine.high %v4308, %v4315
        %v4321 = vunpack.c.l.s4 1966171168
        %v4322 = vunpack.c.0.s8 %v4321
        %v4323 = vlaneseq
        %v4324 = vshrl.u32 %v4323, 7
        %v4325 = vsub.s32 %v4322, %v4324
        %v4326 = vrot.slane %v4316, %v4325
        %v4328 = vunpack.c.l.s4 1966171168
        %v4329 = vunpack.c.0.s8 %v4328
        %v4330 = vlaneseq
        %v4331 = vshrl.u32 %v4330, 7
        %v4332 = vsub.s32 %v4329, %v4331
        %v4333 = vrot.slane %v4317, %v4332
        %v4335 = vunpack.c.l.s4 1966171168
        %v4336 = vunpack.c.0.s8 %v4335
        %v4337 = vlaneseq
        %v4338 = vshrl.u32 %v4337, 7
        %v4339 = vsub.s32 %v4336, %v4338
        %v4340 = vrot.slane %v4318, %v4339
        %v4342 = vunpack.c.l.s4 1966171168
        %v4343 = vunpack.c.0.s8 %v4342
        %v4344 = vlaneseq
        %v4345 = vshrl.u32 %v4344, 7
        %v4346 = vsub.s32 %v4343, %v4345
        %v4347 = vrot.slane %v4319, %v4346
        %v4348 = vcombine.low %v4326, %v4340
        %v4349 = vcombine.high %v4326, %v4340
        %v4350 = vcombine.low %v4333, %v4347
        %v4351 = vcombine.low %v3300, %v3324
        %v4352 = vcombine.low %v3331, %v3332
        %v4353 = vcombine.low %v3356, %v3363
        %v4354 = vcombine.low %v3364, %v3388
        %v4356 = vunpack.c.l.s4 1966171168
        %v4357 = vunpack.c.0.s8 %v4356
        %v4358 = vlaneseq
        %v4359 = vshrl.u32 %v4358, 7
        %v4360 = vsub.s32 %v4357, %v4359
        %v4361 = vrot.slane %v4351, %v4360
        %v4363 = vunpack.c.l.s4 1966171168
        %v4364 = vunpack.c.0.s8 %v4363
        %v4365 = vlaneseq
        %v4366 = vshrl.u32 %v4365, 7
        %v4367 = vsub.s32 %v4364, %v4366
        %v4368 = vrot.slane %v4352, %v4367
        %v4370 = vunpack.c.l.s4 1966171168
        %v4371 = vunpack.c.0.s8 %v4370
        %v4372 = vlaneseq
        %v4373 = vshrl.u32 %v4372, 7
        %v4374 = vsub.s32 %v4371, %v4373
        %v4375 = vrot.slane %v4353, %v4374
        %v4377 = vunpack.c.l.s4 1966171168
        %v4378 = vunpack.c.0.s8 %v4377
        %v4379 = vlaneseq
        %v4380 = vshrl.u32 %v4379, 7
        %v4381 = vsub.s32 %v4378, %v4380
        %v4382 = vrot.slane %v4354, %v4381
        %v4383 = vcombine.low %v4361, %v4368
        %v4384 = vcombine.high %v4361, %v4368
        %v4385 = vcombine.low %v4375, %v4382
        %v4386 = vcombine.high %v4375, %v4382
        %v4388 = vunpack.c.l.s4 1966171168
        %v4389 = vunpack.c.0.s8 %v4388
        %v4390 = vlaneseq
        %v4391 = vshrl.u32 %v4390, 7
        %v4392 = vsub.s32 %v4389, %v4391
        %v4393 = vrot.slane %v4383, %v4392
        %v4395 = vunpack.c.l.s4 1966171168
        %v4396 = vunpack.c.0.s8 %v4395
        %v4397 = vlaneseq
        %v4398 = vshrl.u32 %v4397, 7
        %v4399 = vsub.s32 %v4396, %v4398
        %v4400 = vrot.slane %v4384, %v4399
        %v4402 = vunpack.c.l.s4 1966171168
        %v4403 = vunpack.c.0.s8 %v4402
        %v4404 = vlaneseq
        %v4405 = vshrl.u32 %v4404, 7
        %v4406 = vsub.s32 %v4403, %v4405
        %v4407 = vrot.slane %v4385, %v4406
        %v4409 = vunpack.c.l.s4 1966171168
        %v4410 = vunpack.c.0.s8 %v4409
        %v4411 = vlaneseq
        %v4412 = vshrl.u32 %v4411, 7
        %v4413 = vsub.s32 %v4410, %v4412
        %v4414 = vrot.slane %v4386, %v4413
        %v4415 = vcombine.low %v4393, %v4407
        %v4416 = vcombine.high %v4393, %v4407
        %v4417 = vcombine.low %v4400, %v4414
        %v4418 = vcombine.low %v3395, %v3396
        %v4419 = vcombine.low %v3420, %v3427
        %v4420 = vcombine.low %v3428, %v3452
        %v4421 = vcombine.low %v3459, %v3460
        %v4423 = vunpack.c.l.s4 1966171168
        %v4424 = vunpack.c.0.s8 %v4423
        %v4425 = vlaneseq
        %v4426 = vshrl.u32 %v4425, 7
        %v4427 = vsub.s32 %v4424, %v4426
        %v4428 = vrot.slane %v4418, %v4427
        %v4430 = vunpack.c.l.s4 1966171168
        %v4431 = vunpack.c.0.s8 %v4430
        %v4432 = vlaneseq
        %v4433 = vshrl.u32 %v4432, 7
        %v4434 = vsub.s32 %v4431, %v4433
        %v4435 = vrot.slane %v4419, %v4434
        %v4437 = vunpack.c.l.s4 1966171168
        %v4438 = vunpack.c.0.s8 %v4437
        %v4439 = vlaneseq
        %v4440 = vshrl.u32 %v4439, 7
        %v4441 = vsub.s32 %v4438, %v4440
        %v4442 = vrot.slane %v4420, %v4441
        %v4444 = vunpack.c.l.s4 1966171168
        %v4445 = vunpack.c.0.s8 %v4444
        %v4446 = vlaneseq
        %v4447 = vshrl.u32 %v4446, 7
        %v4448 = vsub.s32 %v4445, %v4447
        %v4449 = vrot.slane %v4421, %v4448
        %v4450 = vcombine.low %v4428, %v4435
        %v4451 = vcombine.high %v4428, %v4435
        %v4452 = vcombine.low %v4442, %v4449
        %v4453 = vcombine.high %v4442, %v4449
        %v4455 = vunpack.c.l.s4 1966171168
        %v4456 = vunpack.c.0.s8 %v4455
        %v4457 = vlaneseq
        %v4458 = vshrl.u32 %v4457, 7
        %v4459 = vsub.s32 %v4456, %v4458
        %v4460 = vrot.slane %v4450, %v4459
        %v4462 = vunpack.c.l.s4 1966171168
        %v4463 = vunpack.c.0.s8 %v4462
        %v4464 = vlaneseq
        %v4465 = vshrl.u32 %v4464, 7
        %v4466 = vsub.s32 %v4463, %v4465
        %v4467 = vrot.slane %v4451, %v4466
        %v4469 = vunpack.c.l.s4 1966171168
        %v4470 = vunpack.c.0.s8 %v4469
        %v4471 = vlaneseq
        %v4472 = vshrl.u32 %v4471, 7
        %v4473 = vsub.s32 %v4470, %v4472
        %v4474 = vrot.slane %v4452, %v4473
        %v4476 = vunpack.c.l.s4 1966171168
        %v4477 = vunpack.c.0.s8 %v4476
        %v4478 = vlaneseq
        %v4479 = vshrl.u32 %v4478, 7
        %v4480 = vsub.s32 %v4477, %v4479
        %v4481 = vrot.slane %v4453, %v4480
        %v4482 = vcombine.low %v4460, %v4474
        %v4483 = vcombine.high %v4460, %v4474
        %v4484 = vcombine.low %v4467, %v4481
        %v4485 = vcombine.low %v3484, %v3491
        %v4486 = vcombine.low %v3492, %v3516
        %v4487 = vcombine.low %v3523, %v3524
        %v4488 = vcombine.low %v3548, %v3555
        %v4490 = vunpack.c.l.s4 1966171168
        %v4491 = vunpack.c.0.s8 %v4490
        %v4492 = vlaneseq
        %v4493 = vshrl.u32 %v4492, 7
        %v4494 = vsub.s32 %v4491, %v4493
        %v4495 = vrot.slane %v4485, %v4494
        %v4497 = vunpack.c.l.s4 1966171168
        %v4498 = vunpack.c.0.s8 %v4497
        %v4499 = vlaneseq
        %v4500 = vshrl.u32 %v4499, 7
        %v4501 = vsub.s32 %v4498, %v4500
        %v4502 = vrot.slane %v4486, %v4501
        %v4504 = vunpack.c.l.s4 1966171168
        %v4505 = vunpack.c.0.s8 %v4504
        %v4506 = vlaneseq
        %v4507 = vshrl.u32 %v4506, 7
        %v4508 = vsub.s32 %v4505, %v4507
        %v4509 = vrot.slane %v4487, %v4508
        %v4511 = vunpack.c.l.s4 1966171168
        %v4512 = vunpack.c.0.s8 %v4511
        %v4513 = vlaneseq
        %v4514 = vshrl.u32 %v4513, 7
        %v4515 = vsub.s32 %v4512, %v4514
        %v4516 = vrot.slane %v4488, %v4515
        %v4517 = vcombine.low %v4495, %v4502
        %v4518 = vcombine.high %v4495, %v4502
        %v4519 = vcombine.low %v4509, %v4516
        %v4520 = vcombine.high %v4509, %v4516
        %v4522 = vunpack.c.l.s4 1966171168
        %v4523 = vunpack.c.0.s8 %v4522
        %v4524 = vlaneseq
        %v4525 = vshrl.u32 %v4524, 7
        %v4526 = vsub.s32 %v4523, %v4525
        %v4527 = vrot.slane %v4517, %v4526
        %v4529 = vunpack.c.l.s4 1966171168
        %v4530 = vunpack.c.0.s8 %v4529
        %v4531 = vlaneseq
        %v4532 = vshrl.u32 %v4531, 7
        %v4533 = vsub.s32 %v4530, %v4532
        %v4534 = vrot.slane %v4518, %v4533
        %v4536 = vunpack.c.l.s4 1966171168
        %v4537 = vunpack.c.0.s8 %v4536
        %v4538 = vlaneseq
        %v4539 = vshrl.u32 %v4538, 7
        %v4540 = vsub.s32 %v4537, %v4539
        %v4541 = vrot.slane %v4519, %v4540
        %v4543 = vunpack.c.l.s4 1966171168
        %v4544 = vunpack.c.0.s8 %v4543
        %v4545 = vlaneseq
        %v4546 = vshrl.u32 %v4545, 7
        %v4547 = vsub.s32 %v4544, %v4546
        %v4548 = vrot.slane %v4520, %v4547
        %v4549 = vcombine.low %v4527, %v4541
        %v4550 = vcombine.high %v4527, %v4541
        %v4551 = vcombine.low %v4534, %v4548
        %v4552 = vcombine.low %v3556, %v3580
        %v4553 = vcombine.low %v3587, %v3588
        %v4554 = vcombine.low %v3612, %v3619
        %v4555 = vcombine.low %v3620, %v3644
        %v4557 = vunpack.c.l.s4 1966171168
        %v4558 = vunpack.c.0.s8 %v4557
        %v4559 = vlaneseq
        %v4560 = vshrl.u32 %v4559, 7
        %v4561 = vsub.s32 %v4558, %v4560
        %v4562 = vrot.slane %v4552, %v4561
        %v4564 = vunpack.c.l.s4 1966171168
        %v4565 = vunpack.c.0.s8 %v4564
        %v4566 = vlaneseq
        %v4567 = vshrl.u32 %v4566, 7
        %v4568 = vsub.s32 %v4565, %v4567
        %v4569 = vrot.slane %v4553, %v4568
        %v4571 = vunpack.c.l.s4 1966171168
        %v4572 = vunpack.c.0.s8 %v4571
        %v4573 = vlaneseq
        %v4574 = vshrl.u32 %v4573, 7
        %v4575 = vsub.s32 %v4572, %v4574
        %v4576 = vrot.slane %v4554, %v4575
        %v4578 = vunpack.c.l.s4 1966171168
        %v4579 = vunpack.c.0.s8 %v4578
        %v4580 = vlaneseq
        %v4581 = vshrl.u32 %v4580, 7
        %v4582 = vsub.s32 %v4579, %v4581
        %v4583 = vrot.slane %v4555, %v4582
        %v4584 = vcombine.low %v4562, %v4569
        %v4585 = vcombine.high %v4562, %v4569
        %v4586 = vcombine.low %v4576, %v4583
        %v4587 = vcombine.high %v4576, %v4583
        %v4589 = vunpack.c.l.s4 1966171168
        %v4590 = vunpack.c.0.s8 %v4589
        %v4591 = vlaneseq
        %v4592 = vshrl.u32 %v4591, 7
        %v4593 = vsub.s32 %v4590, %v4592
        %v4594 = vrot.slane %v4584, %v4593
        %v4596 = vunpack.c.l.s4 1966171168
        %v4597 = vunpack.c.0.s8 %v4596
        %v4598 = vlaneseq
        %v4599 = vshrl.u32 %v4598, 7
        %v4600 = vsub.s32 %v4597, %v4599
        %v4601 = vrot.slane %v4585, %v4600
        %v4603 = vunpack.c.l.s4 1966171168
        %v4604 = vunpack.c.0.s8 %v4603
        %v4605 = vlaneseq
        %v4606 = vshrl.u32 %v4605, 7
        %v4607 = vsub.s32 %v4604, %v4606
        %v4608 = vrot.slane %v4586, %v4607
        %v4610 = vunpack.c.l.s4 1966171168
        %v4611 = vunpack.c.0.s8 %v4610
        %v4612 = vlaneseq
        %v4613 = vshrl.u32 %v4612, 7
        %v4614 = vsub.s32 %v4611, %v4613
        %v4615 = vrot.slane %v4587, %v4614
        %v4616 = vcombine.low %v4594, %v4608
        %v4617 = vcombine.high %v4594, %v4608
        %v4618 = vcombine.low %v4601, %v4615
        %v4619 = vcombine.low %v3651, %v3652
        %v4620 = vcombine.low %v3676, %v3683
        %v4621 = vcombine.low %v3684, %v3708
        %v4622 = vcombine.low %v3715, %v3716
        %v4624 = vunpack.c.l.s4 1966171168
        %v4625 = vunpack.c.0.s8 %v4624
        %v4626 = vlaneseq
        %v4627 = vshrl.u32 %v4626, 7
        %v4628 = vsub.s32 %v4625, %v4627
        %v4629 = vrot.slane %v4619, %v4628
        %v4631 = vunpack.c.l.s4 1966171168
        %v4632 = vunpack.c.0.s8 %v4631
        %v4633 = vlaneseq
        %v4634 = vshrl.u32 %v4633, 7
        %v4635 = vsub.s32 %v4632, %v4634
        %v4636 = vrot.slane %v4620, %v4635
        %v4638 = vunpack.c.l.s4 1966171168
        %v4639 = vunpack.c.0.s8 %v4638
        %v4640 = vlaneseq
        %v4641 = vshrl.u32 %v4640, 7
        %v4642 = vsub.s32 %v4639, %v4641
        %v4643 = vrot.slane %v4621, %v4642
        %v4645 = vunpack.c.l.s4 1966171168
        %v4646 = vunpack.c.0.s8 %v4645
        %v4647 = vlaneseq
        %v4648 = vshrl.u32 %v4647, 7
        %v4649 = vsub.s32 %v4646, %v4648
        %v4650 = vrot.slane %v4622, %v4649
        %v4651 = vcombine.low %v4629, %v4636
        %v4652 = vcombine.high %v4629, %v4636
        %v4653 = vcombine.low %v4643, %v4650
        %v4654 = vcombine.high %v4643, %v4650
        %v4656 = vunpack.c.l.s4 1966171168
        %v4657 = vunpack.c.0.s8 %v4656
        %v4658 = vlaneseq
        %v4659 = vshrl.u32 %v4658, 7
        %v4660 = vsub.s32 %v4657, %v4659
        %v4661 = vrot.slane %v4651, %v4660
        %v4663 = vunpack.c.l.s4 1966171168
        %v4664 = vunpack.c.0.s8 %v4663
        %v4665 = vlaneseq
        %v4666 = vshrl.u32 %v4665, 7
        %v4667 = vsub.s32 %v4664, %v4666
        %v4668 = vrot.slane %v4652, %v4667
        %v4670 = vunpack.c.l.s4 1966171168
        %v4671 = vunpack.c.0.s8 %v4670
        %v4672 = vlaneseq
        %v4673 = vshrl.u32 %v4672, 7
        %v4674 = vsub.s32 %v4671, %v4673
        %v4675 = vrot.slane %v4653, %v4674
        %v4677 = vunpack.c.l.s4 1966171168
        %v4678 = vunpack.c.0.s8 %v4677
        %v4679 = vlaneseq
        %v4680 = vshrl.u32 %v4679, 7
        %v4681 = vsub.s32 %v4678, %v4680
        %v4682 = vrot.slane %v4654, %v4681
        %v4683 = vcombine.low %v4661, %v4675
        %v4684 = vcombine.high %v4661, %v4675
        %v4685 = vcombine.low %v4668, %v4682
        %v4686 = vcombine.low %v3740, %v3747
        %v4687 = vcombine.low %v3748, %v3772
        %v4688 = vcombine.low %v3779, %v3780
        %v4689 = vcombine.low %v3804, %v3811
        %v4691 = vunpack.c.l.s4 1966171168
        %v4692 = vunpack.c.0.s8 %v4691
        %v4693 = vlaneseq
        %v4694 = vshrl.u32 %v4693, 7
        %v4695 = vsub.s32 %v4692, %v4694
        %v4696 = vrot.slane %v4686, %v4695
        %v4698 = vunpack.c.l.s4 1966171168
        %v4699 = vunpack.c.0.s8 %v4698
        %v4700 = vlaneseq
        %v4701 = vshrl.u32 %v4700, 7
        %v4702 = vsub.s32 %v4699, %v4701
        %v4703 = vrot.slane %v4687, %v4702
        %v4705 = vunpack.c.l.s4 1966171168
        %v4706 = vunpack.c.0.s8 %v4705
        %v4707 = vlaneseq
        %v4708 = vshrl.u32 %v4707, 7
        %v4709 = vsub.s32 %v4706, %v4708
        %v4710 = vrot.slane %v4688, %v4709
        %v4712 = vunpack.c.l.s4 1966171168
        %v4713 = vunpack.c.0.s8 %v4712
        %v4714 = vlaneseq
        %v4715 = vshrl.u32 %v4714, 7
        %v4716 = vsub.s32 %v4713, %v4715
        %v4717 = vrot.slane %v4689, %v4716
        %v4718 = vcombine.low %v4696, %v4703
        %v4719 = vcombine.high %v4696, %v4703
        %v4720 = vcombine.low %v4710, %v4717
        %v4721 = vcombine.high %v4710, %v4717
        %v4723 = vunpack.c.l.s4 1966171168
        %v4724 = vunpack.c.0.s8 %v4723
        %v4725 = vlaneseq
        %v4726 = vshrl.u32 %v4725, 7
        %v4727 = vsub.s32 %v4724, %v4726
        %v4728 = vrot.slane %v4718, %v4727
        %v4730 = vunpack.c.l.s4 1966171168
        %v4731 = vunpack.c.0.s8 %v4730
        %v4732 = vlaneseq
        %v4733 = vshrl.u32 %v4732, 7
        %v4734 = vsub.s32 %v4731, %v4733
        %v4735 = vrot.slane %v4719, %v4734
        %v4737 = vunpack.c.l.s4 1966171168
        %v4738 = vunpack.c.0.s8 %v4737
        %v4739 = vlaneseq
        %v4740 = vshrl.u32 %v4739, 7
        %v4741 = vsub.s32 %v4738, %v4740
        %v4742 = vrot.slane %v4720, %v4741
        %v4744 = vunpack.c.l.s4 1966171168
        %v4745 = vunpack.c.0.s8 %v4744
        %v4746 = vlaneseq
        %v4747 = vshrl.u32 %v4746, 7
        %v4748 = vsub.s32 %v4745, %v4747
        %v4749 = vrot.slane %v4721, %v4748
        %v4750 = vcombine.low %v4728, %v4742
        %v4751 = vcombine.high %v4728, %v4742
        %v4752 = vcombine.low %v4735, %v4749
        %v4753 = vcombine.low %v3812, %v3836
        %v4754 = vcombine.low %v3843, %v3844
        %v4755 = vcombine.low %v3868, %v3875
        %v4756 = vcombine.low %v3876, %v3900
        %v4758 = vunpack.c.l.s4 1966171168
        %v4759 = vunpack.c.0.s8 %v4758
        %v4760 = vlaneseq
        %v4761 = vshrl.u32 %v4760, 7
        %v4762 = vsub.s32 %v4759, %v4761
        %v4763 = vrot.slane %v4753, %v4762
        %v4765 = vunpack.c.l.s4 1966171168
        %v4766 = vunpack.c.0.s8 %v4765
        %v4767 = vlaneseq
        %v4768 = vshrl.u32 %v4767, 7
        %v4769 = vsub.s32 %v4766, %v4768
        %v4770 = vrot.slane %v4754, %v4769
        %v4772 = vunpack.c.l.s4 1966171168
        %v4773 = vunpack.c.0.s8 %v4772
        %v4774 = vlaneseq
        %v4775 = vshrl.u32 %v4774, 7
        %v4776 = vsub.s32 %v4773, %v4775
        %v4777 = vrot.slane %v4755, %v4776
        %v4779 = vunpack.c.l.s4 1966171168
        %v4780 = vunpack.c.0.s8 %v4779
        %v4781 = vlaneseq
        %v4782 = vshrl.u32 %v4781, 7
        %v4783 = vsub.s32 %v4780, %v4782
        %v4784 = vrot.slane %v4756, %v4783
        %v4785 = vcombine.low %v4763, %v4770
        %v4786 = vcombine.high %v4763, %v4770
        %v4787 = vcombine.low %v4777, %v4784
        %v4788 = vcombine.high %v4777, %v4784
        %v4790 = vunpack.c.l.s4 1966171168
        %v4791 = vunpack.c.0.s8 %v4790
        %v4792 = vlaneseq
        %v4793 = vshrl.u32 %v4792, 7
        %v4794 = vsub.s32 %v4791, %v4793
        %v4795 = vrot.slane %v4785, %v4794
        %v4797 = vunpack.c.l.s4 1966171168
        %v4798 = vunpack.c.0.s8 %v4797
        %v4799 = vlaneseq
        %v4800 = vshrl.u32 %v4799, 7
        %v4801 = vsub.s32 %v4798, %v4800
        %v4802 = vrot.slane %v4786, %v4801
        %v4804 = vunpack.c.l.s4 1966171168
        %v4805 = vunpack.c.0.s8 %v4804
        %v4806 = vlaneseq
        %v4807 = vshrl.u32 %v4806, 7
        %v4808 = vsub.s32 %v4805, %v4807
        %v4809 = vrot.slane %v4787, %v4808
        %v4811 = vunpack.c.l.s4 1966171168
        %v4812 = vunpack.c.0.s8 %v4811
        %v4813 = vlaneseq
        %v4814 = vshrl.u32 %v4813, 7
        %v4815 = vsub.s32 %v4812, %v4814
        %v4816 = vrot.slane %v4788, %v4815
        %v4817 = vcombine.low %v4795, %v4809
        %v4818 = vcombine.high %v4795, %v4809
        %v4819 = vcombine.low %v4802, %v4816
        %v4820 = vcombine.low %v3907, %v3908
        %v4821 = vcombine.low %v3932, %v3939
        %v4822 = vcombine.low %v3940, %v3964
        %v4823 = vcombine.low %v3971, %v3972
        %v4825 = vunpack.c.l.s4 1966171168
        %v4826 = vunpack.c.0.s8 %v4825
        %v4827 = vlaneseq
        %v4828 = vshrl.u32 %v4827, 7
        %v4829 = vsub.s32 %v4826, %v4828
        %v4830 = vrot.slane %v4820, %v4829
        %v4832 = vunpack.c.l.s4 1966171168
        %v4833 = vunpack.c.0.s8 %v4832
        %v4834 = vlaneseq
        %v4835 = vshrl.u32 %v4834, 7
        %v4836 = vsub.s32 %v4833, %v4835
        %v4837 = vrot.slane %v4821, %v4836
        %v4839 = vunpack.c.l.s4 1966171168
        %v4840 = vunpack.c.0.s8 %v4839
        %v4841 = vlaneseq
        %v4842 = vshrl.u32 %v4841, 7
        %v4843 = vsub.s32 %v4840, %v4842
        %v4844 = vrot.slane %v4822, %v4843
        %v4846 = vunpack.c.l.s4 1966171168
        %v4847 = vunpack.c.0.s8 %v4846
        %v4848 = vlaneseq
        %v4849 = vshrl.u32 %v4848, 7
        %v4850 = vsub.s32 %v4847, %v4849
        %v4851 = vrot.slane %v4823, %v4850
        %v4852 = vcombine.low %v4830, %v4837
        %v4853 = vcombine.high %v4830, %v4837
        %v4854 = vcombine.low %v4844, %v4851
        %v4855 = vcombine.high %v4844, %v4851
        %v4857 = vunpack.c.l.s4 1966171168
        %v4858 = vunpack.c.0.s8 %v4857
        %v4859 = vlaneseq
        %v4860 = vshrl.u32 %v4859, 7
        %v4861 = vsub.s32 %v4858, %v4860
        %v4862 = vrot.slane %v4852, %v4861
        %v4864 = vunpack.c.l.s4 1966171168
        %v4865 = vunpack.c.0.s8 %v4864
        %v4866 = vlaneseq
        %v4867 = vshrl.u32 %v4866, 7
        %v4868 = vsub.s32 %v4865, %v4867
        %v4869 = vrot.slane %v4853, %v4868
        %v4871 = vunpack.c.l.s4 1966171168
        %v4872 = vunpack.c.0.s8 %v4871
        %v4873 = vlaneseq
        %v4874 = vshrl.u32 %v4873, 7
        %v4875 = vsub.s32 %v4872, %v4874
        %v4876 = vrot.slane %v4854, %v4875
        %v4878 = vunpack.c.l.s4 1966171168
        %v4879 = vunpack.c.0.s8 %v4878
        %v4880 = vlaneseq
        %v4881 = vshrl.u32 %v4880, 7
        %v4882 = vsub.s32 %v4879, %v4881
        %v4883 = vrot.slane %v4855, %v4882
        %v4884 = vcombine.low %v4862, %v4876
        %v4885 = vcombine.high %v4862, %v4876
        %v4886 = vcombine.low %v4869, %v4883
        %v4887 = vcombine.low %v3996, %v4003
        %v4888 = vcombine.low %v4004, %v4028
        %v4889 = vcombine.low %v4035, %v4036
        %v4890 = vcombine.low %v4060, %v4067
        %v4892 = vunpack.c.l.s4 1966171168
        %v4893 = vunpack.c.0.s8 %v4892
        %v4894 = vlaneseq
        %v4895 = vshrl.u32 %v4894, 7
        %v4896 = vsub.s32 %v4893, %v4895
        %v4897 = vrot.slane %v4887, %v4896
        %v4899 = vunpack.c.l.s4 1966171168
        %v4900 = vunpack.c.0.s8 %v4899
        %v4901 = vlaneseq
        %v4902 = vshrl.u32 %v4901, 7
        %v4903 = vsub.s32 %v4900, %v4902
        %v4904 = vrot.slane %v4888, %v4903
        %v4906 = vunpack.c.l.s4 1966171168
        %v4907 = vunpack.c.0.s8 %v4906
        %v4908 = vlaneseq
        %v4909 = vshrl.u32 %v4908, 7
        %v4910 = vsub.s32 %v4907, %v4909
        %v4911 = vrot.slane %v4889, %v4910
        %v4913 = vunpack.c.l.s4 1966171168
        %v4914 = vunpack.c.0.s8 %v4913
        %v4915 = vlaneseq
        %v4916 = vshrl.u32 %v4915, 7
        %v4917 = vsub.s32 %v4914, %v4916
        %v4918 = vrot.slane %v4890, %v4917
        %v4919 = vcombine.low %v4897, %v4904
        %v4920 = vcombine.high %v4897, %v4904
        %v4921 = vcombine.low %v4911, %v4918
        %v4922 = vcombine.high %v4911, %v4918
        %v4924 = vunpack.c.l.s4 1966171168
        %v4925 = vunpack.c.0.s8 %v4924
        %v4926 = vlaneseq
        %v4927 = vshrl.u32 %v4926, 7
        %v4928 = vsub.s32 %v4925, %v4927
        %v4929 = vrot.slane %v4919, %v4928
        %v4931 = vunpack.c.l.s4 1966171168
        %v4932 = vunpack.c.0.s8 %v4931
        %v4933 = vlaneseq
        %v4934 = vshrl.u32 %v4933, 7
        %v4935 = vsub.s32 %v4932, %v4934
        %v4936 = vrot.slane %v4920, %v4935
        %v4938 = vunpack.c.l.s4 1966171168
        %v4939 = vunpack.c.0.s8 %v4938
        %v4940 = vlaneseq
        %v4941 = vshrl.u32 %v4940, 7
        %v4942 = vsub.s32 %v4939, %v4941
        %v4943 = vrot.slane %v4921, %v4942
        %v4945 = vunpack.c.l.s4 1966171168
        %v4946 = vunpack.c.0.s8 %v4945
        %v4947 = vlaneseq
        %v4948 = vshrl.u32 %v4947, 7
        %v4949 = vsub.s32 %v4946, %v4948
        %v4950 = vrot.slane %v4922, %v4949
        %v4951 = vcombine.low %v4929, %v4943
        %v4952 = vcombine.high %v4929, %v4943
        %v4953 = vcombine.low %v4936, %v4950
        %v4954 = vcombine.low %v4068, %v4092
        %v4955 = vcombine.low %v4099, %v4100
        %v4956 = vcombine.low %v4124, %v4131
        %v4957 = vcombine.low %v4132, %v4156
        %v4959 = vunpack.c.l.s4 1966171168
        %v4960 = vunpack.c.0.s8 %v4959
        %v4961 = vlaneseq
        %v4962 = vshrl.u32 %v4961, 7
        %v4963 = vsub.s32 %v4960, %v4962
        %v4964 = vrot.slane %v4954, %v4963
        %v4966 = vunpack.c.l.s4 1966171168
        %v4967 = vunpack.c.0.s8 %v4966
        %v4968 = vlaneseq
        %v4969 = vshrl.u32 %v4968, 7
        %v4970 = vsub.s32 %v4967, %v4969
        %v4971 = vrot.slane %v4955, %v4970
        %v4973 = vunpack.c.l.s4 1966171168
        %v4974 = vunpack.c.0.s8 %v4973
        %v4975 = vlaneseq
        %v4976 = vshrl.u32 %v4975, 7
        %v4977 = vsub.s32 %v4974, %v4976
        %v4978 = vrot.slane %v4956, %v4977
        %v4980 = vunpack.c.l.s4 1966171168
        %v4981 = vunpack.c.0.s8 %v4980
        %v4982 = vlaneseq
        %v4983 = vshrl.u32 %v4982, 7
        %v4984 = vsub.s32 %v4981, %v4983
        %v4985 = vrot.slane %v4957, %v4984
        %v4986 = vcombine.low %v4964, %v4971
        %v4987 = vcombine.high %v4964, %v4971
        %v4988 = vcombine.low %v4978, %v4985
        %v4989 = vcombine.high %v4978, %v4985
        %v4991 = vunpack.c.l.s4 1966171168
        %v4992 = vunpack.c.0.s8 %v4991
        %v4993 = vlaneseq
        %v4994 = vshrl.u32 %v4993, 7
        %v4995 = vsub.s32 %v4992, %v4994
        %v4996 = vrot.slane %v4986, %v4995
        %v4998 = vunpack.c.l.s4 1966171168
        %v4999 = vunpack.c.0.s8 %v4998
        %v5000 = vlaneseq
        %v5001 = vshrl.u32 %v5000, 7
        %v5002 = vsub.s32 %v4999, %v5001
        %v5003 = vrot.slane %v4987, %v5002
        %v5005 = vunpack.c.l.s4 1966171168
        %v5006 = vunpack.c.0.s8 %v5005
        %v5007 = vlaneseq
        %v5008 = vshrl.u32 %v5007, 7
        %v5009 = vsub.s32 %v5006, %v5008
        %v5010 = vrot.slane %v4988, %v5009
        %v5012 = vunpack.c.l.s4 1966171168
        %v5013 = vunpack.c.0.s8 %v5012
        %v5014 = vlaneseq
        %v5015 = vshrl.u32 %v5014, 7
        %v5016 = vsub.s32 %v5013, %v5015
        %v5017 = vrot.slane %v4989, %v5016
        %v5018 = vcombine.low %v4996, %v5010
        %v5019 = vcombine.high %v4996, %v5010
        %v5020 = vcombine.low %v5003, %v5017
        %v5021 = vcombine.low %v4163, %v4164
        %v5022 = vcombine.low %v4188, %v4195
        %v5023 = vcombine.low %v4196, %v4220
        %v5024 = vcombine.low %v4227, %v4228
        %v5026 = vunpack.c.l.s4 1966171168
        %v5027 = vunpack.c.0.s8 %v5026
        %v5028 = vlaneseq
        %v5029 = vshrl.u32 %v5028, 7
        %v5030 = vsub.s32 %v5027, %v5029
        %v5031 = vrot.slane %v5021, %v5030
        %v5033 = vunpack.c.l.s4 1966171168
        %v5034 = vunpack.c.0.s8 %v5033
        %v5035 = vlaneseq
        %v5036 = vshrl.u32 %v5035, 7
        %v5037 = vsub.s32 %v5034, %v5036
        %v5038 = vrot.slane %v5022, %v5037
        %v5040 = vunpack.c.l.s4 1966171168
        %v5041 = vunpack.c.0.s8 %v5040
        %v5042 = vlaneseq
        %v5043 = vshrl.u32 %v5042, 7
        %v5044 = vsub.s32 %v5041, %v5043
        %v5045 = vrot.slane %v5023, %v5044
        %v5047 = vunpack.c.l.s4 1966171168
        %v5048 = vunpack.c.0.s8 %v5047
        %v5049 = vlaneseq
        %v5050 = vshrl.u32 %v5049, 7
        %v5051 = vsub.s32 %v5048, %v5050
        %v5052 = vrot.slane %v5024, %v5051
        %v5053 = vcombine.low %v5031, %v5038
        %v5054 = vcombine.high %v5031, %v5038
        %v5055 = vcombine.low %v5045, %v5052
        %v5056 = vcombine.high %v5045, %v5052
        %v5058 = vunpack.c.l.s4 1966171168
        %v5059 = vunpack.c.0.s8 %v5058
        %v5060 = vlaneseq
        %v5061 = vshrl.u32 %v5060, 7
        %v5062 = vsub.s32 %v5059, %v5061
        %v5063 = vrot.slane %v5053, %v5062
        %v5065 = vunpack.c.l.s4 1966171168
        %v5066 = vunpack.c.0.s8 %v5065
        %v5067 = vlaneseq
        %v5068 = vshrl.u32 %v5067, 7
        %v5069 = vsub.s32 %v5066, %v5068
        %v5070 = vrot.slane %v5054, %v5069
        %v5072 = vunpack.c.l.s4 1966171168
        %v5073 = vunpack.c.0.s8 %v5072
        %v5074 = vlaneseq
        %v5075 = vshrl.u32 %v5074, 7
        %v5076 = vsub.s32 %v5073, %v5075
        %v5077 = vrot.slane %v5055, %v5076
        %v5079 = vunpack.c.l.s4 1966171168
        %v5080 = vunpack.c.0.s8 %v5079
        %v5081 = vlaneseq
        %v5082 = vshrl.u32 %v5081, 7
        %v5083 = vsub.s32 %v5080, %v5082
        %v5084 = vrot.slane %v5056, %v5083
        %v5085 = vcombine.low %v5063, %v5077
        %v5086 = vcombine.high %v5063, %v5077
        %v5087 = vcombine.low %v5070, %v5084
        %v5172 = vunpack.c.l.b16 %v4229
        %v5173 = vunpack.c.l.b16 %v4230
        %v5174 = vunpack.c.l.b16 %v4231
        %v5175 = vunpack.c.l.b16 %v4232
        %v5176 = vunpack.c.l.b16 %v4233
        %v5177 = vunpack.c.l.b16 %v4234
        %v5178 = vunpack.c.l.b16 %v4235
        %v5179 = vunpack.c.l.b16 %v4236
        %v5180 = vunpack.c.l.b16 %v4237
        %v5181 = vunpack.c.l.b16 %v4238
        %v5182 = vunpack.c.l.b16 %v4239
        %v5183 = vunpack.c.l.b16 %v4240
        %v5184 = vunpack.c.l.b16 %v4241
        %v5185 = vunpack.c.l.b16 %v4242
        %v5186 = vunpack.c.l.b16 %v4243
        %v5187 = vunpack.c.l.b16 %v4244
        %v5188 = vunpack.c.l.b16 %v4245
        %v5189 = vunpack.c.l.b16 %v4246
        %v5190 = vunpack.c.l.b16 %v4247
        %v5191 = vunpack.c.l.b16 %v4248
        %v5192 = vunpack.c.l.b16 %v4249
        %v5193 = vunpack.c.l.b16 %v4250
        %v5194 = vunpack.c.l.b16 %v4251
        %v5195 = vunpack.c.l.b16 %v4252
        %v5196 = vunpack.c.l.b16 %v4253
        %v5197 = vunpack.c.l.b16 %v4254
        %v5198 = vunpack.c.l.b16 %v4255
        %v5199 = vunpack.c.l.b16 %v4256
        %v5200 = vunpack.c.l.b16 %v4257
        %v5201 = vunpack.c.l.b16 %v4258
        %v5202 = vunpack.c.l.b16 %v4259
        %v5203 = vunpack.c.l.b16 %v4260
        %v5204 = vunpack.c.l.b16 %v4261
        %v5205 = vunpack.c.l.b16 %v4262
        %v5206 = vunpack.c.l.b16 %v4263
        %v5207 = vunpack.c.l.b16 %v4264
        %v5208 = vunpack.c.l.b16 %v4265
        %v5209 = vunpack.c.l.b16 %v4266
        %v5210 = vunpack.c.l.b16 %v4267
        %v5211 = vunpack.c.l.b16 %v4268
        %v5212 = vunpack.c.l.b16 %v4269
        %v5213 = vunpack.c.l.b16 %v4270
        %v5214 = vunpack.c.l.b16 %v4271
        %v5215 = vunpack.c.l.b16 %v4272
        %v5216 = vunpack.c.l.b16 %v4273
        %v5217 = vunpack.c.l.b16 %v4274
        %v5218 = vunpack.c.l.b16 %v4275
        %v5219 = vunpack.c.l.b16 %v4276
        %v5220 = vpack.c.b16 %v5173, %v5172
        %v5221 = vpack.c.b16 %v5175, %v5174
        %v5222 = vpack.c.b16 %v5177, %v5176
        %v5223 = vpack.c.b16 %v5179, %v5178
        %v5224 = vpack.c.b16 %v5181, %v5180
        %v5225 = vpack.c.b16 %v5183, %v5182
        %v5226 = vpack.c.b16 %v5185, %v5184
        %v5227 = vpack.c.b16 %v5187, %v5186
        %v5228 = vpack.c.b16 %v5189, %v5188
        %v5229 = vpack.c.b16 %v5191, %v5190
        %v5230 = vpack.c.b16 %v5193, %v5192
        %v5231 = vpack.c.b16 %v5195, %v5194
        %v5232 = vpack.c.b16 %v5197, %v5196
        %v5233 = vpack.c.b16 %v5199, %v5198
        %v5234 = vpack.c.b16 %v5201, %v5200
        %v5235 = vpack.c.b16 %v5203, %v5202
        %v5236 = vpack.c.b16 %v5205, %v5204
        %v5237 = vpack.c.b16 %v5207, %v5206
        %v5238 = vpack.c.b16 %v5209, %v5208
        %v5239 = vpack.c.b16 %v5211, %v5210
        %v5240 = vpack.c.b16 %v5213, %v5212
        %v5241 = vpack.c.b16 %v5215, %v5214
        %v5242 = vpack.c.b16 %v5217, %v5216
        %v5243 = vpack.c.b16 %v5219, %v5218
        %5268 = vmatprep.subr.bf16.mxu0 0
        %5269 = vmatpush1.bf16.msra.mxu0 %v5220
        %5270 = vmatprep.subr.bf16.mxu0 0
        %5271 = vmatpush1.bf16.msra.mxu0 %v5221
        %5272 = vmatprep.subr.bf16.mxu0 0
        %5273 = vmatpush1.bf16.msra.mxu0 %v5222
        %5274 = vmatprep.subr.bf16.mxu0 0
        %5275 = vmatpush1.bf16.msra.mxu0 %v5223
        %5276 = vmatprep.subr.bf16.mxu0 0
        %5277 = vmatpush1.bf16.msra.mxu0 %v5224
        %5278 = vmatprep.subr.bf16.mxu0 0
        %5279 = vmatpush1.bf16.msra.mxu0 %v5225
        %5280 = vmatprep.subr.bf16.mxu0 0
        %5281 = vmatpush1.bf16.msra.mxu0 %v5226
        %5282 = vmatprep.subr.bf16.mxu0 0
        %5283 = vmatpush1.bf16.msra.mxu0 %v5227
        %5284 = vmatprep.subr.bf16.mxu0 0
        %5285 = vmatpush1.bf16.msra.mxu0 %v5228
        %5286 = vmatprep.subr.bf16.mxu0 0
        %5287 = vmatpush1.bf16.msra.mxu0 %v5229
        %5288 = vmatprep.subr.bf16.mxu0 0
        %5289 = vmatpush1.bf16.msra.mxu0 %v5230
        %5290 = vmatprep.subr.bf16.mxu0 0
        %5291 = vmatpush1.bf16.msra.mxu0 %v5231
        %5292 = vmatprep.subr.bf16.mxu0 0
        %5293 = vmatpush1.bf16.msra.mxu0 %v5232
        %5294 = vmatprep.subr.bf16.mxu0 0
        %5295 = vmatpush1.bf16.msra.mxu0 %v5233
        %5296 = vmatprep.subr.bf16.mxu0 0
        %5297 = vmatpush1.bf16.msra.mxu0 %v5234
        %5298 = vmatprep.subr.bf16.mxu0 0
        %5299 = vmatpush1.bf16.msra.mxu0 %v5235
        %5300 = vmatprep.mubr.bf16.mxu0 %v4350
        %5301 = vmatmul.mubr.bf16.gmra.mrb[0].mxu0 %v4348
        %v5302 = vpop.f32.mrb[0].mxu0
        %v5303 = vadd.f32 %v4282, %v5302
        %v5304 = vpop.f32.mrb[0].mxu0
        %v5305 = vpop.f32.mrb[0].mxu0
        %v5306 = vadd.f32 %v4282, %v5305
        %v5307 = vpop.f32.mrb[0].mxu0
        %5308 = vmatprep.mubr.bf16.mxu0 %v4417
        %5309 = vmatmul.mubr.bf16.gmra.mrb[0].mxu0 %v4415
        %v5310 = vpop.f32.mrb[0].mxu0
        %v5311 = vadd.f32 %v4282, %v5310
        %v5312 = vpop.f32.mrb[0].mxu0
        %v5313 = vpop.f32.mrb[0].mxu0
        %v5314 = vadd.f32 %v4282, %v5313
        %v5315 = vpop.f32.mrb[0].mxu0
        %5316 = vmatprep.mubr.bf16.mxu0 %v4484
        %5317 = vmatmul.mubr.bf16.gmra.mrb[0].mxu0 %v4482
        %v5318 = vpop.f32.mrb[0].mxu0
        %v5319 = vadd.f32 %v4282, %v5318
        %v5320 = vpop.f32.mrb[0].mxu0
        %v5321 = vpop.f32.mrb[0].mxu0
        %v5322 = vadd.f32 %v4282, %v5321
        %v5323 = vpop.f32.mrb[0].mxu0
        %5324 = vmatprep.mubr.bf16.mxu0 %v4551
        %5325 = vmatmul.mubr.bf16.gmra.mrb[0].mxu0 %v4549
        %v5326 = vpop.f32.mrb[0].mxu0
        %v5327 = vadd.f32 %v4282, %v5326
        %v5328 = vpop.f32.mrb[0].mxu0
        %v5329 = vpop.f32.mrb[0].mxu0
        %v5330 = vadd.f32 %v4282, %v5329
        %v5331 = vpop.f32.mrb[0].mxu0
        %5332 = vmatprep.mubr.bf16.mxu0 %v4618
        %5333 = vmatmul.mubr.bf16.gmra.mrb[0].mxu0 %v4616
        %v5334 = vpop.f32.mrb[0].mxu0
        %v5335 = vadd.f32 %v4282, %v5334
        %v5336 = vpop.f32.mrb[0].mxu0
        %v5337 = vpop.f32.mrb[0].mxu0
        %v5338 = vadd.f32 %v4282, %v5337
        %v5339 = vpop.f32.mrb[0].mxu0
        %5340 = vmatprep.mubr.bf16.mxu0 %v4685
        %5341 = vmatmul.mubr.bf16.gmra.mrb[0].mxu0 %v4683
        %v5342 = vpop.f32.mrb[0].mxu0
        %v5343 = vadd.f32 %v4282, %v5342
        %v5344 = vpop.f32.mrb[0].mxu0
        %v5345 = vpop.f32.mrb[0].mxu0
        %v5346 = vadd.f32 %v4282, %v5345
        %v5347 = vpop.f32.mrb[0].mxu0
        %5348 = vmatprep.mubr.bf16.mxu0 %v4752
        %5349 = vmatmul.mubr.bf16.gmra.mrb[0].mxu0 %v4750
        %v5350 = vpop.f32.mrb[0].mxu0
        %v5351 = vadd.f32 %v4282, %v5350
        %v5352 = vpop.f32.mrb[0].mxu0
        %v5353 = vpop.f32.mrb[0].mxu0
        %v5354 = vadd.f32 %v4282, %v5353
        %v5355 = vpop.f32.mrb[0].mxu0
        %5356 = vmatprep.mubr.bf16.mxu0 %v4819
        %5357 = vmatmul.mubr.bf16.gmra.mrb[0].mxu0 %v4817
        %v5358 = vpop.f32.mrb[0].mxu0
        %v5359 = vadd.f32 %v4282, %v5358
        %v5360 = vpop.f32.mrb[0].mxu0
        %v5361 = vpop.f32.mrb[0].mxu0
        %v5362 = vadd.f32 %v4282, %v5361
        %v5363 = vpop.f32.mrb[0].mxu0
        %5364 = vmatprep.mubr.bf16.mxu0 %v4886
        %5365 = vmatmul.mubr.bf16.gmra.mrb[0].mxu0 %v4884
        %v5366 = vpop.f32.mrb[0].mxu0
        %v5367 = vadd.f32 %v4282, %v5366
        %v5368 = vpop.f32.mrb[0].mxu0
        %v5369 = vpop.f32.mrb[0].mxu0
        %v5370 = vadd.f32 %v4282, %v5369
        %v5371 = vpop.f32.mrb[0].mxu0
        %5372 = vmatprep.mubr.bf16.mxu0 %v4953
        %5373 = vmatmul.mubr.bf16.gmra.mrb[0].mxu0 %v4951
        %v5374 = vpop.f32.mrb[0].mxu0
        %v5375 = vadd.f32 %v4282, %v5374
        %v5376 = vpop.f32.mrb[0].mxu0
        %v5377 = vpop.f32.mrb[0].mxu0
        %v5378 = vadd.f32 %v4282, %v5377
        %v5379 = vpop.f32.mrb[0].mxu0
        %5380 = vmatprep.mubr.bf16.mxu0 %v5020
        %5381 = vmatmul.mubr.bf16.gmra.mrb[0].mxu0 %v5018
        %v5382 = vpop.f32.mrb[0].mxu0
        %v5383 = vadd.f32 %v4282, %v5382
        %v5384 = vpop.f32.mrb[0].mxu0
        %v5385 = vpop.f32.mrb[0].mxu0
        %v5386 = vadd.f32 %v4282, %v5385
        %v5387 = vpop.f32.mrb[0].mxu0
        %5388 = vmatprep.mubr.bf16.mxu0 %v5087
        %5389 = vmatmul.mubr.bf16.gmra.mrb[0].mxu0 %v5085
        %v5390 = vpop.f32.mrb[0].mxu0
        %v5391 = vadd.f32 %v4282, %v5390
        %v5392 = vpop.f32.mrb[0].mxu0
        %v5393 = vpop.f32.mrb[0].mxu0
        %v5394 = vadd.f32 %v4282, %v5393
        %v5395 = vpop.f32.mrb[0].mxu0
        %5396 = vdwg.mxu0
        %5397 = vmatprep.subr.bf16.mxu0 0
        %5398 = vmatpush1.bf16.msra.mxu0 %v5236
        %5399 = vmatprep.subr.bf16.mxu0 0
        %5400 = vmatpush1.bf16.msra.mxu0 %v5237
        %5401 = vmatprep.subr.bf16.mxu0 0
        %5402 = vmatpush1.bf16.msra.mxu0 %v5238
        %5403 = vmatprep.subr.bf16.mxu0 0
        %5404 = vmatpush1.bf16.msra.mxu0 %v5239
        %5405 = vmatprep.subr.bf16.mxu0 0
        %5406 = vmatpush1.bf16.msra.mxu0 %v5240
        %5407 = vmatprep.subr.bf16.mxu0 0
        %5408 = vmatpush1.bf16.msra.mxu0 %v5241
        %5409 = vmatprep.subr.bf16.mxu0 0
        %5410 = vmatpush1.bf16.msra.mxu0 %v5242
        %5411 = vmatprep.subr.bf16.mxu0 0
        %5412 = vmatpush1.bf16.msra.mxu0 %v5243
        %5413 = vmatprep.subr.bf16.mxu0 0
        %5414 = vmatpush1.bf16.msra.mxu0 0
        %5415 = vmatprep.subr.bf16.mxu0 0
        %5416 = vmatpush1.bf16.msra.mxu0 0
        %5417 = vmatprep.subr.bf16.mxu0 0
        %5418 = vmatpush1.bf16.msra.mxu0 0
        %5419 = vmatprep.subr.bf16.mxu0 0
        %5420 = vmatpush1.bf16.msra.mxu0 0
        %5421 = vmatprep.subr.bf16.mxu0 0
        %5422 = vmatpush1.bf16.msra.mxu0 0
        %5423 = vmatprep.subr.bf16.mxu0 0
        %5424 = vmatpush1.bf16.msra.mxu0 0
        %5425 = vmatprep.subr.bf16.mxu0 0
        %5426 = vmatpush1.bf16.msra.mxu0 0
        %5427 = vmatprep.subr.bf16.mxu0 0
        %5428 = vmatpush1.bf16.msra.mxu0 0
        %5429 = vmatprep.mubr.bf16.mxu0 0
        %5430 = vmatmul.mubr.bf16.gmra.mrb[0].mxu0 %v4349
        %v5431 = vpop.f32.mrb[0].mxu0
        %v5432 = vadd.f32 %v5303, %v5431
        %v5433 = vpop.f32.mrb[0].mxu0
        %v5434 = vpop.f32.mrb[0].mxu0
        %v5435 = vadd.f32 %v5306, %v5434
        %v5436 = vpop.f32.mrb[0].mxu0
        %5437 = vmatprep.mubr.bf16.mxu0 0
        %5438 = vmatmul.mubr.bf16.gmra.mrb[0].mxu0 %v4416
        %v5439 = vpop.f32.mrb[0].mxu0
        %v5440 = vadd.f32 %v5311, %v5439
        %v5441 = vpop.f32.mrb[0].mxu0
        %v5442 = vpop.f32.mrb[0].mxu0
        %v5443 = vadd.f32 %v5314, %v5442
        %v5444 = vpop.f32.mrb[0].mxu0
        %5445 = vmatprep.mubr.bf16.mxu0 0
        %5446 = vmatmul.mubr.bf16.gmra.mrb[0].mxu0 %v4483
        %v5447 = vpop.f32.mrb[0].mxu0
        %v5448 = vadd.f32 %v5319, %v5447
        %v5449 = vpop.f32.mrb[0].mxu0
        %v5450 = vpop.f32.mrb[0].mxu0
        %v5451 = vadd.f32 %v5322, %v5450
        %v5452 = vpop.f32.mrb[0].mxu0
        %5453 = vmatprep.mubr.bf16.mxu0 0
        %5454 = vmatmul.mubr.bf16.gmra.mrb[0].mxu0 %v4550
        %v5455 = vpop.f32.mrb[0].mxu0
        %v5456 = vadd.f32 %v5327, %v5455
        %v5457 = vpop.f32.mrb[0].mxu0
        %v5458 = vpop.f32.mrb[0].mxu0
        %v5459 = vadd.f32 %v5330, %v5458
        %v5460 = vpop.f32.mrb[0].mxu0
        %5461 = vmatprep.mubr.bf16.mxu0 0
        %5462 = vmatmul.mubr.bf16.gmra.mrb[0].mxu0 %v4617
        %v5463 = vpop.f32.mrb[0].mxu0
        %v5464 = vadd.f32 %v5335, %v5463
        %v5465 = vpop.f32.mrb[0].mxu0
        %v5466 = vpop.f32.mrb[0].mxu0
        %v5467 = vadd.f32 %v5338, %v5466
        %v5468 = vpop.f32.mrb[0].mxu0
        %5469 = vmatprep.mubr.bf16.mxu0 0
        %5470 = vmatmul.mubr.bf16.gmra.mrb[0].mxu0 %v4684
        %v5471 = vpop.f32.mrb[0].mxu0
        %v5472 = vadd.f32 %v5343, %v5471
        %v5473 = vpop.f32.mrb[0].mxu0
        %v5474 = vpop.f32.mrb[0].mxu0
        %v5475 = vadd.f32 %v5346, %v5474
        %v5476 = vpop.f32.mrb[0].mxu0
        %5477 = vmatprep.mubr.bf16.mxu0 0
        %5478 = vmatmul.mubr.bf16.gmra.mrb[0].mxu0 %v4751
        %v5479 = vpop.f32.mrb[0].mxu0
        %v5480 = vadd.f32 %v5351, %v5479
        %v5481 = vpop.f32.mrb[0].mxu0
        %v5482 = vpop.f32.mrb[0].mxu0
        %v5483 = vadd.f32 %v5354, %v5482
        %v5484 = vpop.f32.mrb[0].mxu0
        %5485 = vmatprep.mubr.bf16.mxu0 0
        %5486 = vmatmul.mubr.bf16.gmra.mrb[0].mxu0 %v4818
        %v5487 = vpop.f32.mrb[0].mxu0
        %v5488 = vadd.f32 %v5359, %v5487
        %v5489 = vpop.f32.mrb[0].mxu0
        %v5490 = vpop.f32.mrb[0].mxu0
        %v5491 = vadd.f32 %v5362, %v5490
        %v5492 = vpop.f32.mrb[0].mxu0
        %5493 = vmatprep.mubr.bf16.mxu0 0
        %5494 = vmatmul.mubr.bf16.gmra.mrb[0].mxu0 %v4885
        %v5495 = vpop.f32.mrb[0].mxu0
        %v5496 = vadd.f32 %v5367, %v5495
        %v5497 = vpop.f32.mrb[0].mxu0
        %v5498 = vpop.f32.mrb[0].mxu0
        %v5499 = vadd.f32 %v5370, %v5498
        %v5500 = vpop.f32.mrb[0].mxu0
        %5501 = vmatprep.mubr.bf16.mxu0 0
        %5502 = vmatmul.mubr.bf16.gmra.mrb[0].mxu0 %v4952
        %v5503 = vpop.f32.mrb[0].mxu0
        %v5504 = vadd.f32 %v5375, %v5503
        %v5505 = vpop.f32.mrb[0].mxu0
        %v5506 = vpop.f32.mrb[0].mxu0
        %v5507 = vadd.f32 %v5378, %v5506
        %v5508 = vpop.f32.mrb[0].mxu0
        %5509 = vmatprep.mubr.bf16.mxu0 0
        %5510 = vmatmul.mubr.bf16.gmra.mrb[0].mxu0 %v5019
        %v5511 = vpop.f32.mrb[0].mxu0
        %v5512 = vadd.f32 %v5383, %v5511
        %v5513 = vpop.f32.mrb[0].mxu0
        %v5514 = vpop.f32.mrb[0].mxu0
        %v5515 = vadd.f32 %v5386, %v5514
        %v5516 = vpop.f32.mrb[0].mxu0
        %5517 = vmatprep.mubr.bf16.mxu0 0
        %5518 = vmatmul.mubr.bf16.gmra.mrb[0].mxu0 %v5086
        %v5519 = vpop.f32.mrb[0].mxu0
        %v5520 = vadd.f32 %v5391, %v5519
        %v5521 = vpop.f32.mrb[0].mxu0
        %v5522 = vpop.f32.mrb[0].mxu0
        %v5523 = vadd.f32 %v5394, %v5522
        %v5524 = vpop.f32.mrb[0].mxu0
        %5525 = vdwg.mxu0
        %vm5526 = vcmp.gt.f32.partialorder %v5432, 0.0
        %vm5527 = vcmp.gt.f32.partialorder %v5435, 0.0
        %vm5528 = vcmp.gt.f32.partialorder %v5440, 0.0
        %vm5529 = vcmp.gt.f32.partialorder %v5443, 0.0
        %vm5530 = vcmp.gt.f32.partialorder %v5448, 0.0
        %vm5531 = vcmp.gt.f32.partialorder %v5451, 0.0
        %vm5532 = vcmp.gt.f32.partialorder %v5456, 0.0
        %vm5533 = vcmp.gt.f32.partialorder %v5459, 0.0
        %vm5534 = vcmp.gt.f32.partialorder %v5464, 0.0
        %vm5535 = vcmp.gt.f32.partialorder %v5467, 0.0
        %vm5536 = vcmp.gt.f32.partialorder %v5472, 0.0
        %vm5537 = vcmp.gt.f32.partialorder %v5475, 0.0
        %vm5538 = vcmp.gt.f32.partialorder %v5480, 0.0
        %vm5539 = vcmp.gt.f32.partialorder %v5483, 0.0
        %vm5540 = vcmp.gt.f32.partialorder %v5488, 0.0
        %vm5541 = vcmp.gt.f32.partialorder %v5491, 0.0
        %vm5542 = vcmp.gt.f32.partialorder %v5496, 0.0
        %vm5543 = vcmp.gt.f32.partialorder %v5499, 0.0
        %vm5544 = vcmp.gt.f32.partialorder %v5504, 0.0
        %vm5545 = vcmp.gt.f32.partialorder %v5507, 0.0
        %vm5546 = vcmp.gt.f32.partialorder %v5512, 0.0
        %vm5547 = vcmp.gt.f32.partialorder %v5515, 0.0
        %vm5548 = vcmp.gt.f32.partialorder %v5520, 0.0
        %vm5549 = vcmp.gt.f32.partialorder %v5523, 0.0
        %v5550 = vmul.f32 %v5432, 1.442695
        %v5551 = vpow.pop %v5550
        %v5552 = vmul.f32 %v5435, 1.442695
        %v5553 = vpow.pop %v5552
        %v5554 = vmul.f32 %v5440, 1.442695
        %v5555 = vpow.pop %v5554
        %v5556 = vmul.f32 %v5443, 1.442695
        %v5557 = vpow.pop %v5556
        %v5558 = vmul.f32 %v5448, 1.442695
        %v5559 = vpow.pop %v5558
        %v5560 = vmul.f32 %v5451, 1.442695
        %v5561 = vpow.pop %v5560
        %v5562 = vmul.f32 %v5456, 1.442695
        %v5563 = vpow.pop %v5562
        %v5564 = vmul.f32 %v5459, 1.442695
        %v5565 = vpow.pop %v5564
        %v5566 = vmul.f32 %v5464, 1.442695
        %v5567 = vpow.pop %v5566
        %v5568 = vmul.f32 %v5467, 1.442695
        %v5569 = vpow.pop %v5568
        %v5570 = vmul.f32 %v5472, 1.442695
        %v5571 = vpow.pop %v5570
        %v5572 = vmul.f32 %v5475, 1.442695
        %v5573 = vpow.pop %v5572
        %v5574 = vmul.f32 %v5480, 1.442695
        %v5575 = vpow.pop %v5574
        %v5576 = vmul.f32 %v5483, 1.442695
        %v5577 = vpow.pop %v5576
        %v5578 = vmul.f32 %v5488, 1.442695
        %v5579 = vpow.pop %v5578
        %v5580 = vmul.f32 %v5491, 1.442695
        %v5581 = vpow.pop %v5580
        %v5582 = vmul.f32 %v5496, 1.442695
        %v5583 = vpow.pop %v5582
        %v5584 = vmul.f32 %v5499, 1.442695
        %v5585 = vpow.pop %v5584
        %v5586 = vmul.f32 %v5504, 1.442695
        %v5587 = vpow.pop %v5586
        %v5588 = vmul.f32 %v5507, 1.442695
        %v5589 = vpow.pop %v5588
        %v5590 = vmul.f32 %v5512, 1.442695
        %v5591 = vpow.pop %v5590
        %v5592 = vmul.f32 %v5515, 1.442695
        %v5593 = vpow.pop %v5592
        %v5594 = vmul.f32 %v5520, 1.442695
        %v5595 = vpow.pop %v5594
        %v5596 = vmul.f32 %v5523, 1.442695
        %v5597 = vpow.pop %v5596
        %v5598 = vsub.f32 %v5551, 1.0
        %v5599 = vsub.f32 %v5553, 1.0
        %v5600 = vsub.f32 %v5555, 1.0
        %v5601 = vsub.f32 %v5557, 1.0
        %v5602 = vsub.f32 %v5559, 1.0
        %v5603 = vsub.f32 %v5561, 1.0
        %v5604 = vsub.f32 %v5563, 1.0
        %v5605 = vsub.f32 %v5565, 1.0
        %v5606 = vsub.f32 %v5567, 1.0
        %v5607 = vsub.f32 %v5569, 1.0
        %v5608 = vsub.f32 %v5571, 1.0
        %v5609 = vsub.f32 %v5573, 1.0
        %v5610 = vsub.f32 %v5575, 1.0
        %v5611 = vsub.f32 %v5577, 1.0
        %v5612 = vsub.f32 %v5579, 1.0
        %v5613 = vsub.f32 %v5581, 1.0
        %v5614 = vsub.f32 %v5583, 1.0
        %v5615 = vsub.f32 %v5585, 1.0
        %v5616 = vsub.f32 %v5587, 1.0
        %v5617 = vsub.f32 %v5589, 1.0
        %v5618 = vsub.f32 %v5591, 1.0
        %v5619 = vsub.f32 %v5593, 1.0
        %v5620 = vsub.f32 %v5595, 1.0
        %v5621 = vsub.f32 %v5597, 1.0
        %v5622 = vmul.f32 %v5598, 1.6732632
        %v5623 = vmul.f32 %v5599, 1.6732632
        %v5624 = vmul.f32 %v5600, 1.6732632
        %v5625 = vmul.f32 %v5601, 1.6732632
        %v5626 = vmul.f32 %v5602, 1.6732632
        %v5627 = vmul.f32 %v5603, 1.6732632
        %v5628 = vmul.f32 %v5604, 1.6732632
        %v5629 = vmul.f32 %v5605, 1.6732632
        %v5630 = vmul.f32 %v5606, 1.6732632
        %v5631 = vmul.f32 %v5607, 1.6732632
        %v5632 = vmul.f32 %v5608, 1.6732632
        %v5633 = vmul.f32 %v5609, 1.6732632
        %v5634 = vmul.f32 %v5610, 1.6732632
        %v5635 = vmul.f32 %v5611, 1.6732632
        %v5636 = vmul.f32 %v5612, 1.6732632
        %v5637 = vmul.f32 %v5613, 1.6732632
        %v5638 = vmul.f32 %v5614, 1.6732632
        %v5639 = vmul.f32 %v5615, 1.6732632
        %v5640 = vmul.f32 %v5616, 1.6732632
        %v5641 = vmul.f32 %v5617, 1.6732632
        %v5642 = vmul.f32 %v5618, 1.6732632
        %v5643 = vmul.f32 %v5619, 1.6732632
        %v5644 = vmul.f32 %v5620, 1.6732632
        %v5645 = vmul.f32 %v5621, 1.6732632
        %v5646 = vsel %vm5526, %v5432, %v5622
        %v5647 = vsel %vm5527, %v5435, %v5623
        %v5648 = vsel %vm5528, %v5440, %v5624
        %v5649 = vsel %vm5529, %v5443, %v5625
        %v5650 = vsel %vm5530, %v5448, %v5626
        %v5651 = vsel %vm5531, %v5451, %v5627
        %v5652 = vsel %vm5532, %v5456, %v5628
        %v5653 = vsel %vm5533, %v5459, %v5629
        %v5654 = vsel %vm5534, %v5464, %v5630
        %v5655 = vsel %vm5535, %v5467, %v5631
        %v5656 = vsel %vm5536, %v5472, %v5632
        %v5657 = vsel %vm5537, %v5475, %v5633
        %v5658 = vsel %vm5538, %v5480, %v5634
        %v5659 = vsel %vm5539, %v5483, %v5635
        %v5660 = vsel %vm5540, %v5488, %v5636
        %v5661 = vsel %vm5541, %v5491, %v5637
        %v5662 = vsel %vm5542, %v5496, %v5638
        %v5663 = vsel %vm5543, %v5499, %v5639
        %v5664 = vsel %vm5544, %v5504, %v5640
        %v5665 = vsel %vm5545, %v5507, %v5641
        %v5666 = vsel %vm5546, %v5512, %v5642
        %v5667 = vsel %vm5547, %v5515, %v5643
        %v5668 = vsel %vm5548, %v5520, %v5644
        %v5669 = vsel %vm5549, %v5523, %v5645
        %v5670 = vmul.f32 %v5646, 1.050701
        %v5671 = vmul.f32 %v5647, 1.050701
        %v5672 = vmul.f32 %v5648, 1.050701
        %v5673 = vmul.f32 %v5649, 1.050701
        %v5674 = vmul.f32 %v5650, 1.050701
        %v5675 = vmul.f32 %v5651, 1.050701
        %v5676 = vmul.f32 %v5652, 1.050701
        %v5677 = vmul.f32 %v5653, 1.050701
        %v5678 = vmul.f32 %v5654, 1.050701
        %v5679 = vmul.f32 %v5655, 1.050701
        %v5680 = vmul.f32 %v5656, 1.050701
        %v5681 = vmul.f32 %v5657, 1.050701
        %v5682 = vmul.f32 %v5658, 1.050701
        %v5683 = vmul.f32 %v5659, 1.050701
        %v5684 = vmul.f32 %v5660, 1.050701
        %v5685 = vmul.f32 %v5661, 1.050701
        %v5686 = vmul.f32 %v5662, 1.050701
        %v5687 = vmul.f32 %v5663, 1.050701
        %v5688 = vmul.f32 %v5664, 1.050701
        %v5689 = vmul.f32 %v5665, 1.050701
        %v5690 = vmul.f32 %v5666, 1.050701
        %v5691 = vmul.f32 %v5667, 1.050701
        %v5692 = vmul.f32 %v5668, 1.050701
        %v5693 = vmul.f32 %v5669, 1.050701
        %v5718 = vcombine.high %v5670, %v5670
        %v5720 = vunpack.c.l.s4 1983009808
        %v5721 = vunpack.c.0.s8 %v5720
        %v5722 = vlaneseq
        %v5723 = vshrl.u32 %v5722, 7
        %v5724 = vsub.s32 %v5721, %v5723
        %v5725 = vrot.slane %v5670, %v5724
        %v5727 = vunpack.c.l.s4 1983009808
        %v5728 = vunpack.c.0.s8 %v5727
        %v5729 = vlaneseq
        %v5730 = vshrl.u32 %v5729, 7
        %v5731 = vsub.s32 %v5728, %v5730
        %v5732 = vrot.slane %v5718, %v5731
        %v5733 = vcombine.high %v5725, %v5725
        %v5734 = vcombine.high %v5732, %v5732
        %v5735 = vcombine.high %v5671, %v5671
        %v5737 = vunpack.c.l.s4 1983009808
        %v5738 = vunpack.c.0.s8 %v5737
        %v5739 = vlaneseq
        %v5740 = vshrl.u32 %v5739, 7
        %v5741 = vsub.s32 %v5738, %v5740
        %v5742 = vrot.slane %v5671, %v5741
        %v5744 = vunpack.c.l.s4 1983009808
        %v5745 = vunpack.c.0.s8 %v5744
        %v5746 = vlaneseq
        %v5747 = vshrl.u32 %v5746, 7
        %v5748 = vsub.s32 %v5745, %v5747
        %v5749 = vrot.slane %v5735, %v5748
        %v5750 = vcombine.high %v5742, %v5742
        %v5751 = vcombine.high %v5749, %v5749
        %v5752 = vcombine.high %v5672, %v5672
        %v5754 = vunpack.c.l.s4 1983009808
        %v5755 = vunpack.c.0.s8 %v5754
        %v5756 = vlaneseq
        %v5757 = vshrl.u32 %v5756, 7
        %v5758 = vsub.s32 %v5755, %v5757
        %v5759 = vrot.slane %v5672, %v5758
        %v5761 = vunpack.c.l.s4 1983009808
        %v5762 = vunpack.c.0.s8 %v5761
        %v5763 = vlaneseq
        %v5764 = vshrl.u32 %v5763, 7
        %v5765 = vsub.s32 %v5762, %v5764
        %v5766 = vrot.slane %v5752, %v5765
        %v5767 = vcombine.high %v5759, %v5759
        %v5768 = vcombine.high %v5766, %v5766
        %v5769 = vcombine.high %v5673, %v5673
        %v5771 = vunpack.c.l.s4 1983009808
        %v5772 = vunpack.c.0.s8 %v5771
        %v5773 = vlaneseq
        %v5774 = vshrl.u32 %v5773, 7
        %v5775 = vsub.s32 %v5772, %v5774
        %v5776 = vrot.slane %v5673, %v5775
        %v5778 = vunpack.c.l.s4 1983009808
        %v5779 = vunpack.c.0.s8 %v5778
        %v5780 = vlaneseq
        %v5781 = vshrl.u32 %v5780, 7
        %v5782 = vsub.s32 %v5779, %v5781
        %v5783 = vrot.slane %v5769, %v5782
        %v5784 = vcombine.high %v5776, %v5776
        %v5785 = vcombine.high %v5783, %v5783
        %v5786 = vcombine.high %v5674, %v5674
        %v5788 = vunpack.c.l.s4 1983009808
        %v5789 = vunpack.c.0.s8 %v5788
        %v5790 = vlaneseq
        %v5791 = vshrl.u32 %v5790, 7
        %v5792 = vsub.s32 %v5789, %v5791
        %v5793 = vrot.slane %v5674, %v5792
        %v5795 = vunpack.c.l.s4 1983009808
        %v5796 = vunpack.c.0.s8 %v5795
        %v5797 = vlaneseq
        %v5798 = vshrl.u32 %v5797, 7
        %v5799 = vsub.s32 %v5796, %v5798
        %v5800 = vrot.slane %v5786, %v5799
        %v5801 = vcombine.high %v5793, %v5793
        %v5802 = vcombine.high %v5800, %v5800
        %v5803 = vcombine.high %v5675, %v5675
        %v5805 = vunpack.c.l.s4 1983009808
        %v5806 = vunpack.c.0.s8 %v5805
        %v5807 = vlaneseq
        %v5808 = vshrl.u32 %v5807, 7
        %v5809 = vsub.s32 %v5806, %v5808
        %v5810 = vrot.slane %v5675, %v5809
        %v5812 = vunpack.c.l.s4 1983009808
        %v5813 = vunpack.c.0.s8 %v5812
        %v5814 = vlaneseq
        %v5815 = vshrl.u32 %v5814, 7
        %v5816 = vsub.s32 %v5813, %v5815
        %v5817 = vrot.slane %v5803, %v5816
        %v5818 = vcombine.high %v5810, %v5810
        %v5819 = vcombine.high %v5817, %v5817
        %v5820 = vcombine.high %v5676, %v5676
        %v5822 = vunpack.c.l.s4 1983009808
        %v5823 = vunpack.c.0.s8 %v5822
        %v5824 = vlaneseq
        %v5825 = vshrl.u32 %v5824, 7
        %v5826 = vsub.s32 %v5823, %v5825
        %v5827 = vrot.slane %v5676, %v5826
        %v5829 = vunpack.c.l.s4 1983009808
        %v5830 = vunpack.c.0.s8 %v5829
        %v5831 = vlaneseq
        %v5832 = vshrl.u32 %v5831, 7
        %v5833 = vsub.s32 %v5830, %v5832
        %v5834 = vrot.slane %v5820, %v5833
        %v5835 = vcombine.high %v5827, %v5827
        %v5836 = vcombine.high %v5834, %v5834
        %v5837 = vcombine.high %v5677, %v5677
        %v5839 = vunpack.c.l.s4 1983009808
        %v5840 = vunpack.c.0.s8 %v5839
        %v5841 = vlaneseq
        %v5842 = vshrl.u32 %v5841, 7
        %v5843 = vsub.s32 %v5840, %v5842
        %v5844 = vrot.slane %v5677, %v5843
        %v5846 = vunpack.c.l.s4 1983009808
        %v5847 = vunpack.c.0.s8 %v5846
        %v5848 = vlaneseq
        %v5849 = vshrl.u32 %v5848, 7
        %v5850 = vsub.s32 %v5847, %v5849
        %v5851 = vrot.slane %v5837, %v5850
        %v5852 = vcombine.high %v5844, %v5844
        %v5853 = vcombine.high %v5851, %v5851
        %v5854 = vcombine.high %v5678, %v5678
        %v5856 = vunpack.c.l.s4 1983009808
        %v5857 = vunpack.c.0.s8 %v5856
        %v5858 = vlaneseq
        %v5859 = vshrl.u32 %v5858, 7
        %v5860 = vsub.s32 %v5857, %v5859
        %v5861 = vrot.slane %v5678, %v5860
        %v5863 = vunpack.c.l.s4 1983009808
        %v5864 = vunpack.c.0.s8 %v5863
        %v5865 = vlaneseq
        %v5866 = vshrl.u32 %v5865, 7
        %v5867 = vsub.s32 %v5864, %v5866
        %v5868 = vrot.slane %v5854, %v5867
        %v5869 = vcombine.high %v5861, %v5861
        %v5870 = vcombine.high %v5868, %v5868
        %v5871 = vcombine.high %v5679, %v5679
        %v5873 = vunpack.c.l.s4 1983009808
        %v5874 = vunpack.c.0.s8 %v5873
        %v5875 = vlaneseq
        %v5876 = vshrl.u32 %v5875, 7
        %v5877 = vsub.s32 %v5874, %v5876
        %v5878 = vrot.slane %v5679, %v5877
        %v5880 = vunpack.c.l.s4 1983009808
        %v5881 = vunpack.c.0.s8 %v5880
        %v5882 = vlaneseq
        %v5883 = vshrl.u32 %v5882, 7
        %v5884 = vsub.s32 %v5881, %v5883
        %v5885 = vrot.slane %v5871, %v5884
        %v5886 = vcombine.high %v5878, %v5878
        %v5887 = vcombine.high %v5885, %v5885
        %v5888 = vcombine.high %v5680, %v5680
        %v5890 = vunpack.c.l.s4 1983009808
        %v5891 = vunpack.c.0.s8 %v5890
        %v5892 = vlaneseq
        %v5893 = vshrl.u32 %v5892, 7
        %v5894 = vsub.s32 %v5891, %v5893
        %v5895 = vrot.slane %v5680, %v5894
        %v5897 = vunpack.c.l.s4 1983009808
        %v5898 = vunpack.c.0.s8 %v5897
        %v5899 = vlaneseq
        %v5900 = vshrl.u32 %v5899, 7
        %v5901 = vsub.s32 %v5898, %v5900
        %v5902 = vrot.slane %v5888, %v5901
        %v5903 = vcombine.high %v5895, %v5895
        %v5904 = vcombine.high %v5902, %v5902
        %v5905 = vcombine.high %v5681, %v5681
        %v5907 = vunpack.c.l.s4 1983009808
        %v5908 = vunpack.c.0.s8 %v5907
        %v5909 = vlaneseq
        %v5910 = vshrl.u32 %v5909, 7
        %v5911 = vsub.s32 %v5908, %v5910
        %v5912 = vrot.slane %v5681, %v5911
        %v5914 = vunpack.c.l.s4 1983009808
        %v5915 = vunpack.c.0.s8 %v5914
        %v5916 = vlaneseq
        %v5917 = vshrl.u32 %v5916, 7
        %v5918 = vsub.s32 %v5915, %v5917
        %v5919 = vrot.slane %v5905, %v5918
        %v5920 = vcombine.high %v5912, %v5912
        %v5921 = vcombine.high %v5919, %v5919
        %v5922 = vcombine.high %v5682, %v5682
        %v5924 = vunpack.c.l.s4 1983009808
        %v5925 = vunpack.c.0.s8 %v5924
        %v5926 = vlaneseq
        %v5927 = vshrl.u32 %v5926, 7
        %v5928 = vsub.s32 %v5925, %v5927
        %v5929 = vrot.slane %v5682, %v5928
        %v5931 = vunpack.c.l.s4 1983009808
        %v5932 = vunpack.c.0.s8 %v5931
        %v5933 = vlaneseq
        %v5934 = vshrl.u32 %v5933, 7
        %v5935 = vsub.s32 %v5932, %v5934
        %v5936 = vrot.slane %v5922, %v5935
        %v5937 = vcombine.high %v5929, %v5929
        %v5938 = vcombine.high %v5936, %v5936
        %v5939 = vcombine.high %v5683, %v5683
        %v5941 = vunpack.c.l.s4 1983009808
        %v5942 = vunpack.c.0.s8 %v5941
        %v5943 = vlaneseq
        %v5944 = vshrl.u32 %v5943, 7
        %v5945 = vsub.s32 %v5942, %v5944
        %v5946 = vrot.slane %v5683, %v5945
        %v5948 = vunpack.c.l.s4 1983009808
        %v5949 = vunpack.c.0.s8 %v5948
        %v5950 = vlaneseq
        %v5951 = vshrl.u32 %v5950, 7
        %v5952 = vsub.s32 %v5949, %v5951
        %v5953 = vrot.slane %v5939, %v5952
        %v5954 = vcombine.high %v5946, %v5946
        %v5955 = vcombine.high %v5953, %v5953
        %v5956 = vcombine.high %v5684, %v5684
        %v5958 = vunpack.c.l.s4 1983009808
        %v5959 = vunpack.c.0.s8 %v5958
        %v5960 = vlaneseq
        %v5961 = vshrl.u32 %v5960, 7
        %v5962 = vsub.s32 %v5959, %v5961
        %v5963 = vrot.slane %v5684, %v5962
        %v5965 = vunpack.c.l.s4 1983009808
        %v5966 = vunpack.c.0.s8 %v5965
        %v5967 = vlaneseq
        %v5968 = vshrl.u32 %v5967, 7
        %v5969 = vsub.s32 %v5966, %v5968
        %v5970 = vrot.slane %v5956, %v5969
        %v5971 = vcombine.high %v5963, %v5963
        %v5972 = vcombine.high %v5970, %v5970
        %v5973 = vcombine.high %v5685, %v5685
        %v5975 = vunpack.c.l.s4 1983009808
        %v5976 = vunpack.c.0.s8 %v5975
        %v5977 = vlaneseq
        %v5978 = vshrl.u32 %v5977, 7
        %v5979 = vsub.s32 %v5976, %v5978
        %v5980 = vrot.slane %v5685, %v5979
        %v5982 = vunpack.c.l.s4 1983009808
        %v5983 = vunpack.c.0.s8 %v5982
        %v5984 = vlaneseq
        %v5985 = vshrl.u32 %v5984, 7
        %v5986 = vsub.s32 %v5983, %v5985
        %v5987 = vrot.slane %v5973, %v5986
        %v5988 = vcombine.high %v5980, %v5980
        %v5989 = vcombine.high %v5987, %v5987
        %v5990 = vcombine.high %v5686, %v5686
        %v5992 = vunpack.c.l.s4 1983009808
        %v5993 = vunpack.c.0.s8 %v5992
        %v5994 = vlaneseq
        %v5995 = vshrl.u32 %v5994, 7
        %v5996 = vsub.s32 %v5993, %v5995
        %v5997 = vrot.slane %v5686, %v5996
        %v5999 = vunpack.c.l.s4 1983009808
        %v6000 = vunpack.c.0.s8 %v5999
        %v6001 = vlaneseq
        %v6002 = vshrl.u32 %v6001, 7
        %v6003 = vsub.s32 %v6000, %v6002
        %v6004 = vrot.slane %v5990, %v6003
        %v6005 = vcombine.high %v5997, %v5997
        %v6006 = vcombine.high %v6004, %v6004
        %v6007 = vcombine.high %v5687, %v5687
        %v6009 = vunpack.c.l.s4 1983009808
        %v6010 = vunpack.c.0.s8 %v6009
        %v6011 = vlaneseq
        %v6012 = vshrl.u32 %v6011, 7
        %v6013 = vsub.s32 %v6010, %v6012
        %v6014 = vrot.slane %v5687, %v6013
        %v6016 = vunpack.c.l.s4 1983009808
        %v6017 = vunpack.c.0.s8 %v6016
        %v6018 = vlaneseq
        %v6019 = vshrl.u32 %v6018, 7
        %v6020 = vsub.s32 %v6017, %v6019
        %v6021 = vrot.slane %v6007, %v6020
        %v6022 = vcombine.high %v6014, %v6014
        %v6023 = vcombine.high %v6021, %v6021
        %v6024 = vcombine.high %v5688, %v5688
        %v6026 = vunpack.c.l.s4 1983009808
        %v6027 = vunpack.c.0.s8 %v6026
        %v6028 = vlaneseq
        %v6029 = vshrl.u32 %v6028, 7
        %v6030 = vsub.s32 %v6027, %v6029
        %v6031 = vrot.slane %v5688, %v6030
        %v6033 = vunpack.c.l.s4 1983009808
        %v6034 = vunpack.c.0.s8 %v6033
        %v6035 = vlaneseq
        %v6036 = vshrl.u32 %v6035, 7
        %v6037 = vsub.s32 %v6034, %v6036
        %v6038 = vrot.slane %v6024, %v6037
        %v6039 = vcombine.high %v6031, %v6031
        %v6040 = vcombine.high %v6038, %v6038
        %v6041 = vcombine.high %v5689, %v5689
        %v6043 = vunpack.c.l.s4 1983009808
        %v6044 = vunpack.c.0.s8 %v6043
        %v6045 = vlaneseq
        %v6046 = vshrl.u32 %v6045, 7
        %v6047 = vsub.s32 %v6044, %v6046
        %v6048 = vrot.slane %v5689, %v6047
        %v6050 = vunpack.c.l.s4 1983009808
        %v6051 = vunpack.c.0.s8 %v6050
        %v6052 = vlaneseq
        %v6053 = vshrl.u32 %v6052, 7
        %v6054 = vsub.s32 %v6051, %v6053
        %v6055 = vrot.slane %v6041, %v6054
        %v6056 = vcombine.high %v6048, %v6048
        %v6057 = vcombine.high %v6055, %v6055
        %v6058 = vcombine.high %v5690, %v5690
        %v6060 = vunpack.c.l.s4 1983009808
        %v6061 = vunpack.c.0.s8 %v6060
        %v6062 = vlaneseq
        %v6063 = vshrl.u32 %v6062, 7
        %v6064 = vsub.s32 %v6061, %v6063
        %v6065 = vrot.slane %v5690, %v6064
        %v6067 = vunpack.c.l.s4 1983009808
        %v6068 = vunpack.c.0.s8 %v6067
        %v6069 = vlaneseq
        %v6070 = vshrl.u32 %v6069, 7
        %v6071 = vsub.s32 %v6068, %v6070
        %v6072 = vrot.slane %v6058, %v6071
        %v6073 = vcombine.high %v6065, %v6065
        %v6074 = vcombine.high %v6072, %v6072
        %v6075 = vcombine.high %v5691, %v5691
        %v6077 = vunpack.c.l.s4 1983009808
        %v6078 = vunpack.c.0.s8 %v6077
        %v6079 = vlaneseq
        %v6080 = vshrl.u32 %v6079, 7
        %v6081 = vsub.s32 %v6078, %v6080
        %v6082 = vrot.slane %v5691, %v6081
        %v6084 = vunpack.c.l.s4 1983009808
        %v6085 = vunpack.c.0.s8 %v6084
        %v6086 = vlaneseq
        %v6087 = vshrl.u32 %v6086, 7
        %v6088 = vsub.s32 %v6085, %v6087
        %v6089 = vrot.slane %v6075, %v6088
        %v6090 = vcombine.high %v6082, %v6082
        %v6091 = vcombine.high %v6089, %v6089
        %v6092 = vcombine.high %v5692, %v5692
        %v6094 = vunpack.c.l.s4 1983009808
        %v6095 = vunpack.c.0.s8 %v6094
        %v6096 = vlaneseq
        %v6097 = vshrl.u32 %v6096, 7
        %v6098 = vsub.s32 %v6095, %v6097
        %v6099 = vrot.slane %v5692, %v6098
        %v6101 = vunpack.c.l.s4 1983009808
        %v6102 = vunpack.c.0.s8 %v6101
        %v6103 = vlaneseq
        %v6104 = vshrl.u32 %v6103, 7
        %v6105 = vsub.s32 %v6102, %v6104
        %v6106 = vrot.slane %v6092, %v6105
        %v6107 = vcombine.high %v6099, %v6099
        %v6108 = vcombine.high %v6106, %v6106
        %v6109 = vcombine.high %v5693, %v5693
        %v6111 = vunpack.c.l.s4 1983009808
        %v6112 = vunpack.c.0.s8 %v6111
        %v6113 = vlaneseq
        %v6114 = vshrl.u32 %v6113, 7
        %v6115 = vsub.s32 %v6112, %v6114
        %v6116 = vrot.slane %v5693, %v6115
        %v6118 = vunpack.c.l.s4 1983009808
        %v6119 = vunpack.c.0.s8 %v6118
        %v6120 = vlaneseq
        %v6121 = vshrl.u32 %v6120, 7
        %v6122 = vsub.s32 %v6119, %v6121
        %v6123 = vrot.slane %v6109, %v6122
        %v6124 = vcombine.high %v6116, %v6116
        %v6125 = vcombine.high %v6123, %v6123
        %v6126 = vcombine.low %v5725, %v5733
        %v6128 = vunpack.c.l.s4 1983009808
        %v6129 = vunpack.c.0.s8 %v6128
        %v6130 = vlaneseq
        %v6131 = vshrl.u32 %v6130, 7
        %v6132 = vsub.s32 %v6129, %v6131
        %v6133 = vrot.slane %v6126, %v6132
        %v6135 = vunpack.c.l.s4 1983009808
        %v6136 = vunpack.c.0.s8 %v6135
        %v6137 = vlaneseq
        %v6138 = vshrl.u32 %v6137, 7
        %v6139 = vsub.s32 %v6136, %v6138
        %v6140 = vrot.slane %v5732, %v6139
        %v6141 = vcombine.low %v6133, %v6140
        %v6142 = vcombine.low %v5734, %v5742
        %v6144 = vunpack.c.l.s4 1983009808
        %v6145 = vunpack.c.0.s8 %v6144
        %v6146 = vlaneseq
        %v6147 = vshrl.u32 %v6146, 7
        %v6148 = vsub.s32 %v6145, %v6147
        %v6149 = vrot.slane %v6142, %v6148
        %v6151 = vunpack.c.l.s4 1983009808
        %v6152 = vunpack.c.0.s8 %v6151
        %v6153 = vlaneseq
        %v6154 = vshrl.u32 %v6153, 7
        %v6155 = vsub.s32 %v6152, %v6154
        %v6156 = vrot.slane %v5750, %v6155
        %v6157 = vcombine.low %v6149, %v6156
        %v6158 = vcombine.low %v5749, %v5751
        %v6160 = vunpack.c.l.s4 1983009808
        %v6161 = vunpack.c.0.s8 %v6160
        %v6162 = vlaneseq
        %v6163 = vshrl.u32 %v6162, 7
        %v6164 = vsub.s32 %v6161, %v6163
        %v6165 = vrot.slane %v6158, %v6164
        %v6167 = vunpack.c.l.s4 1983009808
        %v6168 = vunpack.c.0.s8 %v6167
        %v6169 = vlaneseq
        %v6170 = vshrl.u32 %v6169, 7
        %v6171 = vsub.s32 %v6168, %v6170
        %v6172 = vrot.slane %v5759, %v6171
        %v6173 = vcombine.low %v6165, %v6172
        %v6174 = vcombine.low %v5767, %v5766
        %v6176 = vunpack.c.l.s4 1983009808
        %v6177 = vunpack.c.0.s8 %v6176
        %v6178 = vlaneseq
        %v6179 = vshrl.u32 %v6178, 7
        %v6180 = vsub.s32 %v6177, %v6179
        %v6181 = vrot.slane %v6174, %v6180
        %v6183 = vunpack.c.l.s4 1983009808
        %v6184 = vunpack.c.0.s8 %v6183
        %v6185 = vlaneseq
        %v6186 = vshrl.u32 %v6185, 7
        %v6187 = vsub.s32 %v6184, %v6186
        %v6188 = vrot.slane %v5768, %v6187
        %v6189 = vcombine.low %v6181, %v6188
        %v6190 = vcombine.low %v5776, %v5784
        %v6192 = vunpack.c.l.s4 1983009808
        %v6193 = vunpack.c.0.s8 %v6192
        %v6194 = vlaneseq
        %v6195 = vshrl.u32 %v6194, 7
        %v6196 = vsub.s32 %v6193, %v6195
        %v6197 = vrot.slane %v6190, %v6196
        %v6199 = vunpack.c.l.s4 1983009808
        %v6200 = vunpack.c.0.s8 %v6199
        %v6201 = vlaneseq
        %v6202 = vshrl.u32 %v6201, 7
        %v6203 = vsub.s32 %v6200, %v6202
        %v6204 = vrot.slane %v5783, %v6203
        %v6205 = vcombine.low %v6197, %v6204
        %v6206 = vcombine.low %v5785, %v5793
        %v6208 = vunpack.c.l.s4 1983009808
        %v6209 = vunpack.c.0.s8 %v6208
        %v6210 = vlaneseq
        %v6211 = vshrl.u32 %v6210, 7
        %v6212 = vsub.s32 %v6209, %v6211
        %v6213 = vrot.slane %v6206, %v6212
        %v6215 = vunpack.c.l.s4 1983009808
        %v6216 = vunpack.c.0.s8 %v6215
        %v6217 = vlaneseq
        %v6218 = vshrl.u32 %v6217, 7
        %v6219 = vsub.s32 %v6216, %v6218
        %v6220 = vrot.slane %v5801, %v6219
        %v6221 = vcombine.low %v6213, %v6220
        %v6222 = vcombine.low %v5800, %v5802
        %v6224 = vunpack.c.l.s4 1983009808
        %v6225 = vunpack.c.0.s8 %v6224
        %v6226 = vlaneseq
        %v6227 = vshrl.u32 %v6226, 7
        %v6228 = vsub.s32 %v6225, %v6227
        %v6229 = vrot.slane %v6222, %v6228
        %v6231 = vunpack.c.l.s4 1983009808
        %v6232 = vunpack.c.0.s8 %v6231
        %v6233 = vlaneseq
        %v6234 = vshrl.u32 %v6233, 7
        %v6235 = vsub.s32 %v6232, %v6234
        %v6236 = vrot.slane %v5810, %v6235
        %v6237 = vcombine.low %v6229, %v6236
        %v6238 = vcombine.low %v5818, %v5817
        %v6240 = vunpack.c.l.s4 1983009808
        %v6241 = vunpack.c.0.s8 %v6240
        %v6242 = vlaneseq
        %v6243 = vshrl.u32 %v6242, 7
        %v6244 = vsub.s32 %v6241, %v6243
        %v6245 = vrot.slane %v6238, %v6244
        %v6247 = vunpack.c.l.s4 1983009808
        %v6248 = vunpack.c.0.s8 %v6247
        %v6249 = vlaneseq
        %v6250 = vshrl.u32 %v6249, 7
        %v6251 = vsub.s32 %v6248, %v6250
        %v6252 = vrot.slane %v5819, %v6251
        %v6253 = vcombine.low %v6245, %v6252
        %v6254 = vcombine.low %v5827, %v5835
        %v6256 = vunpack.c.l.s4 1983009808
        %v6257 = vunpack.c.0.s8 %v6256
        %v6258 = vlaneseq
        %v6259 = vshrl.u32 %v6258, 7
        %v6260 = vsub.s32 %v6257, %v6259
        %v6261 = vrot.slane %v6254, %v6260
        %v6263 = vunpack.c.l.s4 1983009808
        %v6264 = vunpack.c.0.s8 %v6263
        %v6265 = vlaneseq
        %v6266 = vshrl.u32 %v6265, 7
        %v6267 = vsub.s32 %v6264, %v6266
        %v6268 = vrot.slane %v5834, %v6267
        %v6269 = vcombine.low %v6261, %v6268
        %v6270 = vcombine.low %v5836, %v5844
        %v6272 = vunpack.c.l.s4 1983009808
        %v6273 = vunpack.c.0.s8 %v6272
        %v6274 = vlaneseq
        %v6275 = vshrl.u32 %v6274, 7
        %v6276 = vsub.s32 %v6273, %v6275
        %v6277 = vrot.slane %v6270, %v6276
        %v6279 = vunpack.c.l.s4 1983009808
        %v6280 = vunpack.c.0.s8 %v6279
        %v6281 = vlaneseq
        %v6282 = vshrl.u32 %v6281, 7
        %v6283 = vsub.s32 %v6280, %v6282
        %v6284 = vrot.slane %v5852, %v6283
        %v6285 = vcombine.low %v6277, %v6284
        %v6286 = vcombine.low %v5851, %v5853
        %v6288 = vunpack.c.l.s4 1983009808
        %v6289 = vunpack.c.0.s8 %v6288
        %v6290 = vlaneseq
        %v6291 = vshrl.u32 %v6290, 7
        %v6292 = vsub.s32 %v6289, %v6291
        %v6293 = vrot.slane %v6286, %v6292
        %v6295 = vunpack.c.l.s4 1983009808
        %v6296 = vunpack.c.0.s8 %v6295
        %v6297 = vlaneseq
        %v6298 = vshrl.u32 %v6297, 7
        %v6299 = vsub.s32 %v6296, %v6298
        %v6300 = vrot.slane %v5861, %v6299
        %v6301 = vcombine.low %v6293, %v6300
        %v6302 = vcombine.low %v5869, %v5868
        %v6304 = vunpack.c.l.s4 1983009808
        %v6305 = vunpack.c.0.s8 %v6304
        %v6306 = vlaneseq
        %v6307 = vshrl.u32 %v6306, 7
        %v6308 = vsub.s32 %v6305, %v6307
        %v6309 = vrot.slane %v6302, %v6308
        %v6311 = vunpack.c.l.s4 1983009808
        %v6312 = vunpack.c.0.s8 %v6311
        %v6313 = vlaneseq
        %v6314 = vshrl.u32 %v6313, 7
        %v6315 = vsub.s32 %v6312, %v6314
        %v6316 = vrot.slane %v5870, %v6315
        %v6317 = vcombine.low %v6309, %v6316
        %v6318 = vcombine.low %v5878, %v5886
        %v6320 = vunpack.c.l.s4 1983009808
        %v6321 = vunpack.c.0.s8 %v6320
        %v6322 = vlaneseq
        %v6323 = vshrl.u32 %v6322, 7
        %v6324 = vsub.s32 %v6321, %v6323
        %v6325 = vrot.slane %v6318, %v6324
        %v6327 = vunpack.c.l.s4 1983009808
        %v6328 = vunpack.c.0.s8 %v6327
        %v6329 = vlaneseq
        %v6330 = vshrl.u32 %v6329, 7
        %v6331 = vsub.s32 %v6328, %v6330
        %v6332 = vrot.slane %v5885, %v6331
        %v6333 = vcombine.low %v6325, %v6332
        %v6334 = vcombine.low %v5887, %v5895
        %v6336 = vunpack.c.l.s4 1983009808
        %v6337 = vunpack.c.0.s8 %v6336
        %v6338 = vlaneseq
        %v6339 = vshrl.u32 %v6338, 7
        %v6340 = vsub.s32 %v6337, %v6339
        %v6341 = vrot.slane %v6334, %v6340
        %v6343 = vunpack.c.l.s4 1983009808
        %v6344 = vunpack.c.0.s8 %v6343
        %v6345 = vlaneseq
        %v6346 = vshrl.u32 %v6345, 7
        %v6347 = vsub.s32 %v6344, %v6346
        %v6348 = vrot.slane %v5903, %v6347
        %v6349 = vcombine.low %v6341, %v6348
        %v6350 = vcombine.low %v5902, %v5904
        %v6352 = vunpack.c.l.s4 1983009808
        %v6353 = vunpack.c.0.s8 %v6352
        %v6354 = vlaneseq
        %v6355 = vshrl.u32 %v6354, 7
        %v6356 = vsub.s32 %v6353, %v6355
        %v6357 = vrot.slane %v6350, %v6356
        %v6359 = vunpack.c.l.s4 1983009808
        %v6360 = vunpack.c.0.s8 %v6359
        %v6361 = vlaneseq
        %v6362 = vshrl.u32 %v6361, 7
        %v6363 = vsub.s32 %v6360, %v6362
        %v6364 = vrot.slane %v5912, %v6363
        %v6365 = vcombine.low %v6357, %v6364
        %v6366 = vcombine.low %v5920, %v5919
        %v6368 = vunpack.c.l.s4 1983009808
        %v6369 = vunpack.c.0.s8 %v6368
        %v6370 = vlaneseq
        %v6371 = vshrl.u32 %v6370, 7
        %v6372 = vsub.s32 %v6369, %v6371
        %v6373 = vrot.slane %v6366, %v6372
        %v6375 = vunpack.c.l.s4 1983009808
        %v6376 = vunpack.c.0.s8 %v6375
        %v6377 = vlaneseq
        %v6378 = vshrl.u32 %v6377, 7
        %v6379 = vsub.s32 %v6376, %v6378
        %v6380 = vrot.slane %v5921, %v6379
        %v6381 = vcombine.low %v6373, %v6380
        %v6382 = vcombine.low %v5929, %v5937
        %v6384 = vunpack.c.l.s4 1983009808
        %v6385 = vunpack.c.0.s8 %v6384
        %v6386 = vlaneseq
        %v6387 = vshrl.u32 %v6386, 7
        %v6388 = vsub.s32 %v6385, %v6387
        %v6389 = vrot.slane %v6382, %v6388
        %v6391 = vunpack.c.l.s4 1983009808
        %v6392 = vunpack.c.0.s8 %v6391
        %v6393 = vlaneseq
        %v6394 = vshrl.u32 %v6393, 7
        %v6395 = vsub.s32 %v6392, %v6394
        %v6396 = vrot.slane %v5936, %v6395
        %v6397 = vcombine.low %v6389, %v6396
        %v6398 = vcombine.low %v5938, %v5946
        %v6400 = vunpack.c.l.s4 1983009808
        %v6401 = vunpack.c.0.s8 %v6400
        %v6402 = vlaneseq
        %v6403 = vshrl.u32 %v6402, 7
        %v6404 = vsub.s32 %v6401, %v6403
        %v6405 = vrot.slane %v6398, %v6404
        %v6407 = vunpack.c.l.s4 1983009808
        %v6408 = vunpack.c.0.s8 %v6407
        %v6409 = vlaneseq
        %v6410 = vshrl.u32 %v6409, 7
        %v6411 = vsub.s32 %v6408, %v6410
        %v6412 = vrot.slane %v5954, %v6411
        %v6413 = vcombine.low %v6405, %v6412
        %v6414 = vcombine.low %v5953, %v5955
        %v6416 = vunpack.c.l.s4 1983009808
        %v6417 = vunpack.c.0.s8 %v6416
        %v6418 = vlaneseq
        %v6419 = vshrl.u32 %v6418, 7
        %v6420 = vsub.s32 %v6417, %v6419
        %v6421 = vrot.slane %v6414, %v6420
        %v6423 = vunpack.c.l.s4 1983009808
        %v6424 = vunpack.c.0.s8 %v6423
        %v6425 = vlaneseq
        %v6426 = vshrl.u32 %v6425, 7
        %v6427 = vsub.s32 %v6424, %v6426
        %v6428 = vrot.slane %v5963, %v6427
        %v6429 = vcombine.low %v6421, %v6428
        %v6430 = vcombine.low %v5971, %v5970
        %v6432 = vunpack.c.l.s4 1983009808
        %v6433 = vunpack.c.0.s8 %v6432
        %v6434 = vlaneseq
        %v6435 = vshrl.u32 %v6434, 7
        %v6436 = vsub.s32 %v6433, %v6435
        %v6437 = vrot.slane %v6430, %v6436
        %v6439 = vunpack.c.l.s4 1983009808
        %v6440 = vunpack.c.0.s8 %v6439
        %v6441 = vlaneseq
        %v6442 = vshrl.u32 %v6441, 7
        %v6443 = vsub.s32 %v6440, %v6442
        %v6444 = vrot.slane %v5972, %v6443
        %v6445 = vcombine.low %v6437, %v6444
        %v6446 = vcombine.low %v5980, %v5988
        %v6448 = vunpack.c.l.s4 1983009808
        %v6449 = vunpack.c.0.s8 %v6448
        %v6450 = vlaneseq
        %v6451 = vshrl.u32 %v6450, 7
        %v6452 = vsub.s32 %v6449, %v6451
        %v6453 = vrot.slane %v6446, %v6452
        %v6455 = vunpack.c.l.s4 1983009808
        %v6456 = vunpack.c.0.s8 %v6455
        %v6457 = vlaneseq
        %v6458 = vshrl.u32 %v6457, 7
        %v6459 = vsub.s32 %v6456, %v6458
        %v6460 = vrot.slane %v5987, %v6459
        %v6461 = vcombine.low %v6453, %v6460
        %v6462 = vcombine.low %v5989, %v5997
        %v6464 = vunpack.c.l.s4 1983009808
        %v6465 = vunpack.c.0.s8 %v6464
        %v6466 = vlaneseq
        %v6467 = vshrl.u32 %v6466, 7
        %v6468 = vsub.s32 %v6465, %v6467
        %v6469 = vrot.slane %v6462, %v6468
        %v6471 = vunpack.c.l.s4 1983009808
        %v6472 = vunpack.c.0.s8 %v6471
        %v6473 = vlaneseq
        %v6474 = vshrl.u32 %v6473, 7
        %v6475 = vsub.s32 %v6472, %v6474
        %v6476 = vrot.slane %v6005, %v6475
        %v6477 = vcombine.low %v6469, %v6476
        %v6478 = vcombine.low %v6004, %v6006
        %v6480 = vunpack.c.l.s4 1983009808
        %v6481 = vunpack.c.0.s8 %v6480
        %v6482 = vlaneseq
        %v6483 = vshrl.u32 %v6482, 7
        %v6484 = vsub.s32 %v6481, %v6483
        %v6485 = vrot.slane %v6478, %v6484
        %v6487 = vunpack.c.l.s4 1983009808
        %v6488 = vunpack.c.0.s8 %v6487
        %v6489 = vlaneseq
        %v6490 = vshrl.u32 %v6489, 7
        %v6491 = vsub.s32 %v6488, %v6490
        %v6492 = vrot.slane %v6014, %v6491
        %v6493 = vcombine.low %v6485, %v6492
        %v6494 = vcombine.low %v6022, %v6021
        %v6496 = vunpack.c.l.s4 1983009808
        %v6497 = vunpack.c.0.s8 %v6496
        %v6498 = vlaneseq
        %v6499 = vshrl.u32 %v6498, 7
        %v6500 = vsub.s32 %v6497, %v6499
        %v6501 = vrot.slane %v6494, %v6500
        %v6503 = vunpack.c.l.s4 1983009808
        %v6504 = vunpack.c.0.s8 %v6503
        %v6505 = vlaneseq
        %v6506 = vshrl.u32 %v6505, 7
        %v6507 = vsub.s32 %v6504, %v6506
        %v6508 = vrot.slane %v6023, %v6507
        %v6509 = vcombine.low %v6501, %v6508
        %v6510 = vcombine.low %v6031, %v6039
        %v6512 = vunpack.c.l.s4 1983009808
        %v6513 = vunpack.c.0.s8 %v6512
        %v6514 = vlaneseq
        %v6515 = vshrl.u32 %v6514, 7
        %v6516 = vsub.s32 %v6513, %v6515
        %v6517 = vrot.slane %v6510, %v6516
        %v6519 = vunpack.c.l.s4 1983009808
        %v6520 = vunpack.c.0.s8 %v6519
        %v6521 = vlaneseq
        %v6522 = vshrl.u32 %v6521, 7
        %v6523 = vsub.s32 %v6520, %v6522
        %v6524 = vrot.slane %v6038, %v6523
        %v6525 = vcombine.low %v6517, %v6524
        %v6526 = vcombine.low %v6040, %v6048
        %v6528 = vunpack.c.l.s4 1983009808
        %v6529 = vunpack.c.0.s8 %v6528
        %v6530 = vlaneseq
        %v6531 = vshrl.u32 %v6530, 7
        %v6532 = vsub.s32 %v6529, %v6531
        %v6533 = vrot.slane %v6526, %v6532
        %v6535 = vunpack.c.l.s4 1983009808
        %v6536 = vunpack.c.0.s8 %v6535
        %v6537 = vlaneseq
        %v6538 = vshrl.u32 %v6537, 7
        %v6539 = vsub.s32 %v6536, %v6538
        %v6540 = vrot.slane %v6056, %v6539
        %v6541 = vcombine.low %v6533, %v6540
        %v6542 = vcombine.low %v6055, %v6057
        %v6544 = vunpack.c.l.s4 1983009808
        %v6545 = vunpack.c.0.s8 %v6544
        %v6546 = vlaneseq
        %v6547 = vshrl.u32 %v6546, 7
        %v6548 = vsub.s32 %v6545, %v6547
        %v6549 = vrot.slane %v6542, %v6548
        %v6551 = vunpack.c.l.s4 1983009808
        %v6552 = vunpack.c.0.s8 %v6551
        %v6553 = vlaneseq
        %v6554 = vshrl.u32 %v6553, 7
        %v6555 = vsub.s32 %v6552, %v6554
        %v6556 = vrot.slane %v6065, %v6555
        %v6557 = vcombine.low %v6549, %v6556
        %v6558 = vcombine.low %v6073, %v6072
        %v6560 = vunpack.c.l.s4 1983009808
        %v6561 = vunpack.c.0.s8 %v6560
        %v6562 = vlaneseq
        %v6563 = vshrl.u32 %v6562, 7
        %v6564 = vsub.s32 %v6561, %v6563
        %v6565 = vrot.slane %v6558, %v6564
        %v6567 = vunpack.c.l.s4 1983009808
        %v6568 = vunpack.c.0.s8 %v6567
        %v6569 = vlaneseq
        %v6570 = vshrl.u32 %v6569, 7
        %v6571 = vsub.s32 %v6568, %v6570
        %v6572 = vrot.slane %v6074, %v6571
        %v6573 = vcombine.low %v6565, %v6572
        %v6574 = vcombine.low %v6082, %v6090
        %v6576 = vunpack.c.l.s4 1983009808
        %v6577 = vunpack.c.0.s8 %v6576
        %v6578 = vlaneseq
        %v6579 = vshrl.u32 %v6578, 7
        %v6580 = vsub.s32 %v6577, %v6579
        %v6581 = vrot.slane %v6574, %v6580
        %v6583 = vunpack.c.l.s4 1983009808
        %v6584 = vunpack.c.0.s8 %v6583
        %v6585 = vlaneseq
        %v6586 = vshrl.u32 %v6585, 7
        %v6587 = vsub.s32 %v6584, %v6586
        %v6588 = vrot.slane %v6089, %v6587
        %v6589 = vcombine.low %v6581, %v6588
        %v6590 = vcombine.low %v6091, %v6099
        %v6592 = vunpack.c.l.s4 1983009808
        %v6593 = vunpack.c.0.s8 %v6592
        %v6594 = vlaneseq
        %v6595 = vshrl.u32 %v6594, 7
        %v6596 = vsub.s32 %v6593, %v6595
        %v6597 = vrot.slane %v6590, %v6596
        %v6599 = vunpack.c.l.s4 1983009808
        %v6600 = vunpack.c.0.s8 %v6599
        %v6601 = vlaneseq
        %v6602 = vshrl.u32 %v6601, 7
        %v6603 = vsub.s32 %v6600, %v6602
        %v6604 = vrot.slane %v6107, %v6603
        %v6605 = vcombine.low %v6597, %v6604
        %v6606 = vcombine.low %v6106, %v6108
        %v6608 = vunpack.c.l.s4 1983009808
        %v6609 = vunpack.c.0.s8 %v6608
        %v6610 = vlaneseq
        %v6611 = vshrl.u32 %v6610, 7
        %v6612 = vsub.s32 %v6609, %v6611
        %v6613 = vrot.slane %v6606, %v6612
        %v6615 = vunpack.c.l.s4 1983009808
        %v6616 = vunpack.c.0.s8 %v6615
        %v6617 = vlaneseq
        %v6618 = vshrl.u32 %v6617, 7
        %v6619 = vsub.s32 %v6616, %v6618
        %v6620 = vrot.slane %v6116, %v6619
        %v6621 = vcombine.low %v6613, %v6620
        %v6622 = vcombine.low %v6124, %v6123
        %v6624 = vunpack.c.l.s4 1983009808
        %v6625 = vunpack.c.0.s8 %v6624
        %v6626 = vlaneseq
        %v6627 = vshrl.u32 %v6626, 7
        %v6628 = vsub.s32 %v6625, %v6627
        %v6629 = vrot.slane %v6622, %v6628
        %v6631 = vunpack.c.l.s4 1983009808
        %v6632 = vunpack.c.0.s8 %v6631
        %v6633 = vlaneseq
        %v6634 = vshrl.u32 %v6633, 7
        %v6635 = vsub.s32 %v6632, %v6634
        %v6636 = vrot.slane %v6125, %v6635
        %v6637 = vcombine.low %v6629, %v6636
        %vm6670 = vcmask 1045504
        %v6671 = vsel %vm6670, %v6141, -inf
        %v6672 = vrot.slane %v6671, 4
        %v6673 = vmax.f32 %v6671, %v6672
        %v6674 = vrot.slane %v6673, 2
        %v6675 = vmax.f32 %v6673, %v6674
        %v6676 = vrot.slane %v6675, 1
        %v6677 = vmax.f32 %v6675, %v6676
        %v6678 = vsel %vm6670, %v6157, -inf
        %v6679 = vrot.slane %v6678, 4
        %v6680 = vmax.f32 %v6678, %v6679
        %v6681 = vrot.slane %v6680, 2
        %v6682 = vmax.f32 %v6680, %v6681
        %v6683 = vrot.slane %v6682, 1
        %v6684 = vmax.f32 %v6682, %v6683
        %v6685 = vsel %vm6670, %v6173, -inf
        %v6686 = vrot.slane %v6685, 4
        %v6687 = vmax.f32 %v6685, %v6686
        %v6688 = vrot.slane %v6687, 2
        %v6689 = vmax.f32 %v6687, %v6688
        %v6690 = vrot.slane %v6689, 1
        %v6691 = vmax.f32 %v6689, %v6690
        %v6692 = vsel %vm6670, %v6189, -inf
        %v6693 = vrot.slane %v6692, 4
        %v6694 = vmax.f32 %v6692, %v6693
        %v6695 = vrot.slane %v6694, 2
        %v6696 = vmax.f32 %v6694, %v6695
        %v6697 = vrot.slane %v6696, 1
        %v6698 = vmax.f32 %v6696, %v6697
        %v6699 = vsel %vm6670, %v6205, -inf
        %v6700 = vrot.slane %v6699, 4
        %v6701 = vmax.f32 %v6699, %v6700
        %v6702 = vrot.slane %v6701, 2
        %v6703 = vmax.f32 %v6701, %v6702
        %v6704 = vrot.slane %v6703, 1
        %v6705 = vmax.f32 %v6703, %v6704
        %v6706 = vsel %vm6670, %v6221, -inf
        %v6707 = vrot.slane %v6706, 4
        %v6708 = vmax.f32 %v6706, %v6707
        %v6709 = vrot.slane %v6708, 2
        %v6710 = vmax.f32 %v6708, %v6709
        %v6711 = vrot.slane %v6710, 1
        %v6712 = vmax.f32 %v6710, %v6711
        %v6713 = vsel %vm6670, %v6237, -inf
        %v6714 = vrot.slane %v6713, 4
        %v6715 = vmax.f32 %v6713, %v6714
        %v6716 = vrot.slane %v6715, 2
        %v6717 = vmax.f32 %v6715, %v6716
        %v6718 = vrot.slane %v6717, 1
        %v6719 = vmax.f32 %v6717, %v6718
        %v6720 = vsel %vm6670, %v6253, -inf
        %v6721 = vrot.slane %v6720, 4
        %v6722 = vmax.f32 %v6720, %v6721
        %v6723 = vrot.slane %v6722, 2
        %v6724 = vmax.f32 %v6722, %v6723
        %v6725 = vrot.slane %v6724, 1
        %v6726 = vmax.f32 %v6724, %v6725
        %v6727 = vsel %vm6670, %v6269, -inf
        %v6728 = vrot.slane %v6727, 4
        %v6729 = vmax.f32 %v6727, %v6728
        %v6730 = vrot.slane %v6729, 2
        %v6731 = vmax.f32 %v6729, %v6730
        %v6732 = vrot.slane %v6731, 1
        %v6733 = vmax.f32 %v6731, %v6732
        %v6734 = vsel %vm6670, %v6285, -inf
        %v6735 = vrot.slane %v6734, 4
        %v6736 = vmax.f32 %v6734, %v6735
        %v6737 = vrot.slane %v6736, 2
        %v6738 = vmax.f32 %v6736, %v6737
        %v6739 = vrot.slane %v6738, 1
        %v6740 = vmax.f32 %v6738, %v6739
        %v6741 = vsel %vm6670, %v6301, -inf
        %v6742 = vrot.slane %v6741, 4
        %v6743 = vmax.f32 %v6741, %v6742
        %v6744 = vrot.slane %v6743, 2
        %v6745 = vmax.f32 %v6743, %v6744
        %v6746 = vrot.slane %v6745, 1
        %v6747 = vmax.f32 %v6745, %v6746
        %v6748 = vsel %vm6670, %v6317, -inf
        %v6749 = vrot.slane %v6748, 4
        %v6750 = vmax.f32 %v6748, %v6749
        %v6751 = vrot.slane %v6750, 2
        %v6752 = vmax.f32 %v6750, %v6751
        %v6753 = vrot.slane %v6752, 1
        %v6754 = vmax.f32 %v6752, %v6753
        %v6755 = vsel %vm6670, %v6333, -inf
        %v6756 = vrot.slane %v6755, 4
        %v6757 = vmax.f32 %v6755, %v6756
        %v6758 = vrot.slane %v6757, 2
        %v6759 = vmax.f32 %v6757, %v6758
        %v6760 = vrot.slane %v6759, 1
        %v6761 = vmax.f32 %v6759, %v6760
        %v6762 = vsel %vm6670, %v6349, -inf
        %v6763 = vrot.slane %v6762, 4
        %v6764 = vmax.f32 %v6762, %v6763
        %v6765 = vrot.slane %v6764, 2
        %v6766 = vmax.f32 %v6764, %v6765
        %v6767 = vrot.slane %v6766, 1
        %v6768 = vmax.f32 %v6766, %v6767
        %v6769 = vsel %vm6670, %v6365, -inf
        %v6770 = vrot.slane %v6769, 4
        %v6771 = vmax.f32 %v6769, %v6770
        %v6772 = vrot.slane %v6771, 2
        %v6773 = vmax.f32 %v6771, %v6772
        %v6774 = vrot.slane %v6773, 1
        %v6775 = vmax.f32 %v6773, %v6774
        %v6776 = vsel %vm6670, %v6381, -inf
        %v6777 = vrot.slane %v6776, 4
        %v6778 = vmax.f32 %v6776, %v6777
        %v6779 = vrot.slane %v6778, 2
        %v6780 = vmax.f32 %v6778, %v6779
        %v6781 = vrot.slane %v6780, 1
        %v6782 = vmax.f32 %v6780, %v6781
        %v6783 = vsel %vm6670, %v6397, -inf
        %v6784 = vrot.slane %v6783, 4
        %v6785 = vmax.f32 %v6783, %v6784
        %v6786 = vrot.slane %v6785, 2
        %v6787 = vmax.f32 %v6785, %v6786
        %v6788 = vrot.slane %v6787, 1
        %v6789 = vmax.f32 %v6787, %v6788
        %v6790 = vsel %vm6670, %v6413, -inf
        %v6791 = vrot.slane %v6790, 4
        %v6792 = vmax.f32 %v6790, %v6791
        %v6793 = vrot.slane %v6792, 2
        %v6794 = vmax.f32 %v6792, %v6793
        %v6795 = vrot.slane %v6794, 1
        %v6796 = vmax.f32 %v6794, %v6795
        %v6797 = vsel %vm6670, %v6429, -inf
        %v6798 = vrot.slane %v6797, 4
        %v6799 = vmax.f32 %v6797, %v6798
        %v6800 = vrot.slane %v6799, 2
        %v6801 = vmax.f32 %v6799, %v6800
        %v6802 = vrot.slane %v6801, 1
        %v6803 = vmax.f32 %v6801, %v6802
        %v6804 = vsel %vm6670, %v6445, -inf
        %v6805 = vrot.slane %v6804, 4
        %v6806 = vmax.f32 %v6804, %v6805
        %v6807 = vrot.slane %v6806, 2
        %v6808 = vmax.f32 %v6806, %v6807
        %v6809 = vrot.slane %v6808, 1
        %v6810 = vmax.f32 %v6808, %v6809
        %v6811 = vsel %vm6670, %v6461, -inf
        %v6812 = vrot.slane %v6811, 4
        %v6813 = vmax.f32 %v6811, %v6812
        %v6814 = vrot.slane %v6813, 2
        %v6815 = vmax.f32 %v6813, %v6814
        %v6816 = vrot.slane %v6815, 1
        %v6817 = vmax.f32 %v6815, %v6816
        %v6818 = vsel %vm6670, %v6477, -inf
        %v6819 = vrot.slane %v6818, 4
        %v6820 = vmax.f32 %v6818, %v6819
        %v6821 = vrot.slane %v6820, 2
        %v6822 = vmax.f32 %v6820, %v6821
        %v6823 = vrot.slane %v6822, 1
        %v6824 = vmax.f32 %v6822, %v6823
        %v6825 = vsel %vm6670, %v6493, -inf
        %v6826 = vrot.slane %v6825, 4
        %v6827 = vmax.f32 %v6825, %v6826
        %v6828 = vrot.slane %v6827, 2
        %v6829 = vmax.f32 %v6827, %v6828
        %v6830 = vrot.slane %v6829, 1
        %v6831 = vmax.f32 %v6829, %v6830
        %v6832 = vsel %vm6670, %v6509, -inf
        %v6833 = vrot.slane %v6832, 4
        %v6834 = vmax.f32 %v6832, %v6833
        %v6835 = vrot.slane %v6834, 2
        %v6836 = vmax.f32 %v6834, %v6835
        %v6837 = vrot.slane %v6836, 1
        %v6838 = vmax.f32 %v6836, %v6837
        %v6839 = vsel %vm6670, %v6525, -inf
        %v6840 = vrot.slane %v6839, 4
        %v6841 = vmax.f32 %v6839, %v6840
        %v6842 = vrot.slane %v6841, 2
        %v6843 = vmax.f32 %v6841, %v6842
        %v6844 = vrot.slane %v6843, 1
        %v6845 = vmax.f32 %v6843, %v6844
        %v6846 = vsel %vm6670, %v6541, -inf
        %v6847 = vrot.slane %v6846, 4
        %v6848 = vmax.f32 %v6846, %v6847
        %v6849 = vrot.slane %v6848, 2
        %v6850 = vmax.f32 %v6848, %v6849
        %v6851 = vrot.slane %v6850, 1
        %v6852 = vmax.f32 %v6850, %v6851
        %v6853 = vsel %vm6670, %v6557, -inf
        %v6854 = vrot.slane %v6853, 4
        %v6855 = vmax.f32 %v6853, %v6854
        %v6856 = vrot.slane %v6855, 2
        %v6857 = vmax.f32 %v6855, %v6856
        %v6858 = vrot.slane %v6857, 1
        %v6859 = vmax.f32 %v6857, %v6858
        %v6860 = vsel %vm6670, %v6573, -inf
        %v6861 = vrot.slane %v6860, 4
        %v6862 = vmax.f32 %v6860, %v6861
        %v6863 = vrot.slane %v6862, 2
        %v6864 = vmax.f32 %v6862, %v6863
        %v6865 = vrot.slane %v6864, 1
        %v6866 = vmax.f32 %v6864, %v6865
        %v6867 = vsel %vm6670, %v6589, -inf
        %v6868 = vrot.slane %v6867, 4
        %v6869 = vmax.f32 %v6867, %v6868
        %v6870 = vrot.slane %v6869, 2
        %v6871 = vmax.f32 %v6869, %v6870
        %v6872 = vrot.slane %v6871, 1
        %v6873 = vmax.f32 %v6871, %v6872
        %v6874 = vsel %vm6670, %v6605, -inf
        %v6875 = vrot.slane %v6874, 4
        %v6876 = vmax.f32 %v6874, %v6875
        %v6877 = vrot.slane %v6876, 2
        %v6878 = vmax.f32 %v6876, %v6877
        %v6879 = vrot.slane %v6878, 1
        %v6880 = vmax.f32 %v6878, %v6879
        %v6881 = vsel %vm6670, %v6621, -inf
        %v6882 = vrot.slane %v6881, 4
        %v6883 = vmax.f32 %v6881, %v6882
        %v6884 = vrot.slane %v6883, 2
        %v6885 = vmax.f32 %v6883, %v6884
        %v6886 = vrot.slane %v6885, 1
        %v6887 = vmax.f32 %v6885, %v6886
        %v6888 = vsel %vm6670, %v6637, -inf
        %v6889 = vrot.slane %v6888, 4
        %v6890 = vmax.f32 %v6888, %v6889
        %v6891 = vrot.slane %v6890, 2
        %v6892 = vmax.f32 %v6890, %v6891
        %v6893 = vrot.slane %v6892, 1
        %v6894 = vmax.f32 %v6892, %v6893
        %vm6927 = vcmask 1041409
        %v6928 = vsel %vm6927, %v6684, %v6677
        %vm6929 = vcmask 1042434
        %v6930 = vsel %vm6929, %v6691, %v6928
        %vm6931 = vcmask 1043459
        %v6932 = vsel %vm6931, %v6698, %v6930
        %vm6933 = vcmask 1044484
        %v6934 = vsel %vm6933, %v6705, %v6932
        %vm6935 = vcmask 1045509
        %v6936 = vsel %vm6935, %v6712, %v6934
        %vm6937 = vcmask 1046534
        %v6938 = vsel %vm6937, %v6719, %v6936
        %vm6939 = vcmask 1047559
        %v6940 = vsel %vm6939, %v6726, %v6938
        %v6941 = vsel %vm6927, %v6740, %v6733
        %v6942 = vsel %vm6929, %v6747, %v6941
        %v6943 = vsel %vm6931, %v6754, %v6942
        %v6944 = vsel %vm6933, %v6761, %v6943
        %v6945 = vsel %vm6935, %v6768, %v6944
        %v6946 = vsel %vm6937, %v6775, %v6945
        %v6947 = vsel %vm6939, %v6782, %v6946
        %v6948 = vsel %vm6927, %v6796, %v6789
        %v6949 = vsel %vm6929, %v6803, %v6948
        %v6950 = vsel %vm6931, %v6810, %v6949
        %v6951 = vsel %vm6933, %v6817, %v6950
        %v6952 = vsel %vm6935, %v6824, %v6951
        %v6953 = vsel %vm6937, %v6831, %v6952
        %v6954 = vsel %vm6939, %v6838, %v6953
        %v6955 = vsel %vm6927, %v6852, %v6845
        %v6956 = vsel %vm6929, %v6859, %v6955
        %v6957 = vsel %vm6931, %v6866, %v6956
        %v6958 = vsel %vm6933, %v6873, %v6957
        %v6959 = vsel %vm6935, %v6880, %v6958
        %v6960 = vsel %vm6937, %v6887, %v6959
        %v6961 = vsel %vm6939, %v6894, %v6960
        %6966 = vst [vmem:[%s220] sm:$0xff] %v6940
        %6967 = vst [vmem:[%s220 + $0x8] sm:$0xff] %v6947
        %6968 = vst [vmem:[%s220 + $0x10] sm:$0xff] %v6954
        %6969 = vst [vmem:[%s220 + $0x18] sm:$0xff] %v6961
        %s6970 = sand.u32 %s137, 1
        %s6971 = scalar_lea.sflag [#allocation3], %s6970
        %s6972 = sand.u32 %s137, 1
        %s6973 = smul.addr %s6972, 32
        %s6974 = scalar_lea.vmem [#allocation2], %s6973
        // Predicated region
        $region41: #{tpu_custom_call.1} parent=39 // pred_check
          %p6975 = pneg %p147
        $region42: #{tpu_custom_call.1} parent=39 // pred_check_branch
          %6977 = sbr.rel (%p6975) target = $region44
        $region43: #{tpu_custom_call.1} parent=39 // pred_region
          %s6978 = smul.u32 4, %s19
          %s6980 = ssub.s32 512, 512
          %6981 = vsyncadd %s6971, %s6980
          %s6982 = smul.addr %s6978, 128
          %s6983 = scalar_lea.hbm %s5, %s6982
          %s6984 = sshll.u32 %s6974, 4
          %s6985 = int_to_ptr.vmem [resolvable:$true] %s6984
          %6990 = dma.vmem_to_hbm [thread:$0]  %s6985, 512, %s6983, %s6971, 128, 128, 8
        $region44: #{tpu_custom_call.1} parent=39 // pred_fallthru
          _
      $region40: #{tpu_custom_call.1} parent=5 // pred_fallthru
        _
      %p6991 = scmp.le.s32.totalorder 2, %s14
      // Predicated region
      $region45: #{tpu_custom_call.1} parent=5 // pred_check
        %p6992 = pneg %p6991
      $region46: #{tpu_custom_call.1} parent=5 // pred_check_branch
        %6994 = sbr.rel (%p6992) target = $region48
      $region47: #{tpu_custom_call.1} parent=5 // pred_region
        %s6995 = ssub.s32 %s14, 2
        // Predicated region
        $region49: #{tpu_custom_call.1} parent=47 // pred_check
          %p6996 = pneg %p153
        $region50: #{tpu_custom_call.1} parent=47 // pred_check_branch
          %6998 = sbr.rel (%p6996) target = $region52
        $region51: #{tpu_custom_call.1} parent=47 // pred_region
          %s6999 = sand.u32 %s138, 1
          %s7000 = scalar_lea.sflag [#allocation3], %s6999
          %s7001 = sand.u32 %s138, 1
          %s7002 = smul.addr %s7001, 32
          %s7003 = scalar_lea.vmem [#allocation2], %s7002
          %7004 = dma.done %s7000, 512
        $region52: #{tpu_custom_call.1} parent=47 // pred_fallthru
          _
      $region48: #{tpu_custom_call.1} parent=5 // pred_fallthru
        _
    $region6: #{tpu_custom_call.1} parent=1 // loop_footer
      %s18 = sadd.s32 1, %s14
    $region7: #{tpu_custom_call.1} parent=1 // loop_footer_branch
      %13 = sbr.rel target = $region3
    $region8: #{tpu_custom_call.1} parent=1 // loop_exit
      _
    %7005 = vsyncpa [#allocation3], 1
    %s7006 = scalar_lea.sflag [#allocation3], 1
    %7007 = vsyncpa %s7006, 1

</llo_original>
